<compile_context>
chip_gen: v6e
topology: v6e:2x2x1
jax: 0.10.0
libtpu: 0.0.40
codegen_flags: <defaults>
</compile_context>

<pallas_src>
import jax
import jax.numpy as jnp
from jax.experimental import pallas as pl
from jax.experimental.pallas import tpu as pltpu

BN_EPS = 1e-5


def _bn_relu(h, gamma, beta):
    # Training-mode BatchNorm1d (biased batch variance) folded into one scale/shift FMA, then ReLU.
    mean = jnp.mean(h, axis=0, keepdims=True)
    var = jnp.mean((h - mean) * (h - mean), axis=0, keepdims=True)
    scale = gamma * jax.lax.rsqrt(var + BN_EPS)
    shift = beta - mean * scale
    return jnp.maximum(h * scale + shift, 0.0)


def sentiment_kernel(tok_ref,                  # SMEM (B, W) int32   (scalar prefetch)
                     emb_hbm,                  # HBM  (V, E) f32     (memory_space=pl.ANY)
                     w1_ref,                   # VMEM (E, H1) bf16   (per-word slice, streamed)
                     g1_ref, be1_ref,          # VMEM (1, H1) f32
                     w2_ref, g2_ref, be2_ref,  # VMEM (H1,H2)/(1,H2)/(1,H2) f32
                     w3_ref, b3_ref,           # VMEM (H2,O)/(1,O) f32
                     out_ref,                  # VMEM (B, O) f32     (resident across the word grid)
                     acc_ref,                  # VMEM (B, H1) f32 scratch (first-Linear accumulator)
                     ebuf_ref,                 # VMEM (2, B, E) f32 scratch (double-buffered gather)
                     sem_ref):                 # DMA semaphores (2, B)
    w = pl.program_id(0)
    n_words = pl.num_programs(0)
    B = acc_ref.shape[0]
    vocab = emb_hbm.shape[0]
    slot = jax.lax.rem(w, 2)

    def gather_word(word, dst_slot):
        # DMA-gather the B embedding rows for `word` straight from HBM.
        for b in range(B):
            tok = tok_ref[b, word]
            # TODO(synk): PyTorch nn.Embedding raises on out-of-range ids; here we clamp instead.
            tok = jnp.minimum(jnp.maximum(tok, 0), vocab - 1)
            pltpu.make_async_copy(emb_hbm.at[tok],
                                  ebuf_ref.at[dst_slot, b],
                                  sem_ref.at[dst_slot, b]).start()

    @pl.when(w == 0)
    def _():
        acc_ref[...] = jnp.zeros_like(acc_ref)
        gather_word(0, 0)

    # Prefetch next word's rows into the other slot (overlaps with this word's compute).
    @pl.when(w + 1 < n_words)
    def _():
        gather_word(w + 1, 1 - slot)

    # Wait for this word's rows.
    for b in range(B):
        pltpu.make_async_copy(emb_hbm.at[0],
                              ebuf_ref.at[slot, b],
                              sem_ref.at[slot, b]).wait()

    # Per-word accumulation of the first Linear: acc += embeds[:, w, :] @ w1[w]  (bf16 MXU, f32 acc).
    e = ebuf_ref[slot].astype(jnp.bfloat16)
    acc_ref[...] += jnp.dot(e, w1_ref[...], preferred_element_type=jnp.float32)

    @pl.when(w == n_words - 1)
    def _():
        # b1/b2 are omitted: a per-feature bias added right before training-mode BatchNorm is
        # cancelled exactly by the mean subtraction, so dropping the adds is mathematically exact.
        h = _bn_relu(acc_ref[...], g1_ref[...], be1_ref[...])
        h = _bn_relu(jnp.dot(h, w2_ref[...], preferred_element_type=jnp.float32),
                     g2_ref[...], be2_ref[...])
        h = jnp.dot(h, w3_ref[...], preferred_element_type=jnp.float32) + b3_ref[...]
        out_ref[...] = jax.nn.sigmoid(h).astype(out_ref.dtype)


def sentiment_embedding_forward(tokens, params):
    """tokens: (B, num_words) int32. Returns (B, output_size) float32."""
    B, num_words = tokens.shape
    vocab, emb_dim = params["emb"].shape
    hid1 = params["w1"].shape[1]      # 64
    hid2 = params["w2"].shape[1]      # 16
    out_dim = params["w3"].shape[1]   # output_size

    # View the first-layer weight per word ((W*E, H1) -> (W, E, H1)) and cast to bf16:
    # halves HBM traffic for the dominant streamed weight and feeds the MXU natively.
    w1_words = params["w1"].reshape(num_words, emb_dim, hid1).astype(jnp.bfloat16)

    const = lambda w, tok: (0, 0)
    grid_spec = pltpu.PrefetchScalarGridSpec(
        num_scalar_prefetch=1,                 # tokens -> SMEM, visible to the kernel & index_maps
        grid=(num_words,),                     # word axis == K-reduction of the first Linear
        in_specs=[
            pl.BlockSpec(memory_space=pl.ANY),                              # embedding table stays in HBM
            pl.BlockSpec((None, emb_dim, hid1), lambda w, tok: (w, 0, 0)),  # streamed per-word w1 slice
            pl.BlockSpec((1, hid1), const),
            pl.BlockSpec((1, hid1), const),
            pl.BlockSpec((hid1, hid2), const),
            pl.BlockSpec((1, hid2), const),
            pl.BlockSpec((1, hid2), const),
            pl.BlockSpec((hid2, out_dim), const),
            pl.BlockSpec((1, out_dim), const),
        ],
        out_specs=pl.BlockSpec((B, out_dim), const),   # resident output, written on the last word step
        scratch_shapes=[
            pltpu.VMEM((B, hid1), jnp.float32),        # first-Linear accumulator
            pltpu.VMEM((2, B, emb_dim), jnp.float32),  # double-buffered gathered embedding rows
            pltpu.SemaphoreType.DMA((2, B)),
        ],
    )
    return pl.pallas_call(
        sentiment_kernel,
        out_shape=jax.ShapeDtypeStruct((B, out_dim), jnp.float32),
        grid_spec=grid_spec,
        compiler_params=pltpu.CompilerParams(
            # Word axis is a reduction (accumulator/output resident across it).
            dimension_semantics=("arbitrary",),
        ),
    )(tokens.astype(jnp.int32), params["emb"],
      w1_words, params["g1"], params["be1"],
      params["w2"], params["g2"], params["be2"],
      params["w3"], params["b3"])


def reference_forward(tokens, params):
    """Pure-JAX reference matching the PyTorch module (training-mode BatchNorm)."""
    emb = params["emb"][tokens]                       # (B, W, E)
    feats = emb.reshape(tokens.shape[0], -1)          # (B, W*E)

    def bn(h, g, b):
        mean = h.mean(0, keepdims=True)
        var = ((h - mean) ** 2).mean(0, keepdims=True)
        return (h - mean) * jax.lax.rsqrt(var + BN_EPS) * g + b

    h = feats @ params["w1"] + params["b1"]
    h = jnp.maximum(bn(h, params["g1"], params["be1"]), 0.0)
    h = h @ params["w2"] + params["b2"]
    h = jnp.maximum(bn(h, params["g2"], params["be2"]), 0.0)
    h = h @ params["w3"] + params["b3"]
    return jax.nn.sigmoid(h)


def init_params(key, vocab_size, embedding_dim, num_words, output_size):
    ks = jax.random.split(key, 8)
    in_feat = embedding_dim * num_words
    scale = 0.05
    return {
        "emb": scale * jax.random.normal(ks[0], (vocab_size, embedding_dim), jnp.float32),
        "w1": scale * jax.random.normal(ks[1], (in_feat, 64), jnp.float32),
        "b1": scale * jax.random.normal(ks[2], (1, 64), jnp.float32),   # cancelled by BN (kept for parity)
        "g1": jnp.ones((1, 64), jnp.float32),
        "be1": jnp.zeros((1, 64), jnp.float32),
        "w2": scale * jax.random.normal(ks[3], (64, 16), jnp.float32),
        "b2": scale * jax.random.normal(ks[4], (1, 16), jnp.float32),   # cancelled by BN (kept for parity)
        "g2": jnp.ones((1, 16), jnp.float32),
        "be2": jnp.zeros((1, 16), jnp.float32),
        "w3": scale * jax.random.normal(ks[5], (16, output_size), jnp.float32),
        "b3": scale * jax.random.normal(ks[6], (1, output_size), jnp.float32),
    }


if __name__ == "__main__":
    # Small shapes consistent with the module (full sizes: vocab=10416, num_words=100, emb=728, out=1).
    B, NUM_WORDS, EMB_DIM, VOCAB, OUT = 8, 8, 128, 256, 1

    key = jax.random.PRNGKey(0)
    k_tok, k_par = jax.random.split(key)
    tokens = jax.random.randint(k_tok, (B, NUM_WORDS), 0, VOCAB, dtype=jnp.int32)
    params = init_params(k_par, VOCAB, EMB_DIM, NUM_WORDS, OUT)

    out = sentiment_embedding_forward(tokens, params)
    jax.block_until_ready(out)

    ref = reference_forward(tokens, params)
    assert out.shape == (B, OUT) and out.dtype == jnp.float32
    max_err = float(jnp.max(jnp.abs(out - ref)))
    assert max_err < 5e-2, f"mismatch vs reference: {max_err}"
    print("KERNEL_OK")
</pallas_src>

<mosaic_0001>
module attributes {stable_mosaic.version = 11 : i64} {
  func.func @sentiment_kernel(%arg0: i32, %arg1: memref<8x8xi32, #tpu.memory_space<smem>>, %arg2: memref<256x128xf32, #tpu.memory_space<any>>, %arg3: memref<1x128x64xbf16, #tpu.memory_space<vmem>>, %arg4: memref<1x64xf32, #tpu.memory_space<vmem>>, %arg5: memref<1x64xf32, #tpu.memory_space<vmem>>, %arg6: memref<64x16xf32, #tpu.memory_space<vmem>>, %arg7: memref<1x16xf32, #tpu.memory_space<vmem>>, %arg8: memref<1x16xf32, #tpu.memory_space<vmem>>, %arg9: memref<16x1xf32, #tpu.memory_space<vmem>>, %arg10: memref<1x1xf32, #tpu.memory_space<vmem>>, %arg11: memref<8x1xf32, #tpu.memory_space<vmem>>, %arg12: memref<8x64xf32, #tpu.memory_space<vmem>>, %arg13: memref<2x8x128xf32, #tpu.memory_space<vmem>>, %arg14: memref<2x8x!tpu.dma_semaphore, #tpu.memory_space<semaphore_mem>>) attributes {dimension_semantics = [#tpu.dimension_semantics<arbitrary>], iteration_bounds = array<i64: 8>, scalar_prefetch = 1 : i64, scratch_operands = 3 : i64, tpu.core_type = #tpu.core_type<tc>, window_params = [{}, {transform_indices = @transform_1, window_bounds = array<i64: 1, 128, 64>}, {pipeline_mode = #tpu.pipeline_mode<synchronous>, transform_indices = @transform_2, window_bounds = array<i64: 1, 64>}, {pipeline_mode = #tpu.pipeline_mode<synchronous>, transform_indices = @transform_3, window_bounds = array<i64: 1, 64>}, {pipeline_mode = #tpu.pipeline_mode<synchronous>, transform_indices = @transform_4, window_bounds = array<i64: 64, 16>}, {pipeline_mode = #tpu.pipeline_mode<synchronous>, transform_indices = @transform_5, window_bounds = array<i64: 1, 16>}, {pipeline_mode = #tpu.pipeline_mode<synchronous>, transform_indices = @transform_6, window_bounds = array<i64: 1, 16>}, {pipeline_mode = #tpu.pipeline_mode<synchronous>, transform_indices = @transform_7, window_bounds = array<i64: 16, 1>}, {pipeline_mode = #tpu.pipeline_mode<synchronous>, transform_indices = @transform_8, window_bounds = array<i64: 1, 1>}, {pipeline_mode = #tpu.pipeline_mode<synchronous>, transform_indices = @transform_9, window_bounds = array<i64: 8, 1>}]} {
    %c2_i32 = arith.constant 2 : i32
    %0 = arith.remsi %arg0, %c2_i32 : i32
    %c0_i32 = arith.constant 0 : i32
    %1 = arith.cmpi eq, %arg0, %c0_i32 : i32
    %2 = arith.extui %1 : i1 to i32
    %c0_i32_0 = arith.constant 0 : i32
    %3 = arith.cmpi ne, %2, %c0_i32_0 : i32
    scf.if %3 {
      %cst_47 = arith.constant 0.000000e+00 : f32
      %69 = vector.broadcast %cst_47 : f32 to vector<8x64xf32>
      %c0_48 = arith.constant 0 : index
      %c0_49 = arith.constant 0 : index
      %70 = vector.load %arg12[%c0_48, %c0_49] : memref<8x64xf32, #tpu.memory_space<vmem>>, vector<8x64xf32>
      tpu.vector_store %arg12[%c0_48, %c0_49], %69 {strides = array<i32>} : memref<8x64xf32, #tpu.memory_space<vmem>>, vector<8x64xf32>,
      %c0_50 = arith.constant 0 : index
      %c0_51 = arith.constant 0 : index
      %71 = memref.load %arg1[%c0_50, %c0_51] : memref<8x8xi32, #tpu.memory_space<smem>>
      %c0_i32_52 = arith.constant 0 : i32
      %72 = arith.maxsi %71, %c0_i32_52 : i32
      %c255_i32 = arith.constant 255 : i32
      %73 = arith.minsi %72, %c255_i32 : i32
      %c0_i32_53 = arith.constant 0 : i32
      %c0_i32_54 = arith.constant 0 : i32
      %c0_i32_55 = arith.constant 0 : i32
      %c0_i32_56 = arith.constant 0 : i32
      %c0_i32_57 = arith.constant 0 : i32
      %74 = tpu.memref_slice %arg2[%73, %c0_i32_57] : memref<256x128xf32, #tpu.memory_space<any>> -> memref<1x128xf32, #tpu.memory_space<any>>
      %75 = tpu.memref_squeeze %74 : memref<1x128xf32, #tpu.memory_space<any>> -> memref<128xf32, #tpu.memory_space<any>>
      %c0_i32_58 = arith.constant 0 : i32
      %76 = tpu.memref_slice %arg13[%c0_i32_53, %c0_i32_54, %c0_i32_58] : memref<2x8x128xf32, #tpu.memory_space<vmem>> -> memref<1x1x128xf32, #tpu.memory_space<vmem>>
      %77 = tpu.memref_squeeze %76 : memref<1x1x128xf32, #tpu.memory_space<vmem>> -> memref<128xf32, #tpu.memory_space<vmem>>
      %78 = tpu.memref_slice %arg14[%c0_i32_55, %c0_i32_56] : memref<2x8x!tpu.dma_semaphore, #tpu.memory_space<semaphore_mem>> -> memref<1x1x!tpu.dma_semaphore, #tpu.memory_space<semaphore_mem>>
      %79 = tpu.memref_squeeze %78 : memref<1x1x!tpu.dma_semaphore, #tpu.memory_space<semaphore_mem>> -> memref<!tpu.dma_semaphore, #tpu.memory_space<semaphore_mem>>
      tpu.enqueue_dma source(%75 : memref<128xf32, #tpu.memory_space<any>>) target(%77 : memref<128xf32, #tpu.memory_space<vmem>>) target_semaphore(%79 : memref<!tpu.dma_semaphore, #tpu.memory_space<semaphore_mem>>)
      %c1 = arith.constant 1 : index
      %c0_59 = arith.constant 0 : index
      %80 = memref.load %arg1[%c1, %c0_59] : memref<8x8xi32, #tpu.memory_space<smem>>
      %c0_i32_60 = arith.constant 0 : i32
      %81 = arith.maxsi %80, %c0_i32_60 : i32
      %c255_i32_61 = arith.constant 255 : i32
      %82 = arith.minsi %81, %c255_i32_61 : i32
      %c0_i32_62 = arith.constant 0 : i32
      %c1_i32_63 = arith.constant 1 : i32
      %c0_i32_64 = arith.constant 0 : i32
      %c1_i32_65 = arith.constant 1 : i32
      %c0_i32_66 = arith.constant 0 : i32
      %83 = tpu.memref_slice %arg2[%82, %c0_i32_66] : memref<256x128xf32, #tpu.memory_space<any>> -> memref<1x128xf32, #tpu.memory_space<any>>
      %84 = tpu.memref_squeeze %83 : memref<1x128xf32, #tpu.memory_space<any>> -> memref<128xf32, #tpu.memory_space<any>>
      %c0_i32_67 = arith.constant 0 : i32
      %85 = tpu.memref_slice %arg13[%c0_i32_62, %c1_i32_63, %c0_i32_67] : memref<2x8x128xf32, #tpu.memory_space<vmem>> -> memref<1x1x128xf32, #tpu.memory_space<vmem>>
      %86 = tpu.memref_squeeze %85 : memref<1x1x128xf32, #tpu.memory_space<vmem>> -> memref<128xf32, #tpu.memory_space<vmem>>
      %87 = tpu.memref_slice %arg14[%c0_i32_64, %c1_i32_65] : memref<2x8x!tpu.dma_semaphore, #tpu.memory_space<semaphore_mem>> -> memref<1x1x!tpu.dma_semaphore, #tpu.memory_space<semaphore_mem>>
      %88 = tpu.memref_squeeze %87 : memref<1x1x!tpu.dma_semaphore, #tpu.memory_space<semaphore_mem>> -> memref<!tpu.dma_semaphore, #tpu.memory_space<semaphore_mem>>
      tpu.enqueue_dma source(%84 : memref<128xf32, #tpu.memory_space<any>>) target(%86 : memref<128xf32, #tpu.memory_space<vmem>>) target_semaphore(%88 : memref<!tpu.dma_semaphore, #tpu.memory_space<semaphore_mem>>)
      %c2 = arith.constant 2 : index
      %c0_68 = arith.constant 0 : index
      %89 = memref.load %arg1[%c2, %c0_68] : memref<8x8xi32, #tpu.memory_space<smem>>
      %c0_i32_69 = arith.constant 0 : i32
      %90 = arith.maxsi %89, %c0_i32_69 : i32
      %c255_i32_70 = arith.constant 255 : i32
      %91 = arith.minsi %90, %c255_i32_70 : i32
      %c0_i32_71 = arith.constant 0 : i32
      %c2_i32_72 = arith.constant 2 : i32
      %c0_i32_73 = arith.constant 0 : i32
      %c2_i32_74 = arith.constant 2 : i32
      %c0_i32_75 = arith.constant 0 : i32
      %92 = tpu.memref_slice %arg2[%91, %c0_i32_75] : memref<256x128xf32, #tpu.memory_space<any>> -> memref<1x128xf32, #tpu.memory_space<any>>
      %93 = tpu.memref_squeeze %92 : memref<1x128xf32, #tpu.memory_space<any>> -> memref<128xf32, #tpu.memory_space<any>>
      %c0_i32_76 = arith.constant 0 : i32
      %94 = tpu.memref_slice %arg13[%c0_i32_71, %c2_i32_72, %c0_i32_76] : memref<2x8x128xf32, #tpu.memory_space<vmem>> -> memref<1x1x128xf32, #tpu.memory_space<vmem>>
      %95 = tpu.memref_squeeze %94 : memref<1x1x128xf32, #tpu.memory_space<vmem>> -> memref<128xf32, #tpu.memory_space<vmem>>
      %96 = tpu.memref_slice %arg14[%c0_i32_73, %c2_i32_74] : memref<2x8x!tpu.dma_semaphore, #tpu.memory_space<semaphore_mem>> -> memref<1x1x!tpu.dma_semaphore, #tpu.memory_space<semaphore_mem>>
      %97 = tpu.memref_squeeze %96 : memref<1x1x!tpu.dma_semaphore, #tpu.memory_space<semaphore_mem>> -> memref<!tpu.dma_semaphore, #tpu.memory_space<semaphore_mem>>
      tpu.enqueue_dma source(%93 : memref<128xf32, #tpu.memory_space<any>>) target(%95 : memref<128xf32, #tpu.memory_space<vmem>>) target_semaphore(%97 : memref<!tpu.dma_semaphore, #tpu.memory_space<semaphore_mem>>)
      %c3 = arith.constant 3 : index
      %c0_77 = arith.constant 0 : index
      %98 = memref.load %arg1[%c3, %c0_77] : memref<8x8xi32, #tpu.memory_space<smem>>
      %c0_i32_78 = arith.constant 0 : i32
      %99 = arith.maxsi %98, %c0_i32_78 : i32
      %c255_i32_79 = arith.constant 255 : i32
      %100 = arith.minsi %99, %c255_i32_79 : i32
      %c0_i32_80 = arith.constant 0 : i32
      %c3_i32_81 = arith.constant 3 : i32
      %c0_i32_82 = arith.constant 0 : i32
      %c3_i32_83 = arith.constant 3 : i32
      %c0_i32_84 = arith.constant 0 : i32
      %101 = tpu.memref_slice %arg2[%100, %c0_i32_84] : memref<256x128xf32, #tpu.memory_space<any>> -> memref<1x128xf32, #tpu.memory_space<any>>
      %102 = tpu.memref_squeeze %101 : memref<1x128xf32, #tpu.memory_space<any>> -> memref<128xf32, #tpu.memory_space<any>>
      %c0_i32_85 = arith.constant 0 : i32
      %103 = tpu.memref_slice %arg13[%c0_i32_80, %c3_i32_81, %c0_i32_85] : memref<2x8x128xf32, #tpu.memory_space<vmem>> -> memref<1x1x128xf32, #tpu.memory_space<vmem>>
      %104 = tpu.memref_squeeze %103 : memref<1x1x128xf32, #tpu.memory_space<vmem>> -> memref<128xf32, #tpu.memory_space<vmem>>
      %105 = tpu.memref_slice %arg14[%c0_i32_82, %c3_i32_83] : memref<2x8x!tpu.dma_semaphore, #tpu.memory_space<semaphore_mem>> -> memref<1x1x!tpu.dma_semaphore, #tpu.memory_space<semaphore_mem>>
      %106 = tpu.memref_squeeze %105 : memref<1x1x!tpu.dma_semaphore, #tpu.memory_space<semaphore_mem>> -> memref<!tpu.dma_semaphore, #tpu.memory_space<semaphore_mem>>
      tpu.enqueue_dma source(%102 : memref<128xf32, #tpu.memory_space<any>>) target(%104 : memref<128xf32, #tpu.memory_space<vmem>>) target_semaphore(%106 : memref<!tpu.dma_semaphore, #tpu.memory_space<semaphore_mem>>)
      %c4 = arith.constant 4 : index
      %c0_86 = arith.constant 0 : index
      %107 = memref.load %arg1[%c4, %c0_86] : memref<8x8xi32, #tpu.memory_space<smem>>
      %c0_i32_87 = arith.constant 0 : i32
      %108 = arith.maxsi %107, %c0_i32_87 : i32
      %c255_i32_88 = arith.constant 255 : i32
      %109 = arith.minsi %108, %c255_i32_88 : i32
      %c0_i32_89 = arith.constant 0 : i32
      %c4_i32_90 = arith.constant 4 : i32
      %c0_i32_91 = arith.constant 0 : i32
      %c4_i32_92 = arith.constant 4 : i32
      %c0_i32_93 = arith.constant 0 : i32
      %110 = tpu.memref_slice %arg2[%109, %c0_i32_93] : memref<256x128xf32, #tpu.memory_space<any>> -> memref<1x128xf32, #tpu.memory_space<any>>
      %111 = tpu.memref_squeeze %110 : memref<1x128xf32, #tpu.memory_space<any>> -> memref<128xf32, #tpu.memory_space<any>>
      %c0_i32_94 = arith.constant 0 : i32
      %112 = tpu.memref_slice %arg13[%c0_i32_89, %c4_i32_90, %c0_i32_94] : memref<2x8x128xf32, #tpu.memory_space<vmem>> -> memref<1x1x128xf32, #tpu.memory_space<vmem>>
      %113 = tpu.memref_squeeze %112 : memref<1x1x128xf32, #tpu.memory_space<vmem>> -> memref<128xf32, #tpu.memory_space<vmem>>
      %114 = tpu.memref_slice %arg14[%c0_i32_91, %c4_i32_92] : memref<2x8x!tpu.dma_semaphore, #tpu.memory_space<semaphore_mem>> -> memref<1x1x!tpu.dma_semaphore, #tpu.memory_space<semaphore_mem>>
      %115 = tpu.memref_squeeze %114 : memref<1x1x!tpu.dma_semaphore, #tpu.memory_space<semaphore_mem>> -> memref<!tpu.dma_semaphore, #tpu.memory_space<semaphore_mem>>
      tpu.enqueue_dma source(%111 : memref<128xf32, #tpu.memory_space<any>>) target(%113 : memref<128xf32, #tpu.memory_space<vmem>>) target_semaphore(%115 : memref<!tpu.dma_semaphore, #tpu.memory_space<semaphore_mem>>)
      %c5 = arith.constant 5 : index
      %c0_95 = arith.constant 0 : index
      %116 = memref.load %arg1[%c5, %c0_95] : memref<8x8xi32, #tpu.memory_space<smem>>
      %c0_i32_96 = arith.constant 0 : i32
      %117 = arith.maxsi %116, %c0_i32_96 : i32
      %c255_i32_97 = arith.constant 255 : i32
      %118 = arith.minsi %117, %c255_i32_97 : i32
      %c0_i32_98 = arith.constant 0 : i32
      %c5_i32_99 = arith.constant 5 : i32
      %c0_i32_100 = arith.constant 0 : i32
      %c5_i32_101 = arith.constant 5 : i32
      %c0_i32_102 = arith.constant 0 : i32
      %119 = tpu.memref_slice %arg2[%118, %c0_i32_102] : memref<256x128xf32, #tpu.memory_space<any>> -> memref<1x128xf32, #tpu.memory_space<any>>
      %120 = tpu.memref_squeeze %119 : memref<1x128xf32, #tpu.memory_space<any>> -> memref<128xf32, #tpu.memory_space<any>>
      %c0_i32_103 = arith.constant 0 : i32
      %121 = tpu.memref_slice %arg13[%c0_i32_98, %c5_i32_99, %c0_i32_103] : memref<2x8x128xf32, #tpu.memory_space<vmem>> -> memref<1x1x128xf32, #tpu.memory_space<vmem>>
      %122 = tpu.memref_squeeze %121 : memref<1x1x128xf32, #tpu.memory_space<vmem>> -> memref<128xf32, #tpu.memory_space<vmem>>
      %123 = tpu.memref_slice %arg14[%c0_i32_100, %c5_i32_101] : memref<2x8x!tpu.dma_semaphore, #tpu.memory_space<semaphore_mem>> -> memref<1x1x!tpu.dma_semaphore, #tpu.memory_space<semaphore_mem>>
      %124 = tpu.memref_squeeze %123 : memref<1x1x!tpu.dma_semaphore, #tpu.memory_space<semaphore_mem>> -> memref<!tpu.dma_semaphore, #tpu.memory_space<semaphore_mem>>
      tpu.enqueue_dma source(%120 : memref<128xf32, #tpu.memory_space<any>>) target(%122 : memref<128xf32, #tpu.memory_space<vmem>>) target_semaphore(%124 : memref<!tpu.dma_semaphore, #tpu.memory_space<semaphore_mem>>)
      %c6 = arith.constant 6 : index
      %c0_104 = arith.constant 0 : index
      %125 = memref.load %arg1[%c6, %c0_104] : memref<8x8xi32, #tpu.memory_space<smem>>
      %c0_i32_105 = arith.constant 0 : i32
      %126 = arith.maxsi %125, %c0_i32_105 : i32
      %c255_i32_106 = arith.constant 255 : i32
      %127 = arith.minsi %126, %c255_i32_106 : i32
      %c0_i32_107 = arith.constant 0 : i32
      %c6_i32_108 = arith.constant 6 : i32
      %c0_i32_109 = arith.constant 0 : i32
      %c6_i32_110 = arith.constant 6 : i32
      %c0_i32_111 = arith.constant 0 : i32
      %128 = tpu.memref_slice %arg2[%127, %c0_i32_111] : memref<256x128xf32, #tpu.memory_space<any>> -> memref<1x128xf32, #tpu.memory_space<any>>
      %129 = tpu.memref_squeeze %128 : memref<1x128xf32, #tpu.memory_space<any>> -> memref<128xf32, #tpu.memory_space<any>>
      %c0_i32_112 = arith.constant 0 : i32
      %130 = tpu.memref_slice %arg13[%c0_i32_107, %c6_i32_108, %c0_i32_112] : memref<2x8x128xf32, #tpu.memory_space<vmem>> -> memref<1x1x128xf32, #tpu.memory_space<vmem>>
      %131 = tpu.memref_squeeze %130 : memref<1x1x128xf32, #tpu.memory_space<vmem>> -> memref<128xf32, #tpu.memory_space<vmem>>
      %132 = tpu.memref_slice %arg14[%c0_i32_109, %c6_i32_110] : memref<2x8x!tpu.dma_semaphore, #tpu.memory_space<semaphore_mem>> -> memref<1x1x!tpu.dma_semaphore, #tpu.memory_space<semaphore_mem>>
      %133 = tpu.memref_squeeze %132 : memref<1x1x!tpu.dma_semaphore, #tpu.memory_space<semaphore_mem>> -> memref<!tpu.dma_semaphore, #tpu.memory_space<semaphore_mem>>
      tpu.enqueue_dma source(%129 : memref<128xf32, #tpu.memory_space<any>>) target(%131 : memref<128xf32, #tpu.memory_space<vmem>>) target_semaphore(%133 : memref<!tpu.dma_semaphore, #tpu.memory_space<semaphore_mem>>)
      %c7 = arith.constant 7 : index
      %c0_113 = arith.constant 0 : index
      %134 = memref.load %arg1[%c7, %c0_113] : memref<8x8xi32, #tpu.memory_space<smem>>
      %c0_i32_114 = arith.constant 0 : i32
      %135 = arith.maxsi %134, %c0_i32_114 : i32
      %c255_i32_115 = arith.constant 255 : i32
      %136 = arith.minsi %135, %c255_i32_115 : i32
      %c0_i32_116 = arith.constant 0 : i32
      %c7_i32_117 = arith.constant 7 : i32
      %c0_i32_118 = arith.constant 0 : i32
      %c7_i32_119 = arith.constant 7 : i32
      %c0_i32_120 = arith.constant 0 : i32
      %137 = tpu.memref_slice %arg2[%136, %c0_i32_120] : memref<256x128xf32, #tpu.memory_space<any>> -> memref<1x128xf32, #tpu.memory_space<any>>
      %138 = tpu.memref_squeeze %137 : memref<1x128xf32, #tpu.memory_space<any>> -> memref<128xf32, #tpu.memory_space<any>>
      %c0_i32_121 = arith.constant 0 : i32
      %139 = tpu.memref_slice %arg13[%c0_i32_116, %c7_i32_117, %c0_i32_121] : memref<2x8x128xf32, #tpu.memory_space<vmem>> -> memref<1x1x128xf32, #tpu.memory_space<vmem>>
      %140 = tpu.memref_squeeze %139 : memref<1x1x128xf32, #tpu.memory_space<vmem>> -> memref<128xf32, #tpu.memory_space<vmem>>
      %141 = tpu.memref_slice %arg14[%c0_i32_118, %c7_i32_119] : memref<2x8x!tpu.dma_semaphore, #tpu.memory_space<semaphore_mem>> -> memref<1x1x!tpu.dma_semaphore, #tpu.memory_space<semaphore_mem>>
      %142 = tpu.memref_squeeze %141 : memref<1x1x!tpu.dma_semaphore, #tpu.memory_space<semaphore_mem>> -> memref<!tpu.dma_semaphore, #tpu.memory_space<semaphore_mem>>
      tpu.enqueue_dma source(%138 : memref<128xf32, #tpu.memory_space<any>>) target(%140 : memref<128xf32, #tpu.memory_space<vmem>>) target_semaphore(%142 : memref<!tpu.dma_semaphore, #tpu.memory_space<semaphore_mem>>)
    } else {
    }
    %c1_i32 = arith.constant 1 : i32
    %4 = arith.addi %arg0, %c1_i32 : i32
    %c8_i32 = arith.constant 8 : i32
    %5 = arith.cmpi slt, %4, %c8_i32 : i32
    %6 = arith.extui %5 : i1 to i32
    %c0_i32_1 = arith.constant 0 : i32
    %7 = arith.cmpi ne, %6, %c0_i32_1 : i32
    scf.if %7 {
      %c1_i32_47 = arith.constant 1 : i32
      %69 = arith.addi %arg0, %c1_i32_47 : i32
      %c1_i32_48 = arith.constant 1 : i32
      %70 = arith.subi %c1_i32_48, %0 : i32
      %c0_49 = arith.constant 0 : index
      %71 = arith.index_cast %69 : i32 to index
      %72 = memref.load %arg1[%c0_49, %71] : memref<8x8xi32, #tpu.memory_space<smem>>
      %c0_i32_50 = arith.constant 0 : i32
      %73 = arith.maxsi %72, %c0_i32_50 : i32
      %c255_i32 = arith.constant 255 : i32
      %74 = arith.minsi %73, %c255_i32 : i32
      %c0_i32_51 = arith.constant 0 : i32
      %c0_i32_52 = arith.constant 0 : i32
      %c0_i32_53 = arith.constant 0 : i32
      %75 = tpu.memref_slice %arg2[%74, %c0_i32_53] : memref<256x128xf32, #tpu.memory_space<any>> -> memref<1x128xf32, #tpu.memory_space<any>>
      %76 = tpu.memref_squeeze %75 : memref<1x128xf32, #tpu.memory_space<any>> -> memref<128xf32, #tpu.memory_space<any>>
      %c0_i32_54 = arith.constant 0 : i32
      %77 = tpu.memref_slice %arg13[%70, %c0_i32_51, %c0_i32_54] : memref<2x8x128xf32, #tpu.memory_space<vmem>> -> memref<1x1x128xf32, #tpu.memory_space<vmem>>
      %78 = tpu.memref_squeeze %77 : memref<1x1x128xf32, #tpu.memory_space<vmem>> -> memref<128xf32, #tpu.memory_space<vmem>>
      %79 = tpu.memref_slice %arg14[%70, %c0_i32_52] : memref<2x8x!tpu.dma_semaphore, #tpu.memory_space<semaphore_mem>> -> memref<1x1x!tpu.dma_semaphore, #tpu.memory_space<semaphore_mem>>
      %80 = tpu.memref_squeeze %79 : memref<1x1x!tpu.dma_semaphore, #tpu.memory_space<semaphore_mem>> -> memref<!tpu.dma_semaphore, #tpu.memory_space<semaphore_mem>>
      tpu.enqueue_dma source(%76 : memref<128xf32, #tpu.memory_space<any>>) target(%78 : memref<128xf32, #tpu.memory_space<vmem>>) target_semaphore(%80 : memref<!tpu.dma_semaphore, #tpu.memory_space<semaphore_mem>>)
      %c1 = arith.constant 1 : index
      %81 = arith.index_cast %69 : i32 to index
      %82 = memref.load %arg1[%c1, %81] : memref<8x8xi32, #tpu.memory_space<smem>>
      %c0_i32_55 = arith.constant 0 : i32
      %83 = arith.maxsi %82, %c0_i32_55 : i32
      %c255_i32_56 = arith.constant 255 : i32
      %84 = arith.minsi %83, %c255_i32_56 : i32
      %c1_i32_57 = arith.constant 1 : i32
      %c1_i32_58 = arith.constant 1 : i32
      %c0_i32_59 = arith.constant 0 : i32
      %85 = tpu.memref_slice %arg2[%84, %c0_i32_59] : memref<256x128xf32, #tpu.memory_space<any>> -> memref<1x128xf32, #tpu.memory_space<any>>
      %86 = tpu.memref_squeeze %85 : memref<1x128xf32, #tpu.memory_space<any>> -> memref<128xf32, #tpu.memory_space<any>>
      %c0_i32_60 = arith.constant 0 : i32
      %87 = tpu.memref_slice %arg13[%70, %c1_i32_57, %c0_i32_60] : memref<2x8x128xf32, #tpu.memory_space<vmem>> -> memref<1x1x128xf32, #tpu.memory_space<vmem>>
      %88 = tpu.memref_squeeze %87 : memref<1x1x128xf32, #tpu.memory_space<vmem>> -> memref<128xf32, #tpu.memory_space<vmem>>
      %89 = tpu.memref_slice %arg14[%70, %c1_i32_58] : memref<2x8x!tpu.dma_semaphore, #tpu.memory_space<semaphore_mem>> -> memref<1x1x!tpu.dma_semaphore, #tpu.memory_space<semaphore_mem>>
      %90 = tpu.memref_squeeze %89 : memref<1x1x!tpu.dma_semaphore, #tpu.memory_space<semaphore_mem>> -> memref<!tpu.dma_semaphore, #tpu.memory_space<semaphore_mem>>
      tpu.enqueue_dma source(%86 : memref<128xf32, #tpu.memory_space<any>>) target(%88 : memref<128xf32, #tpu.memory_space<vmem>>) target_semaphore(%90 : memref<!tpu.dma_semaphore, #tpu.memory_space<semaphore_mem>>)
      %c2 = arith.constant 2 : index
      %91 = arith.index_cast %69 : i32 to index
      %92 = memref.load %arg1[%c2, %91] : memref<8x8xi32, #tpu.memory_space<smem>>
      %c0_i32_61 = arith.constant 0 : i32
      %93 = arith.maxsi %92, %c0_i32_61 : i32
      %c255_i32_62 = arith.constant 255 : i32
      %94 = arith.minsi %93, %c255_i32_62 : i32
      %c2_i32_63 = arith.constant 2 : i32
      %c2_i32_64 = arith.constant 2 : i32
      %c0_i32_65 = arith.constant 0 : i32
      %95 = tpu.memref_slice %arg2[%94, %c0_i32_65] : memref<256x128xf32, #tpu.memory_space<any>> -> memref<1x128xf32, #tpu.memory_space<any>>
      %96 = tpu.memref_squeeze %95 : memref<1x128xf32, #tpu.memory_space<any>> -> memref<128xf32, #tpu.memory_space<any>>
      %c0_i32_66 = arith.constant 0 : i32
      %97 = tpu.memref_slice %arg13[%70, %c2_i32_63, %c0_i32_66] : memref<2x8x128xf32, #tpu.memory_space<vmem>> -> memref<1x1x128xf32, #tpu.memory_space<vmem>>
      %98 = tpu.memref_squeeze %97 : memref<1x1x128xf32, #tpu.memory_space<vmem>> -> memref<128xf32, #tpu.memory_space<vmem>>
      %99 = tpu.memref_slice %arg14[%70, %c2_i32_64] : memref<2x8x!tpu.dma_semaphore, #tpu.memory_space<semaphore_mem>> -> memref<1x1x!tpu.dma_semaphore, #tpu.memory_space<semaphore_mem>>
      %100 = tpu.memref_squeeze %99 : memref<1x1x!tpu.dma_semaphore, #tpu.memory_space<semaphore_mem>> -> memref<!tpu.dma_semaphore, #tpu.memory_space<semaphore_mem>>
      tpu.enqueue_dma source(%96 : memref<128xf32, #tpu.memory_space<any>>) target(%98 : memref<128xf32, #tpu.memory_space<vmem>>) target_semaphore(%100 : memref<!tpu.dma_semaphore, #tpu.memory_space<semaphore_mem>>)
      %c3 = arith.constant 3 : index
      %101 = arith.index_cast %69 : i32 to index
      %102 = memref.load %arg1[%c3, %101] : memref<8x8xi32, #tpu.memory_space<smem>>
      %c0_i32_67 = arith.constant 0 : i32
      %103 = arith.maxsi %102, %c0_i32_67 : i32
      %c255_i32_68 = arith.constant 255 : i32
      %104 = arith.minsi %103, %c255_i32_68 : i32
      %c3_i32_69 = arith.constant 3 : i32
      %c3_i32_70 = arith.constant 3 : i32
      %c0_i32_71 = arith.constant 0 : i32
      %105 = tpu.memref_slice %arg2[%104, %c0_i32_71] : memref<256x128xf32, #tpu.memory_space<any>> -> memref<1x128xf32, #tpu.memory_space<any>>
      %106 = tpu.memref_squeeze %105 : memref<1x128xf32, #tpu.memory_space<any>> -> memref<128xf32, #tpu.memory_space<any>>
      %c0_i32_72 = arith.constant 0 : i32
      %107 = tpu.memref_slice %arg13[%70, %c3_i32_69, %c0_i32_72] : memref<2x8x128xf32, #tpu.memory_space<vmem>> -> memref<1x1x128xf32, #tpu.memory_space<vmem>>
      %108 = tpu.memref_squeeze %107 : memref<1x1x128xf32, #tpu.memory_space<vmem>> -> memref<128xf32, #tpu.memory_space<vmem>>
      %109 = tpu.memref_slice %arg14[%70, %c3_i32_70] : memref<2x8x!tpu.dma_semaphore, #tpu.memory_space<semaphore_mem>> -> memref<1x1x!tpu.dma_semaphore, #tpu.memory_space<semaphore_mem>>
      %110 = tpu.memref_squeeze %109 : memref<1x1x!tpu.dma_semaphore, #tpu.memory_space<semaphore_mem>> -> memref<!tpu.dma_semaphore, #tpu.memory_space<semaphore_mem>>
      tpu.enqueue_dma source(%106 : memref<128xf32, #tpu.memory_space<any>>) target(%108 : memref<128xf32, #tpu.memory_space<vmem>>) target_semaphore(%110 : memref<!tpu.dma_semaphore, #tpu.memory_space<semaphore_mem>>)
      %c4 = arith.constant 4 : index
      %111 = arith.index_cast %69 : i32 to index
      %112 = memref.load %arg1[%c4, %111] : memref<8x8xi32, #tpu.memory_space<smem>>
      %c0_i32_73 = arith.constant 0 : i32
      %113 = arith.maxsi %112, %c0_i32_73 : i32
      %c255_i32_74 = arith.constant 255 : i32
      %114 = arith.minsi %113, %c255_i32_74 : i32
      %c4_i32_75 = arith.constant 4 : i32
      %c4_i32_76 = arith.constant 4 : i32
      %c0_i32_77 = arith.constant 0 : i32
      %115 = tpu.memref_slice %arg2[%114, %c0_i32_77] : memref<256x128xf32, #tpu.memory_space<any>> -> memref<1x128xf32, #tpu.memory_space<any>>
      %116 = tpu.memref_squeeze %115 : memref<1x128xf32, #tpu.memory_space<any>> -> memref<128xf32, #tpu.memory_space<any>>
      %c0_i32_78 = arith.constant 0 : i32
      %117 = tpu.memref_slice %arg13[%70, %c4_i32_75, %c0_i32_78] : memref<2x8x128xf32, #tpu.memory_space<vmem>> -> memref<1x1x128xf32, #tpu.memory_space<vmem>>
      %118 = tpu.memref_squeeze %117 : memref<1x1x128xf32, #tpu.memory_space<vmem>> -> memref<128xf32, #tpu.memory_space<vmem>>
      %119 = tpu.memref_slice %arg14[%70, %c4_i32_76] : memref<2x8x!tpu.dma_semaphore, #tpu.memory_space<semaphore_mem>> -> memref<1x1x!tpu.dma_semaphore, #tpu.memory_space<semaphore_mem>>
      %120 = tpu.memref_squeeze %119 : memref<1x1x!tpu.dma_semaphore, #tpu.memory_space<semaphore_mem>> -> memref<!tpu.dma_semaphore, #tpu.memory_space<semaphore_mem>>
      tpu.enqueue_dma source(%116 : memref<128xf32, #tpu.memory_space<any>>) target(%118 : memref<128xf32, #tpu.memory_space<vmem>>) target_semaphore(%120 : memref<!tpu.dma_semaphore, #tpu.memory_space<semaphore_mem>>)
      %c5 = arith.constant 5 : index
      %121 = arith.index_cast %69 : i32 to index
      %122 = memref.load %arg1[%c5, %121] : memref<8x8xi32, #tpu.memory_space<smem>>
      %c0_i32_79 = arith.constant 0 : i32
      %123 = arith.maxsi %122, %c0_i32_79 : i32
      %c255_i32_80 = arith.constant 255 : i32
      %124 = arith.minsi %123, %c255_i32_80 : i32
      %c5_i32_81 = arith.constant 5 : i32
      %c5_i32_82 = arith.constant 5 : i32
      %c0_i32_83 = arith.constant 0 : i32
      %125 = tpu.memref_slice %arg2[%124, %c0_i32_83] : memref<256x128xf32, #tpu.memory_space<any>> -> memref<1x128xf32, #tpu.memory_space<any>>
      %126 = tpu.memref_squeeze %125 : memref<1x128xf32, #tpu.memory_space<any>> -> memref<128xf32, #tpu.memory_space<any>>
      %c0_i32_84 = arith.constant 0 : i32
      %127 = tpu.memref_slice %arg13[%70, %c5_i32_81, %c0_i32_84] : memref<2x8x128xf32, #tpu.memory_space<vmem>> -> memref<1x1x128xf32, #tpu.memory_space<vmem>>
      %128 = tpu.memref_squeeze %127 : memref<1x1x128xf32, #tpu.memory_space<vmem>> -> memref<128xf32, #tpu.memory_space<vmem>>
      %129 = tpu.memref_slice %arg14[%70, %c5_i32_82] : memref<2x8x!tpu.dma_semaphore, #tpu.memory_space<semaphore_mem>> -> memref<1x1x!tpu.dma_semaphore, #tpu.memory_space<semaphore_mem>>
      %130 = tpu.memref_squeeze %129 : memref<1x1x!tpu.dma_semaphore, #tpu.memory_space<semaphore_mem>> -> memref<!tpu.dma_semaphore, #tpu.memory_space<semaphore_mem>>
      tpu.enqueue_dma source(%126 : memref<128xf32, #tpu.memory_space<any>>) target(%128 : memref<128xf32, #tpu.memory_space<vmem>>) target_semaphore(%130 : memref<!tpu.dma_semaphore, #tpu.memory_space<semaphore_mem>>)
      %c6 = arith.constant 6 : index
      %131 = arith.index_cast %69 : i32 to index
      %132 = memref.load %arg1[%c6, %131] : memref<8x8xi32, #tpu.memory_space<smem>>
      %c0_i32_85 = arith.constant 0 : i32
      %133 = arith.maxsi %132, %c0_i32_85 : i32
      %c255_i32_86 = arith.constant 255 : i32
      %134 = arith.minsi %133, %c255_i32_86 : i32
      %c6_i32_87 = arith.constant 6 : i32
      %c6_i32_88 = arith.constant 6 : i32
      %c0_i32_89 = arith.constant 0 : i32
      %135 = tpu.memref_slice %arg2[%134, %c0_i32_89] : memref<256x128xf32, #tpu.memory_space<any>> -> memref<1x128xf32, #tpu.memory_space<any>>
      %136 = tpu.memref_squeeze %135 : memref<1x128xf32, #tpu.memory_space<any>> -> memref<128xf32, #tpu.memory_space<any>>
      %c0_i32_90 = arith.constant 0 : i32
      %137 = tpu.memref_slice %arg13[%70, %c6_i32_87, %c0_i32_90] : memref<2x8x128xf32, #tpu.memory_space<vmem>> -> memref<1x1x128xf32, #tpu.memory_space<vmem>>
      %138 = tpu.memref_squeeze %137 : memref<1x1x128xf32, #tpu.memory_space<vmem>> -> memref<128xf32, #tpu.memory_space<vmem>>
      %139 = tpu.memref_slice %arg14[%70, %c6_i32_88] : memref<2x8x!tpu.dma_semaphore, #tpu.memory_space<semaphore_mem>> -> memref<1x1x!tpu.dma_semaphore, #tpu.memory_space<semaphore_mem>>
      %140 = tpu.memref_squeeze %139 : memref<1x1x!tpu.dma_semaphore, #tpu.memory_space<semaphore_mem>> -> memref<!tpu.dma_semaphore, #tpu.memory_space<semaphore_mem>>
      tpu.enqueue_dma source(%136 : memref<128xf32, #tpu.memory_space<any>>) target(%138 : memref<128xf32, #tpu.memory_space<vmem>>) target_semaphore(%140 : memref<!tpu.dma_semaphore, #tpu.memory_space<semaphore_mem>>)
      %c7 = arith.constant 7 : index
      %141 = arith.index_cast %69 : i32 to index
      %142 = memref.load %arg1[%c7, %141] : memref<8x8xi32, #tpu.memory_space<smem>>
      %c0_i32_91 = arith.constant 0 : i32
      %143 = arith.maxsi %142, %c0_i32_91 : i32
      %c255_i32_92 = arith.constant 255 : i32
      %144 = arith.minsi %143, %c255_i32_92 : i32
      %c7_i32_93 = arith.constant 7 : i32
      %c7_i32_94 = arith.constant 7 : i32
      %c0_i32_95 = arith.constant 0 : i32
      %145 = tpu.memref_slice %arg2[%144, %c0_i32_95] : memref<256x128xf32, #tpu.memory_space<any>> -> memref<1x128xf32, #tpu.memory_space<any>>
      %146 = tpu.memref_squeeze %145 : memref<1x128xf32, #tpu.memory_space<any>> -> memref<128xf32, #tpu.memory_space<any>>
      %c0_i32_96 = arith.constant 0 : i32
      %147 = tpu.memref_slice %arg13[%70, %c7_i32_93, %c0_i32_96] : memref<2x8x128xf32, #tpu.memory_space<vmem>> -> memref<1x1x128xf32, #tpu.memory_space<vmem>>
      %148 = tpu.memref_squeeze %147 : memref<1x1x128xf32, #tpu.memory_space<vmem>> -> memref<128xf32, #tpu.memory_space<vmem>>
      %149 = tpu.memref_slice %arg14[%70, %c7_i32_94] : memref<2x8x!tpu.dma_semaphore, #tpu.memory_space<semaphore_mem>> -> memref<1x1x!tpu.dma_semaphore, #tpu.memory_space<semaphore_mem>>
      %150 = tpu.memref_squeeze %149 : memref<1x1x!tpu.dma_semaphore, #tpu.memory_space<semaphore_mem>> -> memref<!tpu.dma_semaphore, #tpu.memory_space<semaphore_mem>>
      tpu.enqueue_dma source(%146 : memref<128xf32, #tpu.memory_space<any>>) target(%148 : memref<128xf32, #tpu.memory_space<vmem>>) target_semaphore(%150 : memref<!tpu.dma_semaphore, #tpu.memory_space<semaphore_mem>>)
    } else {
    }
    %c0_i32_2 = arith.constant 0 : i32
    %c0_i32_3 = arith.constant 0 : i32
    %c0_i32_4 = arith.constant 0 : i32
    %c0_i32_5 = arith.constant 0 : i32
    %8 = tpu.memref_slice %arg2[%c0_i32_2, %c0_i32_5] : memref<256x128xf32, #tpu.memory_space<any>> -> memref<1x128xf32, #tpu.memory_space<any>>
    %9 = tpu.memref_squeeze %8 : memref<1x128xf32, #tpu.memory_space<any>> -> memref<128xf32, #tpu.memory_space<any>>
    %c0_i32_6 = arith.constant 0 : i32
    %10 = tpu.memref_slice %arg13[%0, %c0_i32_3, %c0_i32_6] : memref<2x8x128xf32, #tpu.memory_space<vmem>> -> memref<1x1x128xf32, #tpu.memory_space<vmem>>
    %11 = tpu.memref_squeeze %10 : memref<1x1x128xf32, #tpu.memory_space<vmem>> -> memref<128xf32, #tpu.memory_space<vmem>>
    %12 = tpu.memref_slice %arg14[%0, %c0_i32_4] : memref<2x8x!tpu.dma_semaphore, #tpu.memory_space<semaphore_mem>> -> memref<1x1x!tpu.dma_semaphore, #tpu.memory_space<semaphore_mem>>
    %13 = tpu.memref_squeeze %12 : memref<1x1x!tpu.dma_semaphore, #tpu.memory_space<semaphore_mem>> -> memref<!tpu.dma_semaphore, #tpu.memory_space<semaphore_mem>>
    tpu.wait_dma2 semaphore(%13 : memref<!tpu.dma_semaphore, #tpu.memory_space<semaphore_mem>>) src(%9 : memref<128xf32, #tpu.memory_space<any>>) dst(%11 : memref<128xf32, #tpu.memory_space<vmem>>)
    %c0_i32_7 = arith.constant 0 : i32
    %c1_i32_8 = arith.constant 1 : i32
    %c1_i32_9 = arith.constant 1 : i32
    %c0_i32_10 = arith.constant 0 : i32
    %14 = tpu.memref_slice %arg2[%c0_i32_7, %c0_i32_10] : memref<256x128xf32, #tpu.memory_space<any>> -> memref<1x128xf32, #tpu.memory_space<any>>
    %15 = tpu.memref_squeeze %14 : memref<1x128xf32, #tpu.memory_space<any>> -> memref<128xf32, #tpu.memory_space<any>>
    %c0_i32_11 = arith.constant 0 : i32
    %16 = tpu.memref_slice %arg13[%0, %c1_i32_8, %c0_i32_11] : memref<2x8x128xf32, #tpu.memory_space<vmem>> -> memref<1x1x128xf32, #tpu.memory_space<vmem>>
    %17 = tpu.memref_squeeze %16 : memref<1x1x128xf32, #tpu.memory_space<vmem>> -> memref<128xf32, #tpu.memory_space<vmem>>
    %18 = tpu.memref_slice %arg14[%0, %c1_i32_9] : memref<2x8x!tpu.dma_semaphore, #tpu.memory_space<semaphore_mem>> -> memref<1x1x!tpu.dma_semaphore, #tpu.memory_space<semaphore_mem>>
    %19 = tpu.memref_squeeze %18 : memref<1x1x!tpu.dma_semaphore, #tpu.memory_space<semaphore_mem>> -> memref<!tpu.dma_semaphore, #tpu.memory_space<semaphore_mem>>
    tpu.wait_dma2 semaphore(%19 : memref<!tpu.dma_semaphore, #tpu.memory_space<semaphore_mem>>) src(%15 : memref<128xf32, #tpu.memory_space<any>>) dst(%17 : memref<128xf32, #tpu.memory_space<vmem>>)
    %c0_i32_12 = arith.constant 0 : i32
    %c2_i32_13 = arith.constant 2 : i32
    %c2_i32_14 = arith.constant 2 : i32
    %c0_i32_15 = arith.constant 0 : i32
    %20 = tpu.memref_slice %arg2[%c0_i32_12, %c0_i32_15] : memref<256x128xf32, #tpu.memory_space<any>> -> memref<1x128xf32, #tpu.memory_space<any>>
    %21 = tpu.memref_squeeze %20 : memref<1x128xf32, #tpu.memory_space<any>> -> memref<128xf32, #tpu.memory_space<any>>
    %c0_i32_16 = arith.constant 0 : i32
    %22 = tpu.memref_slice %arg13[%0, %c2_i32_13, %c0_i32_16] : memref<2x8x128xf32, #tpu.memory_space<vmem>> -> memref<1x1x128xf32, #tpu.memory_space<vmem>>
    %23 = tpu.memref_squeeze %22 : memref<1x1x128xf32, #tpu.memory_space<vmem>> -> memref<128xf32, #tpu.memory_space<vmem>>
    %24 = tpu.memref_slice %arg14[%0, %c2_i32_14] : memref<2x8x!tpu.dma_semaphore, #tpu.memory_space<semaphore_mem>> -> memref<1x1x!tpu.dma_semaphore, #tpu.memory_space<semaphore_mem>>
    %25 = tpu.memref_squeeze %24 : memref<1x1x!tpu.dma_semaphore, #tpu.memory_space<semaphore_mem>> -> memref<!tpu.dma_semaphore, #tpu.memory_space<semaphore_mem>>
    tpu.wait_dma2 semaphore(%25 : memref<!tpu.dma_semaphore, #tpu.memory_space<semaphore_mem>>) src(%21 : memref<128xf32, #tpu.memory_space<any>>) dst(%23 : memref<128xf32, #tpu.memory_space<vmem>>)
    %c0_i32_17 = arith.constant 0 : i32
    %c3_i32 = arith.constant 3 : i32
    %c3_i32_18 = arith.constant 3 : i32
    %c0_i32_19 = arith.constant 0 : i32
    %26 = tpu.memref_slice %arg2[%c0_i32_17, %c0_i32_19] : memref<256x128xf32, #tpu.memory_space<any>> -> memref<1x128xf32, #tpu.memory_space<any>>
    %27 = tpu.memref_squeeze %26 : memref<1x128xf32, #tpu.memory_space<any>> -> memref<128xf32, #tpu.memory_space<any>>
    %c0_i32_20 = arith.constant 0 : i32
    %28 = tpu.memref_slice %arg13[%0, %c3_i32, %c0_i32_20] : memref<2x8x128xf32, #tpu.memory_space<vmem>> -> memref<1x1x128xf32, #tpu.memory_space<vmem>>
    %29 = tpu.memref_squeeze %28 : memref<1x1x128xf32, #tpu.memory_space<vmem>> -> memref<128xf32, #tpu.memory_space<vmem>>
    %30 = tpu.memref_slice %arg14[%0, %c3_i32_18] : memref<2x8x!tpu.dma_semaphore, #tpu.memory_space<semaphore_mem>> -> memref<1x1x!tpu.dma_semaphore, #tpu.memory_space<semaphore_mem>>
    %31 = tpu.memref_squeeze %30 : memref<1x1x!tpu.dma_semaphore, #tpu.memory_space<semaphore_mem>> -> memref<!tpu.dma_semaphore, #tpu.memory_space<semaphore_mem>>
    tpu.wait_dma2 semaphore(%31 : memref<!tpu.dma_semaphore, #tpu.memory_space<semaphore_mem>>) src(%27 : memref<128xf32, #tpu.memory_space<any>>) dst(%29 : memref<128xf32, #tpu.memory_space<vmem>>)
    %c0_i32_21 = arith.constant 0 : i32
    %c4_i32 = arith.constant 4 : i32
    %c4_i32_22 = arith.constant 4 : i32
    %c0_i32_23 = arith.constant 0 : i32
    %32 = tpu.memref_slice %arg2[%c0_i32_21, %c0_i32_23] : memref<256x128xf32, #tpu.memory_space<any>> -> memref<1x128xf32, #tpu.memory_space<any>>
    %33 = tpu.memref_squeeze %32 : memref<1x128xf32, #tpu.memory_space<any>> -> memref<128xf32, #tpu.memory_space<any>>
    %c0_i32_24 = arith.constant 0 : i32
    %34 = tpu.memref_slice %arg13[%0, %c4_i32, %c0_i32_24] : memref<2x8x128xf32, #tpu.memory_space<vmem>> -> memref<1x1x128xf32, #tpu.memory_space<vmem>>
    %35 = tpu.memref_squeeze %34 : memref<1x1x128xf32, #tpu.memory_space<vmem>> -> memref<128xf32, #tpu.memory_space<vmem>>
    %36 = tpu.memref_slice %arg14[%0, %c4_i32_22] : memref<2x8x!tpu.dma_semaphore, #tpu.memory_space<semaphore_mem>> -> memref<1x1x!tpu.dma_semaphore, #tpu.memory_space<semaphore_mem>>
    %37 = tpu.memref_squeeze %36 : memref<1x1x!tpu.dma_semaphore, #tpu.memory_space<semaphore_mem>> -> memref<!tpu.dma_semaphore, #tpu.memory_space<semaphore_mem>>
    tpu.wait_dma2 semaphore(%37 : memref<!tpu.dma_semaphore, #tpu.memory_space<semaphore_mem>>) src(%33 : memref<128xf32, #tpu.memory_space<any>>) dst(%35 : memref<128xf32, #tpu.memory_space<vmem>>)
    %c0_i32_25 = arith.constant 0 : i32
    %c5_i32 = arith.constant 5 : i32
    %c5_i32_26 = arith.constant 5 : i32
    %c0_i32_27 = arith.constant 0 : i32
    %38 = tpu.memref_slice %arg2[%c0_i32_25, %c0_i32_27] : memref<256x128xf32, #tpu.memory_space<any>> -> memref<1x128xf32, #tpu.memory_space<any>>
    %39 = tpu.memref_squeeze %38 : memref<1x128xf32, #tpu.memory_space<any>> -> memref<128xf32, #tpu.memory_space<any>>
    %c0_i32_28 = arith.constant 0 : i32
    %40 = tpu.memref_slice %arg13[%0, %c5_i32, %c0_i32_28] : memref<2x8x128xf32, #tpu.memory_space<vmem>> -> memref<1x1x128xf32, #tpu.memory_space<vmem>>
    %41 = tpu.memref_squeeze %40 : memref<1x1x128xf32, #tpu.memory_space<vmem>> -> memref<128xf32, #tpu.memory_space<vmem>>
    %42 = tpu.memref_slice %arg14[%0, %c5_i32_26] : memref<2x8x!tpu.dma_semaphore, #tpu.memory_space<semaphore_mem>> -> memref<1x1x!tpu.dma_semaphore, #tpu.memory_space<semaphore_mem>>
    %43 = tpu.memref_squeeze %42 : memref<1x1x!tpu.dma_semaphore, #tpu.memory_space<semaphore_mem>> -> memref<!tpu.dma_semaphore, #tpu.memory_space<semaphore_mem>>
    tpu.wait_dma2 semaphore(%43 : memref<!tpu.dma_semaphore, #tpu.memory_space<semaphore_mem>>) src(%39 : memref<128xf32, #tpu.memory_space<any>>) dst(%41 : memref<128xf32, #tpu.memory_space<vmem>>)
    %c0_i32_29 = arith.constant 0 : i32
    %c6_i32 = arith.constant 6 : i32
    %c6_i32_30 = arith.constant 6 : i32
    %c0_i32_31 = arith.constant 0 : i32
    %44 = tpu.memref_slice %arg2[%c0_i32_29, %c0_i32_31] : memref<256x128xf32, #tpu.memory_space<any>> -> memref<1x128xf32, #tpu.memory_space<any>>
    %45 = tpu.memref_squeeze %44 : memref<1x128xf32, #tpu.memory_space<any>> -> memref<128xf32, #tpu.memory_space<any>>
    %c0_i32_32 = arith.constant 0 : i32
    %46 = tpu.memref_slice %arg13[%0, %c6_i32, %c0_i32_32] : memref<2x8x128xf32, #tpu.memory_space<vmem>> -> memref<1x1x128xf32, #tpu.memory_space<vmem>>
    %47 = tpu.memref_squeeze %46 : memref<1x1x128xf32, #tpu.memory_space<vmem>> -> memref<128xf32, #tpu.memory_space<vmem>>
    %48 = tpu.memref_slice %arg14[%0, %c6_i32_30] : memref<2x8x!tpu.dma_semaphore, #tpu.memory_space<semaphore_mem>> -> memref<1x1x!tpu.dma_semaphore, #tpu.memory_space<semaphore_mem>>
    %49 = tpu.memref_squeeze %48 : memref<1x1x!tpu.dma_semaphore, #tpu.memory_space<semaphore_mem>> -> memref<!tpu.dma_semaphore, #tpu.memory_space<semaphore_mem>>
    tpu.wait_dma2 semaphore(%49 : memref<!tpu.dma_semaphore, #tpu.memory_space<semaphore_mem>>) src(%45 : memref<128xf32, #tpu.memory_space<any>>) dst(%47 : memref<128xf32, #tpu.memory_space<vmem>>)
    %c0_i32_33 = arith.constant 0 : i32
    %c7_i32 = arith.constant 7 : i32
    %c7_i32_34 = arith.constant 7 : i32
    %c0_i32_35 = arith.constant 0 : i32
    %50 = tpu.memref_slice %arg2[%c0_i32_33, %c0_i32_35] : memref<256x128xf32, #tpu.memory_space<any>> -> memref<1x128xf32, #tpu.memory_space<any>>
    %51 = tpu.memref_squeeze %50 : memref<1x128xf32, #tpu.memory_space<any>> -> memref<128xf32, #tpu.memory_space<any>>
    %c0_i32_36 = arith.constant 0 : i32
    %52 = tpu.memref_slice %arg13[%0, %c7_i32, %c0_i32_36] : memref<2x8x128xf32, #tpu.memory_space<vmem>> -> memref<1x1x128xf32, #tpu.memory_space<vmem>>
    %53 = tpu.memref_squeeze %52 : memref<1x1x128xf32, #tpu.memory_space<vmem>> -> memref<128xf32, #tpu.memory_space<vmem>>
    %54 = tpu.memref_slice %arg14[%0, %c7_i32_34] : memref<2x8x!tpu.dma_semaphore, #tpu.memory_space<semaphore_mem>> -> memref<1x1x!tpu.dma_semaphore, #tpu.memory_space<semaphore_mem>>
    %55 = tpu.memref_squeeze %54 : memref<1x1x!tpu.dma_semaphore, #tpu.memory_space<semaphore_mem>> -> memref<!tpu.dma_semaphore, #tpu.memory_space<semaphore_mem>>
    tpu.wait_dma2 semaphore(%55 : memref<!tpu.dma_semaphore, #tpu.memory_space<semaphore_mem>>) src(%51 : memref<128xf32, #tpu.memory_space<any>>) dst(%53 : memref<128xf32, #tpu.memory_space<vmem>>)
    %56 = arith.index_cast %0 : i32 to index
    %c0 = arith.constant 0 : index
    %c0_37 = arith.constant 0 : index
    %57 = vector.load %arg13[%56, %c0, %c0_37] : memref<2x8x128xf32, #tpu.memory_space<vmem>>, vector<1x8x128xf32>
    %58 = vector.shape_cast %57 : vector<1x8x128xf32> to vector<8x128xf32>
    %59 = arith.truncf %58 : vector<8x128xf32> to vector<8x128xbf16>
    %c0_38 = arith.constant 0 : index
    %c0_39 = arith.constant 0 : index
    %60 = vector.load %arg12[%c0_38, %c0_39] : memref<8x64xf32, #tpu.memory_space<vmem>>, vector<8x64xf32>
    %c0_40 = arith.constant 0 : index
    %c0_41 = arith.constant 0 : index
    %c0_42 = arith.constant 0 : index
    %61 = vector.load %arg3[%c0_40, %c0_41, %c0_42] : memref<1x128x64xbf16, #tpu.memory_space<vmem>>, vector<1x128x64xbf16>
    %62 = vector.shape_cast %61 : vector<1x128x64xbf16> to vector<128x64xbf16>
    %cst = arith.constant dense<0.000000e+00> : vector<8x64xf32>
    %63 = tpu.matmul %59, %62, %cst {dimension_numbers = #tpu.dot_dimension_numbers<[1], [0], [0], [1], [0, 0, 1, 1], [], []>} : vector<8x128xbf16>, vector<128x64xbf16>, vector<8x64xf32> -> vector<8x64xf32>
    %64 = arith.addf %60, %63 : vector<8x64xf32>
    %c0_43 = arith.constant 0 : index
    %c0_44 = arith.constant 0 : index
    %65 = vector.load %arg12[%c0_43, %c0_44] : memref<8x64xf32, #tpu.memory_space<vmem>>, vector<8x64xf32>
    tpu.vector_store %arg12[%c0_43, %c0_44], %64 {strides = array<i32>} : memref<8x64xf32, #tpu.memory_space<vmem>>, vector<8x64xf32>,
    %c7_i32_45 = arith.constant 7 : i32
    %66 = arith.cmpi eq, %arg0, %c7_i32_45 : i32
    %67 = arith.extui %66 : i1 to i32
    %c0_i32_46 = arith.constant 0 : i32
    %68 = arith.cmpi ne, %67, %c0_i32_46 : i32
    scf.if %68 {
      %c0_47 = arith.constant 0 : index
      %c0_48 = arith.constant 0 : index
      %69 = vector.load %arg12[%c0_47, %c0_48] : memref<8x64xf32, #tpu.memory_space<vmem>>, vector<8x64xf32>
      %c0_49 = arith.constant 0 : index
      %c0_50 = arith.constant 0 : index
      %70 = vector.load %arg4[%c0_49, %c0_50] : memref<1x64xf32, #tpu.memory_space<vmem>>, vector<1x64xf32>
      %c0_51 = arith.constant 0 : index
      %c0_52 = arith.constant 0 : index
      %71 = vector.load %arg5[%c0_51, %c0_52] : memref<1x64xf32, #tpu.memory_space<vmem>>, vector<1x64xf32>
      %cst_53 = arith.constant dense<0.000000e+00> : vector<64xf32>
      %72 = vector.multi_reduction <add>, %69, %cst_53 [0] : vector<8x64xf32> to vector<64xf32>
      %73 = vector.shape_cast %72 : vector<64xf32> to vector<1x64xf32>
      %cst_54 = arith.constant 8.000000e+00 : f32
      %74 = vector.broadcast %cst_54 : f32 to vector<1x64xf32>
      %75 = arith.divf %73, %74 : vector<1x64xf32>
      %76 = vector.broadcast %75 : vector<1x64xf32> to vector<8x64xf32>
      %77 = arith.subf %69, %76 : vector<8x64xf32>
      %78 = vector.broadcast %75 : vector<1x64xf32> to vector<8x64xf32>
      %79 = arith.subf %69, %78 : vector<8x64xf32>
      %80 = arith.mulf %77, %79 : vector<8x64xf32>
      %cst_55 = arith.constant dense<0.000000e+00> : vector<64xf32>
      %81 = vector.multi_reduction <add>, %80, %cst_55 [0] : vector<8x64xf32> to vector<64xf32>
      %82 = vector.shape_cast %81 : vector<64xf32> to vector<1x64xf32>
      %cst_56 = arith.constant 8.000000e+00 : f32
      %83 = vector.broadcast %cst_56 : f32 to vector<1x64xf32>
      %84 = arith.divf %82, %83 : vector<1x64xf32>
      %cst_57 = arith.constant 9.99999974E-6 : f32
      %85 = vector.broadcast %cst_57 : f32 to vector<1x64xf32>
      %86 = arith.addf %84, %85 : vector<1x64xf32>
      %87 = math.rsqrt %86 : vector<1x64xf32>
      %88 = arith.mulf %70, %87 : vector<1x64xf32>
      %89 = arith.mulf %75, %88 : vector<1x64xf32>
      %90 = arith.subf %71, %89 : vector<1x64xf32>
      %91 = vector.broadcast %88 : vector<1x64xf32> to vector<8x64xf32>
      %92 = arith.mulf %69, %91 : vector<8x64xf32>
      %93 = vector.broadcast %90 : vector<1x64xf32> to vector<8x64xf32>
      %94 = arith.addf %92, %93 : vector<8x64xf32>
      %cst_58 = arith.constant 0.000000e+00 : f32
      %95 = vector.broadcast %cst_58 : f32 to vector<8x64xf32>
      %96 = arith.maximumf %94, %95 : vector<8x64xf32>
      %c0_59 = arith.constant 0 : index
      %c0_60 = arith.constant 0 : index
      %97 = vector.load %arg6[%c0_59, %c0_60] : memref<64x16xf32, #tpu.memory_space<vmem>>, vector<64x16xf32>
      %cst_61 = arith.constant dense<0.000000e+00> : vector<8x16xf32>
      %98 = tpu.matmul %96, %97, %cst_61 {dimension_numbers = #tpu.dot_dimension_numbers<[1], [0], [0], [1], [0, 0, 1, 1], [], []>} : vector<8x64xf32>, vector<64x16xf32>, vector<8x16xf32> -> vector<8x16xf32>
      %c0_62 = arith.constant 0 : index
      %c0_63 = arith.constant 0 : index
      %99 = vector.load %arg7[%c0_62, %c0_63] : memref<1x16xf32, #tpu.memory_space<vmem>>, vector<1x16xf32>
      %c0_64 = arith.constant 0 : index
      %c0_65 = arith.constant 0 : index
      %100 = vector.load %arg8[%c0_64, %c0_65] : memref<1x16xf32, #tpu.memory_space<vmem>>, vector<1x16xf32>
      %cst_66 = arith.constant dense<0.000000e+00> : vector<16xf32>
      %101 = vector.multi_reduction <add>, %98, %cst_66 [0] : vector<8x16xf32> to vector<16xf32>
      %102 = vector.shape_cast %101 : vector<16xf32> to vector<1x16xf32>
      %cst_67 = arith.constant 8.000000e+00 : f32
      %103 = vector.broadcast %cst_67 : f32 to vector<1x16xf32>
      %104 = arith.divf %102, %103 : vector<1x16xf32>
      %105 = vector.broadcast %104 : vector<1x16xf32> to vector<8x16xf32>
      %106 = arith.subf %98, %105 : vector<8x16xf32>
      %107 = vector.broadcast %104 : vector<1x16xf32> to vector<8x16xf32>
      %108 = arith.subf %98, %107 : vector<8x16xf32>
      %109 = arith.mulf %106, %108 : vector<8x16xf32>
      %cst_68 = arith.constant dense<0.000000e+00> : vector<16xf32>
      %110 = vector.multi_reduction <add>, %109, %cst_68 [0] : vector<8x16xf32> to vector<16xf32>
      %111 = vector.shape_cast %110 : vector<16xf32> to vector<1x16xf32>
      %cst_69 = arith.constant 8.000000e+00 : f32
      %112 = vector.broadcast %cst_69 : f32 to vector<1x16xf32>
      %113 = arith.divf %111, %112 : vector<1x16xf32>
      %cst_70 = arith.constant 9.99999974E-6 : f32
      %114 = vector.broadcast %cst_70 : f32 to vector<1x16xf32>
      %115 = arith.addf %113, %114 : vector<1x16xf32>
      %116 = math.rsqrt %115 : vector<1x16xf32>
      %117 = arith.mulf %99, %116 : vector<1x16xf32>
      %118 = arith.mulf %104, %117 : vector<1x16xf32>
      %119 = arith.subf %100, %118 : vector<1x16xf32>
      %120 = vector.broadcast %117 : vector<1x16xf32> to vector<8x16xf32>
      %121 = arith.mulf %98, %120 : vector<8x16xf32>
      %122 = vector.broadcast %119 : vector<1x16xf32> to vector<8x16xf32>
      %123 = arith.addf %121, %122 : vector<8x16xf32>
      %cst_71 = arith.constant 0.000000e+00 : f32
      %124 = vector.broadcast %cst_71 : f32 to vector<8x16xf32>
      %125 = arith.maximumf %123, %124 : vector<8x16xf32>
      %c0_72 = arith.constant 0 : index
      %c0_73 = arith.constant 0 : index
      %126 = vector.load %arg9[%c0_72, %c0_73] : memref<16x1xf32, #tpu.memory_space<vmem>>, vector<16x1xf32>
      %cst_74 = arith.constant dense<0.000000e+00> : vector<8x1xf32>
      %127 = tpu.matmul %125, %126, %cst_74 {dimension_numbers = #tpu.dot_dimension_numbers<[1], [0], [0], [1], [0, 0, 1, 1], [], []>} : vector<8x16xf32>, vector<16x1xf32>, vector<8x1xf32> -> vector<8x1xf32>
      %c0_75 = arith.constant 0 : index
      %c0_76 = arith.constant 0 : index
      %128 = vector.load %arg10[%c0_75, %c0_76] : memref<1x1xf32, #tpu.memory_space<vmem>>, vector<1x1xf32>
      %129 = vector.broadcast %128 : vector<1x1xf32> to vector<8x1xf32>
      %130 = arith.addf %127, %129 : vector<8x1xf32>
      %131 = arith.negf %130 : vector<8x1xf32>
      %132 = math.exp %131 : vector<8x1xf32>
      %cst_77 = arith.constant 1.000000e+00 : f32
      %133 = vector.broadcast %cst_77 : f32 to vector<8x1xf32>
      %134 = arith.addf %133, %132 : vector<8x1xf32>
      %135 = arith.divf %133, %134 : vector<8x1xf32>
      %c0_78 = arith.constant 0 : index
      %c0_79 = arith.constant 0 : index
      %136 = vector.load %arg11[%c0_78, %c0_79] : memref<8x1xf32, #tpu.memory_space<vmem>>, vector<8x1xf32>
      tpu.vector_store %arg11[%c0_78, %c0_79], %135 {strides = array<i32>} : memref<8x1xf32, #tpu.memory_space<vmem>>, vector<8x1xf32>,
    } else {
    }
    return
  }
  func.func @transform_1(%arg0: i32, %arg1: memref<8x8xi32, #tpu.memory_space<smem>>) -> (i32, i32, i32) {
    %c0_i32 = arith.constant 0 : i32
    %c0_i32_0 = arith.constant 0 : i32
    %c0_i32_1 = arith.constant 0 : i32
    return %arg0, %c0_i32, %c0_i32_0 : i32, i32, i32
  }
  func.func @transform_2(%arg0: i32, %arg1: memref<8x8xi32, #tpu.memory_space<smem>>) -> (i32, i32) {
    %c0_i32 = arith.constant 0 : i32
    %c0_i32_0 = arith.constant 0 : i32
    %c0_i32_1 = arith.constant 0 : i32
    return %c0_i32, %c0_i32_0 : i32, i32
  }
  func.func @transform_3(%arg0: i32, %arg1: memref<8x8xi32, #tpu.memory_space<smem>>) -> (i32, i32) {
    %c0_i32 = arith.constant 0 : i32
    %c0_i32_0 = arith.constant 0 : i32
    %c0_i32_1 = arith.constant 0 : i32
    return %c0_i32, %c0_i32_0 : i32, i32
  }
  func.func @transform_4(%arg0: i32, %arg1: memref<8x8xi32, #tpu.memory_space<smem>>) -> (i32, i32) {
    %c0_i32 = arith.constant 0 : i32
    %c0_i32_0 = arith.constant 0 : i32
    %c0_i32_1 = arith.constant 0 : i32
    return %c0_i32, %c0_i32_0 : i32, i32
  }
  func.func @transform_5(%arg0: i32, %arg1: memref<8x8xi32, #tpu.memory_space<smem>>) -> (i32, i32) {
    %c0_i32 = arith.constant 0 : i32
    %c0_i32_0 = arith.constant 0 : i32
    %c0_i32_1 = arith.constant 0 : i32
    return %c0_i32, %c0_i32_0 : i32, i32
  }
  func.func @transform_6(%arg0: i32, %arg1: memref<8x8xi32, #tpu.memory_space<smem>>) -> (i32, i32) {
    %c0_i32 = arith.constant 0 : i32
    %c0_i32_0 = arith.constant 0 : i32
    %c0_i32_1 = arith.constant 0 : i32
    return %c0_i32, %c0_i32_0 : i32, i32
  }
  func.func @transform_7(%arg0: i32, %arg1: memref<8x8xi32, #tpu.memory_space<smem>>) -> (i32, i32) {
    %c0_i32 = arith.constant 0 : i32
    %c0_i32_0 = arith.constant 0 : i32
    %c0_i32_1 = arith.constant 0 : i32
    return %c0_i32, %c0_i32_0 : i32, i32
  }
  func.func @transform_8(%arg0: i32, %arg1: memref<8x8xi32, #tpu.memory_space<smem>>) -> (i32, i32) {
    %c0_i32 = arith.constant 0 : i32
    %c0_i32_0 = arith.constant 0 : i32
    %c0_i32_1 = arith.constant 0 : i32
    return %c0_i32, %c0_i32_0 : i32, i32
  }
  func.func @transform_9(%arg0: i32, %arg1: memref<8x8xi32, #tpu.memory_space<smem>>) -> (i32, i32) {
    %c0_i32 = arith.constant 0 : i32
    %c0_i32_0 = arith.constant 0 : i32
    %c0_i32_1 = arith.constant 0 : i32
    return %c0_i32, %c0_i32_0 : i32, i32
  }
}

</mosaic_0001>

<llo_original>
// kernel: tpu_custom_call.1
$region0: #{tpu_custom_call.1}
  #allocation0 [shape = 'u32[]', space=smem, size = 0x4, offset = 0x4, fixed_abs, tag = 'smem constant byte address 0x4 - core index']
  #allocation1 [shape = 'u32[144,128]{1,0:T(1,128)}', space=vmem, size = 0x12000, scoped, tag = 'internal scratch']
  #allocation2 [shape = 'f32[8,64]{1,0:T(8,128)}', space=vmem, size = 0x1000, scoped, tag = 'scratch operand']
  #allocation3 [shape = 'f32[2,8,128]{2,1,0:T(8,128)}', space=vmem, size = 0x2000, scoped, tag = 'scratch operand']
  #allocation4 [shape = 's32[16]{0}', space=sflag, size = 0x40, scoped, tag = 'scratch operand']
  #allocation5 [shape = 's32[1]{0}', space=sflag, size = 0x4, scoped, tag = 'scoped memory for tpu_custom_call.1']
  #allocation6 [shape = 'u8[4096]{0}', space=smem, size = 0x1000, scoped, tag = 'prefetched SMEM operand 0']
  #allocation7 [shape = 'f32[1,1]{1,0:T(1,128)S(1)}', space=vmem, size = 0x200, scoped, tag = 'scoped memory for tpu_custom_call.1']
  #allocation8 [shape = 's32[]', space=sflag, size = 0x4, offset = 0, fixed_abs, tag = 'sflag constant byte address 0x0 - dummy sync flag']
  #allocation9 [shape = 's32[]', space=sflag, size = 0x4, offset = 0, fixed_abs, tag = 'sflag constant byte address 0x0 - dummy sync flag']
  #allocation10 [shape = 's32[]', space=sflag, size = 0x4, offset = 0, fixed_abs, tag = 'sflag constant byte address 0x0 - dummy sync flag']
  #allocation11 [shape = 's32[]', space=sflag, size = 0x4, offset = 0, fixed_abs, tag = 'sflag constant byte address 0x0 - dummy sync flag']
  #allocation12 [shape = 's32[]', space=sflag, size = 0x4, offset = 0, fixed_abs, tag = 'sflag constant byte address 0x0 - dummy sync flag']
  #allocation13 [shape = 's32[]', space=sflag, size = 0x4, offset = 0, fixed_abs, tag = 'sflag constant byte address 0x0 - dummy sync flag']
  #allocation14 [shape = 's32[]', space=sflag, size = 0x4, offset = 0, fixed_abs, tag = 'sflag constant byte address 0x0 - dummy sync flag']
  #allocation15 [shape = 's32[]', space=sflag, size = 0x4, offset = 0, fixed_abs, tag = 'sflag constant byte address 0x0 - dummy sync flag']
  #allocation16 [shape = 's32[]', space=sflag, size = 0x4, offset = 0, fixed_abs, tag = 'sflag constant byte address 0x0 - dummy sync flag']
  #allocation17 [shape = 's32[]', space=sflag, size = 0x4, offset = 0, fixed_abs, tag = 'sflag constant byte address 0x0 - dummy sync flag']
  #allocation18 [shape = 's32[]', space=sflag, size = 0x4, offset = 0, fixed_abs, tag = 'sflag constant byte address 0x0 - dummy sync flag']
  #allocation19 [shape = 's32[]', space=sflag, size = 0x4, offset = 0, fixed_abs, tag = 'sflag constant byte address 0x0 - dummy sync flag']
  #allocation20 [shape = 's32[]', space=sflag, size = 0x4, offset = 0, fixed_abs, tag = 'sflag constant byte address 0x0 - dummy sync flag']
  #allocation21 [shape = 's32[]', space=sflag, size = 0x4, offset = 0, fixed_abs, tag = 'sflag constant byte address 0x0 - dummy sync flag']
  #allocation22 [shape = 's32[]', space=sflag, size = 0x4, offset = 0, fixed_abs, tag = 'sflag constant byte address 0x0 - dummy sync flag']
  #allocation23 [shape = 's32[]', space=sflag, size = 0x4, offset = 0, fixed_abs, tag = 'sflag constant byte address 0x0 - dummy sync flag']
  %s0 = inlined_call_operand.vmem [shape: s32[8,8], index: 0, kind: input, shape index: {}]
  %s1 = inlined_call_operand.vmem [shape: f32[256,128], index: 1, kind: input, shape index: {}]
  %s2 = inlined_call_operand.vmem [shape: bf16[8,128,64], index: 2, kind: input, shape index: {}]
  %s3 = inlined_call_operand.vmem [shape: f32[1,64], index: 3, kind: input, shape index: {}]
  %s4 = inlined_call_operand.vmem [shape: f32[1,64], index: 4, kind: input, shape index: {}]
  %s5 = inlined_call_operand.vmem [shape: f32[64,16], index: 5, kind: input, shape index: {}]
  %s6 = inlined_call_operand.vmem [shape: f32[1,16], index: 6, kind: input, shape index: {}]
  %s7 = inlined_call_operand.vmem [shape: f32[1,16], index: 7, kind: input, shape index: {}]
  %s8 = inlined_call_operand.vmem [shape: f32[16,1], index: 8, kind: input, shape index: {}]
  %s9 = inlined_call_operand.<no memory space> [shape: f32[1,1], index: 9, kind: input, shape index: {}]
  %s10 = inlined_call_operand.vmem [shape: f32[8,1], index: 10, kind: output, shape index: {}]
  %s11 = sld [smem:[#allocation0]]
  $region557: #{tpu_custom_call.1} parent=0
    _
  %s13 = ssub.s32 1, %s11
  %s14 = scalar_select 0, %s13, %s11
  %s15 = sshll.u32 %s0, 4
  %s16 = int_to_ptr.vmem [resolvable:$true] %s15
  %18 = dma.vmem_to_smem %s16, 128, [#allocation6], [#allocation5]
  %v19 = vstv %s9
  %20 = vst [vmem:[#allocation7] sm:$0x1] %v19
  %21 = dma.done [#allocation5], 128
  %22 = sfence
  loop: start=0, step=1, limit=10
  $region2: #{tpu_custom_call.1} parent=0 // loop_pre_header
    _
  $region3: #{tpu_custom_call.1} parent=0 // loop_header
    %s24 = sphi 0, %s28
    %p25 = scmp.ge.s32.totalorder %s24, 10
    %s34 = sphi 0, %s36
    %s37 = sphi 0, %s34
    %s38 = sphi 0, %s37
    %s54 = sphi 0, %s38
    %s58 = sphi 0, %s58
    %s60 = sphi 0, %s58
    %s61 = sphi 0, %s60
    %s75 = sphi 0, %s61
    %s79 = sphi 0, %s79
    %s81 = sphi 0, %s79
    %s82 = sphi 0, %s81
    %s96 = sphi 0, %s82
    %s100 = sphi 0, %s100
    %s102 = sphi 0, %s100
    %s103 = sphi 0, %s102
    %s117 = sphi 0, %s103
    %s121 = sphi 0, %s121
    %s123 = sphi 0, %s121
    %s124 = sphi 0, %s123
    %s138 = sphi 0, %s124
    %s142 = sphi 0, %s142
    %s144 = sphi 0, %s142
    %s145 = sphi 0, %s144
    %s159 = sphi 0, %s145
    %s163 = sphi 0, %s163
    %s165 = sphi 0, %s163
    %s166 = sphi 0, %s165
    %s180 = sphi 0, %s166
    %s184 = sphi 0, %s184
    %s186 = sphi 0, %s184
    %s187 = sphi 0, %s186
    %s201 = sphi 0, %s187
    %s205 = sphi 0, %s205
    %s207 = sphi 0, %s205
    %s208 = sphi 0, %s207
    %s222 = sphi 0, %s208
  $region4: #{tpu_custom_call.1} parent=0 // loop_header_branch
    %27 = sbr.rel (%p25) target = $region8
  $region5: #{tpu_custom_call.1} parent=0 // loop_body
    %s29 = ssub.s32 %s24, 1
    %s30 = ssub.s32 %s24, 2
    %s31 = sadd.s32 %s24, 1
    %s32 = ssub.s32 %s24, %s31
    %p33 = scmp.eq.s32.totalorder %s32, 0
    %s35 = sadd.s32 %s34, 1
    %s36 = scalar_select %p33, %s34, %s35
    %p39 = pneg %p33
    %p40 = scmp.eq.s32.totalorder %s24, 7
    %p41 = por %p39, %p40
    %p42 = scmp.ne.s32.totalorder %s34, %s37
    %p43 = scmp.eq.s32.totalorder %s24, 0
    %p44 = por %p42, %p43
    %p45 = scmp.ne.s32.totalorder %s34, %s37
    %p46 = scmp.eq.s32.totalorder %s29, 7
    %p47 = por %p45, %p46
    %p48 = scmp.ne.s32.totalorder %s37, %s38
    %p49 = scmp.eq.s32.totalorder %s29, 0
    %p50 = por %p48, %p49
    %p51 = scmp.ne.s32.totalorder %s37, %s38
    %p52 = scmp.eq.s32.totalorder %s30, 7
    %p53 = por %p51, %p52
    %p55 = scmp.ne.s32.totalorder %s38, %s54
    %p56 = scmp.eq.s32.totalorder %s30, 0
    %p57 = por %p55, %p56
    %s59 = sadd.s32 %s58, 1
    %p62 = scmp.eq.s32.totalorder %s24, 7
    %p63 = scmp.ne.s32.totalorder %s58, %s60
    %p64 = scmp.eq.s32.totalorder %s24, 0
    %p65 = por %p63, %p64
    %p66 = scmp.ne.s32.totalorder %s58, %s60
    %p67 = scmp.eq.s32.totalorder %s29, 7
    %p68 = por %p66, %p67
    %p69 = scmp.ne.s32.totalorder %s60, %s61
    %p70 = scmp.eq.s32.totalorder %s29, 0
    %p71 = por %p69, %p70
    %p72 = scmp.ne.s32.totalorder %s60, %s61
    %p73 = scmp.eq.s32.totalorder %s30, 7
    %p74 = por %p72, %p73
    %p76 = scmp.ne.s32.totalorder %s61, %s75
    %p77 = scmp.eq.s32.totalorder %s30, 0
    %p78 = por %p76, %p77
    %s80 = sadd.s32 %s79, 1
    %p83 = scmp.eq.s32.totalorder %s24, 7
    %p84 = scmp.ne.s32.totalorder %s79, %s81
    %p85 = scmp.eq.s32.totalorder %s24, 0
    %p86 = por %p84, %p85
    %p87 = scmp.ne.s32.totalorder %s79, %s81
    %p88 = scmp.eq.s32.totalorder %s29, 7
    %p89 = por %p87, %p88
    %p90 = scmp.ne.s32.totalorder %s81, %s82
    %p91 = scmp.eq.s32.totalorder %s29, 0
    %p92 = por %p90, %p91
    %p93 = scmp.ne.s32.totalorder %s81, %s82
    %p94 = scmp.eq.s32.totalorder %s30, 7
    %p95 = por %p93, %p94
    %p97 = scmp.ne.s32.totalorder %s82, %s96
    %p98 = scmp.eq.s32.totalorder %s30, 0
    %p99 = por %p97, %p98
    %s101 = sadd.s32 %s100, 1
    %p104 = scmp.eq.s32.totalorder %s24, 7
    %p105 = scmp.ne.s32.totalorder %s100, %s102
    %p106 = scmp.eq.s32.totalorder %s24, 0
    %p107 = por %p105, %p106
    %p108 = scmp.ne.s32.totalorder %s100, %s102
    %p109 = scmp.eq.s32.totalorder %s29, 7
    %p110 = por %p108, %p109
    %p111 = scmp.ne.s32.totalorder %s102, %s103
    %p112 = scmp.eq.s32.totalorder %s29, 0
    %p113 = por %p111, %p112
    %p114 = scmp.ne.s32.totalorder %s102, %s103
    %p115 = scmp.eq.s32.totalorder %s30, 7
    %p116 = por %p114, %p115
    %p118 = scmp.ne.s32.totalorder %s103, %s117
    %p119 = scmp.eq.s32.totalorder %s30, 0
    %p120 = por %p118, %p119
    %s122 = sadd.s32 %s121, 1
    %p125 = scmp.eq.s32.totalorder %s24, 7
    %p126 = scmp.ne.s32.totalorder %s121, %s123
    %p127 = scmp.eq.s32.totalorder %s24, 0
    %p128 = por %p126, %p127
    %p129 = scmp.ne.s32.totalorder %s121, %s123
    %p130 = scmp.eq.s32.totalorder %s29, 7
    %p131 = por %p129, %p130
    %p132 = scmp.ne.s32.totalorder %s123, %s124
    %p133 = scmp.eq.s32.totalorder %s29, 0
    %p134 = por %p132, %p133
    %p135 = scmp.ne.s32.totalorder %s123, %s124
    %p136 = scmp.eq.s32.totalorder %s30, 7
    %p137 = por %p135, %p136
    %p139 = scmp.ne.s32.totalorder %s124, %s138
    %p140 = scmp.eq.s32.totalorder %s30, 0
    %p141 = por %p139, %p140
    %s143 = sadd.s32 %s142, 1
    %p146 = scmp.eq.s32.totalorder %s24, 7
    %p147 = scmp.ne.s32.totalorder %s142, %s144
    %p148 = scmp.eq.s32.totalorder %s24, 0
    %p149 = por %p147, %p148
    %p150 = scmp.ne.s32.totalorder %s142, %s144
    %p151 = scmp.eq.s32.totalorder %s29, 7
    %p152 = por %p150, %p151
    %p153 = scmp.ne.s32.totalorder %s144, %s145
    %p154 = scmp.eq.s32.totalorder %s29, 0
    %p155 = por %p153, %p154
    %p156 = scmp.ne.s32.totalorder %s144, %s145
    %p157 = scmp.eq.s32.totalorder %s30, 7
    %p158 = por %p156, %p157
    %p160 = scmp.ne.s32.totalorder %s145, %s159
    %p161 = scmp.eq.s32.totalorder %s30, 0
    %p162 = por %p160, %p161
    %s164 = sadd.s32 %s163, 1
    %p167 = scmp.eq.s32.totalorder %s24, 7
    %p168 = scmp.ne.s32.totalorder %s163, %s165
    %p169 = scmp.eq.s32.totalorder %s24, 0
    %p170 = por %p168, %p169
    %p171 = scmp.ne.s32.totalorder %s163, %s165
    %p172 = scmp.eq.s32.totalorder %s29, 7
    %p173 = por %p171, %p172
    %p174 = scmp.ne.s32.totalorder %s165, %s166
    %p175 = scmp.eq.s32.totalorder %s29, 0
    %p176 = por %p174, %p175
    %p177 = scmp.ne.s32.totalorder %s165, %s166
    %p178 = scmp.eq.s32.totalorder %s30, 7
    %p179 = por %p177, %p178
    %p181 = scmp.ne.s32.totalorder %s166, %s180
    %p182 = scmp.eq.s32.totalorder %s30, 0
    %p183 = por %p181, %p182
    %s185 = sadd.s32 %s184, 1
    %p188 = scmp.eq.s32.totalorder %s24, 7
    %p189 = scmp.ne.s32.totalorder %s184, %s186
    %p190 = scmp.eq.s32.totalorder %s24, 0
    %p191 = por %p189, %p190
    %p192 = scmp.ne.s32.totalorder %s184, %s186
    %p193 = scmp.eq.s32.totalorder %s29, 7
    %p194 = por %p192, %p193
    %p195 = scmp.ne.s32.totalorder %s186, %s187
    %p196 = scmp.eq.s32.totalorder %s29, 0
    %p197 = por %p195, %p196
    %p198 = scmp.ne.s32.totalorder %s186, %s187
    %p199 = scmp.eq.s32.totalorder %s30, 7
    %p200 = por %p198, %p199
    %p202 = scmp.ne.s32.totalorder %s187, %s201
    %p203 = scmp.eq.s32.totalorder %s30, 0
    %p204 = por %p202, %p203
    %s206 = sadd.s32 %s205, 1
    %p209 = scmp.eq.s32.totalorder %s24, 7
    %p210 = scmp.ne.s32.totalorder %s205, %s207
    %p211 = scmp.eq.s32.totalorder %s24, 0
    %p212 = por %p210, %p211
    %p213 = scmp.ne.s32.totalorder %s205, %s207
    %p214 = scmp.eq.s32.totalorder %s29, 7
    %p215 = por %p213, %p214
    %p216 = scmp.ne.s32.totalorder %s207, %s208
    %p217 = scmp.eq.s32.totalorder %s29, 0
    %p218 = por %p216, %p217
    %p219 = scmp.ne.s32.totalorder %s207, %s208
    %p220 = scmp.eq.s32.totalorder %s30, 7
    %p221 = por %p219, %p220
    %p223 = scmp.ne.s32.totalorder %s208, %s222
    %p224 = scmp.eq.s32.totalorder %s30, 0
    %p225 = por %p223, %p224
    %p226 = scmp.le.s32.totalorder 1, %s24
    %p227 = scmp.lt.s32.totalorder %s24, 9
    %p228 = pnand %p226, %p227
    %p229 = pneg %p228
    // Predicated region
    $region9: #{tpu_custom_call.1} parent=5 // pred_check
      _
    $region10: #{tpu_custom_call.1} parent=5 // pred_check_branch
      %231 = sbr.rel (%p228) target = $region12
    $region11: #{tpu_custom_call.1} parent=5 // pred_region
      %s232 = ssub.s32 %s24, 1
      // Predicated region
      $region13: #{tpu_custom_call.1} parent=11 // pred_check
        %p233 = pneg %p71
      $region14: #{tpu_custom_call.1} parent=11 // pred_check_branch
        %235 = sbr.rel (%p233) target = $region16
      $region15: #{tpu_custom_call.1} parent=11 // pred_region
        _
      $region16: #{tpu_custom_call.1} parent=11 // pred_fallthru
        _
      // Predicated region
      $region17: #{tpu_custom_call.1} parent=11 // pred_check
        %p236 = pneg %p92
      $region18: #{tpu_custom_call.1} parent=11 // pred_check_branch
        %238 = sbr.rel (%p236) target = $region20
      $region19: #{tpu_custom_call.1} parent=11 // pred_region
        _
      $region20: #{tpu_custom_call.1} parent=11 // pred_fallthru
        _
      // Predicated region
      $region21: #{tpu_custom_call.1} parent=11 // pred_check
        %p239 = pneg %p113
      $region22: #{tpu_custom_call.1} parent=11 // pred_check_branch
        %241 = sbr.rel (%p239) target = $region24
      $region23: #{tpu_custom_call.1} parent=11 // pred_region
        _
      $region24: #{tpu_custom_call.1} parent=11 // pred_fallthru
        _
      // Predicated region
      $region25: #{tpu_custom_call.1} parent=11 // pred_check
        %p242 = pneg %p134
      $region26: #{tpu_custom_call.1} parent=11 // pred_check_branch
        %244 = sbr.rel (%p242) target = $region28
      $region27: #{tpu_custom_call.1} parent=11 // pred_region
        _
      $region28: #{tpu_custom_call.1} parent=11 // pred_fallthru
        _
      // Predicated region
      $region29: #{tpu_custom_call.1} parent=11 // pred_check
        %p245 = pneg %p155
      $region30: #{tpu_custom_call.1} parent=11 // pred_check_branch
        %247 = sbr.rel (%p245) target = $region32
      $region31: #{tpu_custom_call.1} parent=11 // pred_region
        _
      $region32: #{tpu_custom_call.1} parent=11 // pred_fallthru
        _
      // Predicated region
      $region33: #{tpu_custom_call.1} parent=11 // pred_check
        %p248 = pneg %p176
      $region34: #{tpu_custom_call.1} parent=11 // pred_check_branch
        %250 = sbr.rel (%p248) target = $region36
      $region35: #{tpu_custom_call.1} parent=11 // pred_region
        _
      $region36: #{tpu_custom_call.1} parent=11 // pred_fallthru
        _
      // Predicated region
      $region37: #{tpu_custom_call.1} parent=11 // pred_check
        %p251 = pneg %p197
      $region38: #{tpu_custom_call.1} parent=11 // pred_check_branch
        %253 = sbr.rel (%p251) target = $region40
      $region39: #{tpu_custom_call.1} parent=11 // pred_region
        _
      $region40: #{tpu_custom_call.1} parent=11 // pred_fallthru
        _
    $region12: #{tpu_custom_call.1} parent=5 // pred_fallthru
      _
    %p254 = scmp.lt.s32.totalorder %s24, 8
    // Predicated region
    $region41: #{tpu_custom_call.1} parent=5 // pred_check
      %p255 = pneg %p254
    $region42: #{tpu_custom_call.1} parent=5 // pred_check_branch
      %257 = sbr.rel (%p255) target = $region44
    $region43: #{tpu_custom_call.1} parent=5 // pred_region
      // Predicated region
      $region45: #{tpu_custom_call.1} parent=43 // pred_check
        %p258 = pneg %p44
      $region46: #{tpu_custom_call.1} parent=43 // pred_check_branch
        %260 = sbr.rel (%p258) target = $region48
      $region47: #{tpu_custom_call.1} parent=43 // pred_region
        %p261 = scmp.lt.s32.totalorder %s24, 7
        %s262 = scalar_select %p261, %s24, 7
        %s263 = smul.addr %s262, 16
        %s264 = smul.addr %s263, 4
        %s265 = scalar_lea.vmem %s2, %s264
      $region48: #{tpu_custom_call.1} parent=43 // pred_fallthru
        _
    $region44: #{tpu_custom_call.1} parent=5 // pred_fallthru
      _
    %p266 = scmp.le.s32.totalorder 1, %s24
    %p267 = scmp.lt.s32.totalorder %s24, 9
    %p268 = pnand %p266, %p267
    %p269 = pneg %p268
    // Predicated region
    $region49: #{tpu_custom_call.1} parent=5 // pred_check
      _
    $region50: #{tpu_custom_call.1} parent=5 // pred_check_branch
      %271 = sbr.rel (%p268) target = $region52
    $region51: #{tpu_custom_call.1} parent=5 // pred_region
      %s272 = ssub.s32 %s24, 1
      %p273 = scmp.lt.s32.totalorder %s29, 7
      %s274 = scalar_select %p273, %s29, 7
      %s275 = smul.addr %s274, 16
      %s276 = smul.addr %s275, 4
      %s277 = scalar_lea.vmem %s2, %s276
      %p278 = pneg %p50
      %p279 = pneg %p47
      %p280 = pneg %p71
      %p281 = pneg %p68
      %p282 = pneg %p92
      %p283 = pneg %p89
      %p284 = pneg %p113
      %p285 = pneg %p110
      %p286 = pneg %p134
      %p287 = pneg %p131
      %p288 = pneg %p155
      %p289 = pneg %p152
      %p290 = pneg %p176
      %p291 = pneg %p173
      %p292 = pneg %p197
      %p293 = pneg %p194
      %p294 = pneg %p218
      %p295 = pneg %p215
      %p296 = scmp.lt.s32.totalorder %s29, 7
      %s297 = scalar_select %p296, %s29, 7
      %s298 = smul.addr %s297, 16
      %s299 = smul.addr %s298, 4
      %s300 = scalar_lea.vmem %s2, %s299
      %p302 = scmp.lt.s32.totalorder %s29, 0
      %s303 = ssub.s32 0, %s29
      %s304 = scalar_select %p302, %s303, %s29
      %s305 = sand.u32 %s304, 1
      %s306 = ssub.s32 0, %s305
      %s307 = scalar_select %p302, %s306, %s305
      %p308 = scmp.eq.s32.totalorder %s29, 0
      // Predicated region
      $region53: #{tpu_custom_call.1} parent=51 // pred_check
        %p309 = pneg %p308
      $region54: #{tpu_custom_call.1} parent=51 // pred_check_branch
        %311 = sbr.rel (%p309) target = $region56
      $region55: #{tpu_custom_call.1} parent=51 // pred_region
        %vm312 = vcmask 523264
        %313 = vst.msk [vmem:[#allocation2] sm:$0xff] %vm312, 0.0
        %s314 = sld [smem:[#allocation6]]
        %p315 = scmp.gt.s32.totalorder %s314, 0
        %s316 = scalar_select %p315, %s314, 0
        %p317 = scmp.lt.s32.totalorder %s316, 255
        %s318 = scalar_select %p317, %s316, 255
        %s319 = scalar_lea.vmem %s1, %s318
        %p321 = scmp.lt.u32.totalorder 1, 8
        %p322 = pneg %p321
        // Predicated region
        $region57: #{tpu_custom_call.1} parent=55 // pred_check
          _
        $region58: #{tpu_custom_call.1} parent=55 // pred_check_branch
          %324 = sbr.rel (%p321) target = $region60
        $region59: #{tpu_custom_call.1} parent=55 // pred_region
          %s340 = sand.u32 1, 7
          %p341 = scmp.eq.s32.totalorder %s340, 0
          %p342 = pneg %p341
          // Predicated region
          $region72: #{tpu_custom_call.1} parent=59 // pred_check
            _
          $region73: #{tpu_custom_call.1} parent=59 // pred_check_branch
            %344 = sbr.rel (%p341) target = $region75
          $region74: #{tpu_custom_call.1} parent=59 // pred_region
            %s345 = sand.u32 1, 7
            %s346 = ssub.s32 1, %s345
            %s347 = scalar_lea.vmem %s319, %s346
            %s348 = ssub.s32 1, %s345
            %s349 = scalar_lea.vmem [#allocation3], %s348
            %s350 = sshll.u32 1, %s345
            %s351 = ssub.s32 %s350, 1
            loop: start=0, step=1, limit=1
            $region76: #{tpu_custom_call.1} parent=74 // loop_pre_header
              _
            $region77: #{tpu_custom_call.1} parent=74 // loop_header
              %s353 = sphi 0, %s357
              %p354 = scmp.ge.s32.totalorder %s353, 1
              %s358 = sphi %s347, %s347
              %s359 = sphi %s349, %s349
            $region78: #{tpu_custom_call.1} parent=74 // loop_header_branch
              %356 = sbr.rel (%p354) target = $region82
            $region79: #{tpu_custom_call.1} parent=74 // loop_body
              %v360 = vld [vmem:[%s358] sm:%s351]
              %361 = vst [vmem:[%s359] sm:%s351] %v360
            $region80: #{tpu_custom_call.1} parent=74 // loop_footer
              %s357 = sadd.s32 1, %s353
            $region81: #{tpu_custom_call.1} parent=74 // loop_footer_branch
              %352 = sbr.rel target = $region77
            $region82: #{tpu_custom_call.1} parent=74 // loop_exit
              _
          $region75: #{tpu_custom_call.1} parent=59 // pred_fallthru
            _
        $region60: #{tpu_custom_call.1} parent=55 // pred_fallthru
          _
        // Predicated region
        $region61: #{tpu_custom_call.1} parent=55 // pred_check
          %p325 = pneg %p321
        $region62: #{tpu_custom_call.1} parent=55 // pred_check_branch
          %327 = sbr.rel (%p325) target = $region64
        $region63: #{tpu_custom_call.1} parent=55 // pred_region
          %s328 = sshll.u32 1, 1
          %s329 = ssub.s32 %s328, 1
          loop: start=0, step=1, limit=1
          $region65: #{tpu_custom_call.1} parent=63 // loop_pre_header
            _
          $region66: #{tpu_custom_call.1} parent=63 // loop_header
            %s331 = sphi 0, %s335
            %p332 = scmp.ge.s32.totalorder %s331, 1
            %s336 = sphi %s319, %s319
            %s337 = sphi [#allocation3], [#allocation3]
          $region67: #{tpu_custom_call.1} parent=63 // loop_header_branch
            %334 = sbr.rel (%p332) target = $region71
          $region68: #{tpu_custom_call.1} parent=63 // loop_body
            %v338 = vld [vmem:[%s336] sm:%s329]
            %339 = vst [vmem:[%s337] sm:%s329] %v338
          $region69: #{tpu_custom_call.1} parent=63 // loop_footer
            %s335 = sadd.s32 1, %s331
          $region70: #{tpu_custom_call.1} parent=63 // loop_footer_branch
            %330 = sbr.rel target = $region66
          $region71: #{tpu_custom_call.1} parent=63 // loop_exit
            _
        $region64: #{tpu_custom_call.1} parent=55 // pred_fallthru
          _
        // Predicated region
        $region83: #{tpu_custom_call.1} parent=55 // pred_check
          _
        $region84: #{tpu_custom_call.1} parent=55 // pred_check_branch
          %364 = sbr.rel (0) target = $region86
        $region85: #{tpu_custom_call.1} parent=55 // pred_region
          %365 = vsyncadd [#allocation4], 16
        $region86: #{tpu_custom_call.1} parent=55 // pred_fallthru
          _
        %s366 = sld [smem:[#allocation6 + $0x80]]
        %p367 = scmp.gt.s32.totalorder %s366, 0
        %s368 = scalar_select %p367, %s366, 0
        %p369 = scmp.lt.s32.totalorder %s368, 255
        %s370 = scalar_select %p369, %s368, 255
        %s371 = scalar_lea.vmem %s1, %s370
        %s372 = scalar_lea.vmem [#allocation3], 1
        %s373 = scalar_lea.sflag [#allocation4], 1
        %p375 = scmp.lt.u32.totalorder 1, 8
        %p376 = pneg %p375
        // Predicated region
        $region87: #{tpu_custom_call.1} parent=55 // pred_check
          _
        $region88: #{tpu_custom_call.1} parent=55 // pred_check_branch
          %378 = sbr.rel (%p375) target = $region90
        $region89: #{tpu_custom_call.1} parent=55 // pred_region
          %s394 = sand.u32 1, 7
          %p395 = scmp.eq.s32.totalorder %s394, 0
          %p396 = pneg %p395
          // Predicated region
          $region102: #{tpu_custom_call.1} parent=89 // pred_check
            _
          $region103: #{tpu_custom_call.1} parent=89 // pred_check_branch
            %398 = sbr.rel (%p395) target = $region105
          $region104: #{tpu_custom_call.1} parent=89 // pred_region
            %s399 = sand.u32 1, 7
            %s400 = ssub.s32 1, %s399
            %s401 = scalar_lea.vmem %s371, %s400
            %s402 = ssub.s32 1, %s399
            %s403 = scalar_lea.vmem %s372, %s402 [#allocation3]
            %s404 = sshll.u32 1, %s399
            %s405 = ssub.s32 %s404, 1
            loop: start=0, step=1, limit=1
            $region106: #{tpu_custom_call.1} parent=104 // loop_pre_header
              _
            $region107: #{tpu_custom_call.1} parent=104 // loop_header
              %s407 = sphi 0, %s411
              %p408 = scmp.ge.s32.totalorder %s407, 1
              %s412 = sphi %s401, %s401
              %s413 = sphi %s403, %s403
            $region108: #{tpu_custom_call.1} parent=104 // loop_header_branch
              %410 = sbr.rel (%p408) target = $region112
            $region109: #{tpu_custom_call.1} parent=104 // loop_body
              %v414 = vld [vmem:[%s412] sm:%s405]
              %415 = vst [vmem:[%s413] sm:%s405] %v414
            $region110: #{tpu_custom_call.1} parent=104 // loop_footer
              %s411 = sadd.s32 1, %s407
            $region111: #{tpu_custom_call.1} parent=104 // loop_footer_branch
              %406 = sbr.rel target = $region107
            $region112: #{tpu_custom_call.1} parent=104 // loop_exit
              _
          $region105: #{tpu_custom_call.1} parent=89 // pred_fallthru
            _
        $region90: #{tpu_custom_call.1} parent=55 // pred_fallthru
          _
        // Predicated region
        $region91: #{tpu_custom_call.1} parent=55 // pred_check
          %p379 = pneg %p375
        $region92: #{tpu_custom_call.1} parent=55 // pred_check_branch
          %381 = sbr.rel (%p379) target = $region94
        $region93: #{tpu_custom_call.1} parent=55 // pred_region
          %s382 = sshll.u32 1, 1
          %s383 = ssub.s32 %s382, 1
          loop: start=0, step=1, limit=1
          $region95: #{tpu_custom_call.1} parent=93 // loop_pre_header
            _
          $region96: #{tpu_custom_call.1} parent=93 // loop_header
            %s385 = sphi 0, %s389
            %p386 = scmp.ge.s32.totalorder %s385, 1
            %s390 = sphi %s371, %s371
            %s391 = sphi %s372, %s372
          $region97: #{tpu_custom_call.1} parent=93 // loop_header_branch
            %388 = sbr.rel (%p386) target = $region101
          $region98: #{tpu_custom_call.1} parent=93 // loop_body
            %v392 = vld [vmem:[%s390] sm:%s383]
            %393 = vst [vmem:[%s391] sm:%s383] %v392
          $region99: #{tpu_custom_call.1} parent=93 // loop_footer
            %s389 = sadd.s32 1, %s385
          $region100: #{tpu_custom_call.1} parent=93 // loop_footer_branch
            %384 = sbr.rel target = $region96
          $region101: #{tpu_custom_call.1} parent=93 // loop_exit
            _
        $region94: #{tpu_custom_call.1} parent=55 // pred_fallthru
          _
        // Predicated region
        $region113: #{tpu_custom_call.1} parent=55 // pred_check
          _
        $region114: #{tpu_custom_call.1} parent=55 // pred_check_branch
          %418 = sbr.rel (0) target = $region116
        $region115: #{tpu_custom_call.1} parent=55 // pred_region
          %419 = vsyncadd %s373, 16
        $region116: #{tpu_custom_call.1} parent=55 // pred_fallthru
          _
        %s420 = sld [smem:[#allocation6 + $0x100]]
        %p421 = scmp.gt.s32.totalorder %s420, 0
        %s422 = scalar_select %p421, %s420, 0
        %p423 = scmp.lt.s32.totalorder %s422, 255
        %s424 = scalar_select %p423, %s422, 255
        %s425 = scalar_lea.vmem %s1, %s424
        %s426 = scalar_lea.vmem [#allocation3], 2
        %s427 = scalar_lea.sflag [#allocation4], 2
        %p429 = scmp.lt.u32.totalorder 1, 8
        %p430 = pneg %p429
        // Predicated region
        $region117: #{tpu_custom_call.1} parent=55 // pred_check
          _
        $region118: #{tpu_custom_call.1} parent=55 // pred_check_branch
          %432 = sbr.rel (%p429) target = $region120
        $region119: #{tpu_custom_call.1} parent=55 // pred_region
          %s448 = sand.u32 1, 7
          %p449 = scmp.eq.s32.totalorder %s448, 0
          %p450 = pneg %p449
          // Predicated region
          $region132: #{tpu_custom_call.1} parent=119 // pred_check
            _
          $region133: #{tpu_custom_call.1} parent=119 // pred_check_branch
            %452 = sbr.rel (%p449) target = $region135
          $region134: #{tpu_custom_call.1} parent=119 // pred_region
            %s453 = sand.u32 1, 7
            %s454 = ssub.s32 1, %s453
            %s455 = scalar_lea.vmem %s425, %s454
            %s456 = ssub.s32 1, %s453
            %s457 = scalar_lea.vmem %s426, %s456 [#allocation3]
            %s458 = sshll.u32 1, %s453
            %s459 = ssub.s32 %s458, 1
            loop: start=0, step=1, limit=1
            $region136: #{tpu_custom_call.1} parent=134 // loop_pre_header
              _
            $region137: #{tpu_custom_call.1} parent=134 // loop_header
              %s461 = sphi 0, %s465
              %p462 = scmp.ge.s32.totalorder %s461, 1
              %s466 = sphi %s455, %s455
              %s467 = sphi %s457, %s457
            $region138: #{tpu_custom_call.1} parent=134 // loop_header_branch
              %464 = sbr.rel (%p462) target = $region142
            $region139: #{tpu_custom_call.1} parent=134 // loop_body
              %v468 = vld [vmem:[%s466] sm:%s459]
              %469 = vst [vmem:[%s467] sm:%s459] %v468
            $region140: #{tpu_custom_call.1} parent=134 // loop_footer
              %s465 = sadd.s32 1, %s461
            $region141: #{tpu_custom_call.1} parent=134 // loop_footer_branch
              %460 = sbr.rel target = $region137
            $region142: #{tpu_custom_call.1} parent=134 // loop_exit
              _
          $region135: #{tpu_custom_call.1} parent=119 // pred_fallthru
            _
        $region120: #{tpu_custom_call.1} parent=55 // pred_fallthru
          _
        // Predicated region
        $region121: #{tpu_custom_call.1} parent=55 // pred_check
          %p433 = pneg %p429
        $region122: #{tpu_custom_call.1} parent=55 // pred_check_branch
          %435 = sbr.rel (%p433) target = $region124
        $region123: #{tpu_custom_call.1} parent=55 // pred_region
          %s436 = sshll.u32 1, 1
          %s437 = ssub.s32 %s436, 1
          loop: start=0, step=1, limit=1
          $region125: #{tpu_custom_call.1} parent=123 // loop_pre_header
            _
          $region126: #{tpu_custom_call.1} parent=123 // loop_header
            %s439 = sphi 0, %s443
            %p440 = scmp.ge.s32.totalorder %s439, 1
            %s444 = sphi %s425, %s425
            %s445 = sphi %s426, %s426
          $region127: #{tpu_custom_call.1} parent=123 // loop_header_branch
            %442 = sbr.rel (%p440) target = $region131
          $region128: #{tpu_custom_call.1} parent=123 // loop_body
            %v446 = vld [vmem:[%s444] sm:%s437]
            %447 = vst [vmem:[%s445] sm:%s437] %v446
          $region129: #{tpu_custom_call.1} parent=123 // loop_footer
            %s443 = sadd.s32 1, %s439
          $region130: #{tpu_custom_call.1} parent=123 // loop_footer_branch
            %438 = sbr.rel target = $region126
          $region131: #{tpu_custom_call.1} parent=123 // loop_exit
            _
        $region124: #{tpu_custom_call.1} parent=55 // pred_fallthru
          _
        // Predicated region
        $region143: #{tpu_custom_call.1} parent=55 // pred_check
          _
        $region144: #{tpu_custom_call.1} parent=55 // pred_check_branch
          %472 = sbr.rel (0) target = $region146
        $region145: #{tpu_custom_call.1} parent=55 // pred_region
          %473 = vsyncadd %s427, 16
        $region146: #{tpu_custom_call.1} parent=55 // pred_fallthru
          _
        %s474 = sld [smem:[#allocation6 + $0x180]]
        %p475 = scmp.gt.s32.totalorder %s474, 0
        %s476 = scalar_select %p475, %s474, 0
        %p477 = scmp.lt.s32.totalorder %s476, 255
        %s478 = scalar_select %p477, %s476, 255
        %s479 = scalar_lea.vmem %s1, %s478
        %s480 = scalar_lea.vmem [#allocation3], 3
        %s481 = scalar_lea.sflag [#allocation4], 3
        %p483 = scmp.lt.u32.totalorder 1, 8
        %p484 = pneg %p483
        // Predicated region
        $region147: #{tpu_custom_call.1} parent=55 // pred_check
          _
        $region148: #{tpu_custom_call.1} parent=55 // pred_check_branch
          %486 = sbr.rel (%p483) target = $region150
        $region149: #{tpu_custom_call.1} parent=55 // pred_region
          %s502 = sand.u32 1, 7
          %p503 = scmp.eq.s32.totalorder %s502, 0
          %p504 = pneg %p503
          // Predicated region
          $region162: #{tpu_custom_call.1} parent=149 // pred_check
            _
          $region163: #{tpu_custom_call.1} parent=149 // pred_check_branch
            %506 = sbr.rel (%p503) target = $region165
          $region164: #{tpu_custom_call.1} parent=149 // pred_region
            %s507 = sand.u32 1, 7
            %s508 = ssub.s32 1, %s507
            %s509 = scalar_lea.vmem %s479, %s508
            %s510 = ssub.s32 1, %s507
            %s511 = scalar_lea.vmem %s480, %s510 [#allocation3]
            %s512 = sshll.u32 1, %s507
            %s513 = ssub.s32 %s512, 1
            loop: start=0, step=1, limit=1
            $region166: #{tpu_custom_call.1} parent=164 // loop_pre_header
              _
            $region167: #{tpu_custom_call.1} parent=164 // loop_header
              %s515 = sphi 0, %s519
              %p516 = scmp.ge.s32.totalorder %s515, 1
              %s520 = sphi %s509, %s509
              %s521 = sphi %s511, %s511
            $region168: #{tpu_custom_call.1} parent=164 // loop_header_branch
              %518 = sbr.rel (%p516) target = $region172
            $region169: #{tpu_custom_call.1} parent=164 // loop_body
              %v522 = vld [vmem:[%s520] sm:%s513]
              %523 = vst [vmem:[%s521] sm:%s513] %v522
            $region170: #{tpu_custom_call.1} parent=164 // loop_footer
              %s519 = sadd.s32 1, %s515
            $region171: #{tpu_custom_call.1} parent=164 // loop_footer_branch
              %514 = sbr.rel target = $region167
            $region172: #{tpu_custom_call.1} parent=164 // loop_exit
              _
          $region165: #{tpu_custom_call.1} parent=149 // pred_fallthru
            _
        $region150: #{tpu_custom_call.1} parent=55 // pred_fallthru
          _
        // Predicated region
        $region151: #{tpu_custom_call.1} parent=55 // pred_check
          %p487 = pneg %p483
        $region152: #{tpu_custom_call.1} parent=55 // pred_check_branch
          %489 = sbr.rel (%p487) target = $region154
        $region153: #{tpu_custom_call.1} parent=55 // pred_region
          %s490 = sshll.u32 1, 1
          %s491 = ssub.s32 %s490, 1
          loop: start=0, step=1, limit=1
          $region155: #{tpu_custom_call.1} parent=153 // loop_pre_header
            _
          $region156: #{tpu_custom_call.1} parent=153 // loop_header
            %s493 = sphi 0, %s497
            %p494 = scmp.ge.s32.totalorder %s493, 1
            %s498 = sphi %s479, %s479
            %s499 = sphi %s480, %s480
          $region157: #{tpu_custom_call.1} parent=153 // loop_header_branch
            %496 = sbr.rel (%p494) target = $region161
          $region158: #{tpu_custom_call.1} parent=153 // loop_body
            %v500 = vld [vmem:[%s498] sm:%s491]
            %501 = vst [vmem:[%s499] sm:%s491] %v500
          $region159: #{tpu_custom_call.1} parent=153 // loop_footer
            %s497 = sadd.s32 1, %s493
          $region160: #{tpu_custom_call.1} parent=153 // loop_footer_branch
            %492 = sbr.rel target = $region156
          $region161: #{tpu_custom_call.1} parent=153 // loop_exit
            _
        $region154: #{tpu_custom_call.1} parent=55 // pred_fallthru
          _
        // Predicated region
        $region173: #{tpu_custom_call.1} parent=55 // pred_check
          _
        $region174: #{tpu_custom_call.1} parent=55 // pred_check_branch
          %526 = sbr.rel (0) target = $region176
        $region175: #{tpu_custom_call.1} parent=55 // pred_region
          %527 = vsyncadd %s481, 16
        $region176: #{tpu_custom_call.1} parent=55 // pred_fallthru
          _
        %s528 = sld [smem:[#allocation6 + $0x200]]
        %p529 = scmp.gt.s32.totalorder %s528, 0
        %s530 = scalar_select %p529, %s528, 0
        %p531 = scmp.lt.s32.totalorder %s530, 255
        %s532 = scalar_select %p531, %s530, 255
        %s533 = scalar_lea.vmem %s1, %s532
        %s534 = scalar_lea.vmem [#allocation3], 4
        %s535 = scalar_lea.sflag [#allocation4], 4
        %p537 = scmp.lt.u32.totalorder 1, 8
        %p538 = pneg %p537
        // Predicated region
        $region177: #{tpu_custom_call.1} parent=55 // pred_check
          _
        $region178: #{tpu_custom_call.1} parent=55 // pred_check_branch
          %540 = sbr.rel (%p537) target = $region180
        $region179: #{tpu_custom_call.1} parent=55 // pred_region
          %s556 = sand.u32 1, 7
          %p557 = scmp.eq.s32.totalorder %s556, 0
          %p558 = pneg %p557
          // Predicated region
          $region192: #{tpu_custom_call.1} parent=179 // pred_check
            _
          $region193: #{tpu_custom_call.1} parent=179 // pred_check_branch
            %560 = sbr.rel (%p557) target = $region195
          $region194: #{tpu_custom_call.1} parent=179 // pred_region
            %s561 = sand.u32 1, 7
            %s562 = ssub.s32 1, %s561
            %s563 = scalar_lea.vmem %s533, %s562
            %s564 = ssub.s32 1, %s561
            %s565 = scalar_lea.vmem %s534, %s564 [#allocation3]
            %s566 = sshll.u32 1, %s561
            %s567 = ssub.s32 %s566, 1
            loop: start=0, step=1, limit=1
            $region196: #{tpu_custom_call.1} parent=194 // loop_pre_header
              _
            $region197: #{tpu_custom_call.1} parent=194 // loop_header
              %s569 = sphi 0, %s573
              %p570 = scmp.ge.s32.totalorder %s569, 1
              %s574 = sphi %s563, %s563
              %s575 = sphi %s565, %s565
            $region198: #{tpu_custom_call.1} parent=194 // loop_header_branch
              %572 = sbr.rel (%p570) target = $region202
            $region199: #{tpu_custom_call.1} parent=194 // loop_body
              %v576 = vld [vmem:[%s574] sm:%s567]
              %577 = vst [vmem:[%s575] sm:%s567] %v576
            $region200: #{tpu_custom_call.1} parent=194 // loop_footer
              %s573 = sadd.s32 1, %s569
            $region201: #{tpu_custom_call.1} parent=194 // loop_footer_branch
              %568 = sbr.rel target = $region197
            $region202: #{tpu_custom_call.1} parent=194 // loop_exit
              _
          $region195: #{tpu_custom_call.1} parent=179 // pred_fallthru
            _
        $region180: #{tpu_custom_call.1} parent=55 // pred_fallthru
          _
        // Predicated region
        $region181: #{tpu_custom_call.1} parent=55 // pred_check
          %p541 = pneg %p537
        $region182: #{tpu_custom_call.1} parent=55 // pred_check_branch
          %543 = sbr.rel (%p541) target = $region184
        $region183: #{tpu_custom_call.1} parent=55 // pred_region
          %s544 = sshll.u32 1, 1
          %s545 = ssub.s32 %s544, 1
          loop: start=0, step=1, limit=1
          $region185: #{tpu_custom_call.1} parent=183 // loop_pre_header
            _
          $region186: #{tpu_custom_call.1} parent=183 // loop_header
            %s547 = sphi 0, %s551
            %p548 = scmp.ge.s32.totalorder %s547, 1
            %s552 = sphi %s533, %s533
            %s553 = sphi %s534, %s534
          $region187: #{tpu_custom_call.1} parent=183 // loop_header_branch
            %550 = sbr.rel (%p548) target = $region191
          $region188: #{tpu_custom_call.1} parent=183 // loop_body
            %v554 = vld [vmem:[%s552] sm:%s545]
            %555 = vst [vmem:[%s553] sm:%s545] %v554
          $region189: #{tpu_custom_call.1} parent=183 // loop_footer
            %s551 = sadd.s32 1, %s547
          $region190: #{tpu_custom_call.1} parent=183 // loop_footer_branch
            %546 = sbr.rel target = $region186
          $region191: #{tpu_custom_call.1} parent=183 // loop_exit
            _
        $region184: #{tpu_custom_call.1} parent=55 // pred_fallthru
          _
        // Predicated region
        $region203: #{tpu_custom_call.1} parent=55 // pred_check
          _
        $region204: #{tpu_custom_call.1} parent=55 // pred_check_branch
          %580 = sbr.rel (0) target = $region206
        $region205: #{tpu_custom_call.1} parent=55 // pred_region
          %581 = vsyncadd %s535, 16
        $region206: #{tpu_custom_call.1} parent=55 // pred_fallthru
          _
        %s582 = sld [smem:[#allocation6 + $0x280]]
        %p583 = scmp.gt.s32.totalorder %s582, 0
        %s584 = scalar_select %p583, %s582, 0
        %p585 = scmp.lt.s32.totalorder %s584, 255
        %s586 = scalar_select %p585, %s584, 255
        %s587 = scalar_lea.vmem %s1, %s586
        %s588 = scalar_lea.vmem [#allocation3], 5
        %s589 = scalar_lea.sflag [#allocation4], 5
        %p591 = scmp.lt.u32.totalorder 1, 8
        %p592 = pneg %p591
        // Predicated region
        $region207: #{tpu_custom_call.1} parent=55 // pred_check
          _
        $region208: #{tpu_custom_call.1} parent=55 // pred_check_branch
          %594 = sbr.rel (%p591) target = $region210
        $region209: #{tpu_custom_call.1} parent=55 // pred_region
          %s610 = sand.u32 1, 7
          %p611 = scmp.eq.s32.totalorder %s610, 0
          %p612 = pneg %p611
          // Predicated region
          $region222: #{tpu_custom_call.1} parent=209 // pred_check
            _
          $region223: #{tpu_custom_call.1} parent=209 // pred_check_branch
            %614 = sbr.rel (%p611) target = $region225
          $region224: #{tpu_custom_call.1} parent=209 // pred_region
            %s615 = sand.u32 1, 7
            %s616 = ssub.s32 1, %s615
            %s617 = scalar_lea.vmem %s587, %s616
            %s618 = ssub.s32 1, %s615
            %s619 = scalar_lea.vmem %s588, %s618 [#allocation3]
            %s620 = sshll.u32 1, %s615
            %s621 = ssub.s32 %s620, 1
            loop: start=0, step=1, limit=1
            $region226: #{tpu_custom_call.1} parent=224 // loop_pre_header
              _
            $region227: #{tpu_custom_call.1} parent=224 // loop_header
              %s623 = sphi 0, %s627
              %p624 = scmp.ge.s32.totalorder %s623, 1
              %s628 = sphi %s617, %s617
              %s629 = sphi %s619, %s619
            $region228: #{tpu_custom_call.1} parent=224 // loop_header_branch
              %626 = sbr.rel (%p624) target = $region232
            $region229: #{tpu_custom_call.1} parent=224 // loop_body
              %v630 = vld [vmem:[%s628] sm:%s621]
              %631 = vst [vmem:[%s629] sm:%s621] %v630
            $region230: #{tpu_custom_call.1} parent=224 // loop_footer
              %s627 = sadd.s32 1, %s623
            $region231: #{tpu_custom_call.1} parent=224 // loop_footer_branch
              %622 = sbr.rel target = $region227
            $region232: #{tpu_custom_call.1} parent=224 // loop_exit
              _
          $region225: #{tpu_custom_call.1} parent=209 // pred_fallthru
            _
        $region210: #{tpu_custom_call.1} parent=55 // pred_fallthru
          _
        // Predicated region
        $region211: #{tpu_custom_call.1} parent=55 // pred_check
          %p595 = pneg %p591
        $region212: #{tpu_custom_call.1} parent=55 // pred_check_branch
          %597 = sbr.rel (%p595) target = $region214
        $region213: #{tpu_custom_call.1} parent=55 // pred_region
          %s598 = sshll.u32 1, 1
          %s599 = ssub.s32 %s598, 1
          loop: start=0, step=1, limit=1
          $region215: #{tpu_custom_call.1} parent=213 // loop_pre_header
            _
          $region216: #{tpu_custom_call.1} parent=213 // loop_header
            %s601 = sphi 0, %s605
            %p602 = scmp.ge.s32.totalorder %s601, 1
            %s606 = sphi %s587, %s587
            %s607 = sphi %s588, %s588
          $region217: #{tpu_custom_call.1} parent=213 // loop_header_branch
            %604 = sbr.rel (%p602) target = $region221
          $region218: #{tpu_custom_call.1} parent=213 // loop_body
            %v608 = vld [vmem:[%s606] sm:%s599]
            %609 = vst [vmem:[%s607] sm:%s599] %v608
          $region219: #{tpu_custom_call.1} parent=213 // loop_footer
            %s605 = sadd.s32 1, %s601
          $region220: #{tpu_custom_call.1} parent=213 // loop_footer_branch
            %600 = sbr.rel target = $region216
          $region221: #{tpu_custom_call.1} parent=213 // loop_exit
            _
        $region214: #{tpu_custom_call.1} parent=55 // pred_fallthru
          _
        // Predicated region
        $region233: #{tpu_custom_call.1} parent=55 // pred_check
          _
        $region234: #{tpu_custom_call.1} parent=55 // pred_check_branch
          %634 = sbr.rel (0) target = $region236
        $region235: #{tpu_custom_call.1} parent=55 // pred_region
          %635 = vsyncadd %s589, 16
        $region236: #{tpu_custom_call.1} parent=55 // pred_fallthru
          _
        %s636 = sld [smem:[#allocation6 + $0x300]]
        %p637 = scmp.gt.s32.totalorder %s636, 0
        %s638 = scalar_select %p637, %s636, 0
        %p639 = scmp.lt.s32.totalorder %s638, 255
        %s640 = scalar_select %p639, %s638, 255
        %s641 = scalar_lea.vmem %s1, %s640
        %s642 = scalar_lea.vmem [#allocation3], 6
        %s643 = scalar_lea.sflag [#allocation4], 6
        %p645 = scmp.lt.u32.totalorder 1, 8
        %p646 = pneg %p645
        // Predicated region
        $region237: #{tpu_custom_call.1} parent=55 // pred_check
          _
        $region238: #{tpu_custom_call.1} parent=55 // pred_check_branch
          %648 = sbr.rel (%p645) target = $region240
        $region239: #{tpu_custom_call.1} parent=55 // pred_region
          %s664 = sand.u32 1, 7
          %p665 = scmp.eq.s32.totalorder %s664, 0
          %p666 = pneg %p665
          // Predicated region
          $region252: #{tpu_custom_call.1} parent=239 // pred_check
            _
          $region253: #{tpu_custom_call.1} parent=239 // pred_check_branch
            %668 = sbr.rel (%p665) target = $region255
          $region254: #{tpu_custom_call.1} parent=239 // pred_region
            %s669 = sand.u32 1, 7
            %s670 = ssub.s32 1, %s669
            %s671 = scalar_lea.vmem %s641, %s670
            %s672 = ssub.s32 1, %s669
            %s673 = scalar_lea.vmem %s642, %s672 [#allocation3]
            %s674 = sshll.u32 1, %s669
            %s675 = ssub.s32 %s674, 1
            loop: start=0, step=1, limit=1
            $region256: #{tpu_custom_call.1} parent=254 // loop_pre_header
              _
            $region257: #{tpu_custom_call.1} parent=254 // loop_header
              %s677 = sphi 0, %s681
              %p678 = scmp.ge.s32.totalorder %s677, 1
              %s682 = sphi %s671, %s671
              %s683 = sphi %s673, %s673
            $region258: #{tpu_custom_call.1} parent=254 // loop_header_branch
              %680 = sbr.rel (%p678) target = $region262
            $region259: #{tpu_custom_call.1} parent=254 // loop_body
              %v684 = vld [vmem:[%s682] sm:%s675]
              %685 = vst [vmem:[%s683] sm:%s675] %v684
            $region260: #{tpu_custom_call.1} parent=254 // loop_footer
              %s681 = sadd.s32 1, %s677
            $region261: #{tpu_custom_call.1} parent=254 // loop_footer_branch
              %676 = sbr.rel target = $region257
            $region262: #{tpu_custom_call.1} parent=254 // loop_exit
              _
          $region255: #{tpu_custom_call.1} parent=239 // pred_fallthru
            _
        $region240: #{tpu_custom_call.1} parent=55 // pred_fallthru
          _
        // Predicated region
        $region241: #{tpu_custom_call.1} parent=55 // pred_check
          %p649 = pneg %p645
        $region242: #{tpu_custom_call.1} parent=55 // pred_check_branch
          %651 = sbr.rel (%p649) target = $region244
        $region243: #{tpu_custom_call.1} parent=55 // pred_region
          %s652 = sshll.u32 1, 1
          %s653 = ssub.s32 %s652, 1
          loop: start=0, step=1, limit=1
          $region245: #{tpu_custom_call.1} parent=243 // loop_pre_header
            _
          $region246: #{tpu_custom_call.1} parent=243 // loop_header
            %s655 = sphi 0, %s659
            %p656 = scmp.ge.s32.totalorder %s655, 1
            %s660 = sphi %s641, %s641
            %s661 = sphi %s642, %s642
          $region247: #{tpu_custom_call.1} parent=243 // loop_header_branch
            %658 = sbr.rel (%p656) target = $region251
          $region248: #{tpu_custom_call.1} parent=243 // loop_body
            %v662 = vld [vmem:[%s660] sm:%s653]
            %663 = vst [vmem:[%s661] sm:%s653] %v662
          $region249: #{tpu_custom_call.1} parent=243 // loop_footer
            %s659 = sadd.s32 1, %s655
          $region250: #{tpu_custom_call.1} parent=243 // loop_footer_branch
            %654 = sbr.rel target = $region246
          $region251: #{tpu_custom_call.1} parent=243 // loop_exit
            _
        $region244: #{tpu_custom_call.1} parent=55 // pred_fallthru
          _
        // Predicated region
        $region263: #{tpu_custom_call.1} parent=55 // pred_check
          _
        $region264: #{tpu_custom_call.1} parent=55 // pred_check_branch
          %688 = sbr.rel (0) target = $region266
        $region265: #{tpu_custom_call.1} parent=55 // pred_region
          %689 = vsyncadd %s643, 16
        $region266: #{tpu_custom_call.1} parent=55 // pred_fallthru
          _
        %s690 = sld [smem:[#allocation6 + $0x380]]
        %p691 = scmp.gt.s32.totalorder %s690, 0
        %s692 = scalar_select %p691, %s690, 0
        %p693 = scmp.lt.s32.totalorder %s692, 255
        %s694 = scalar_select %p693, %s692, 255
        %s695 = scalar_lea.vmem %s1, %s694
        %s696 = scalar_lea.vmem [#allocation3], 7
        %s697 = scalar_lea.sflag [#allocation4], 7
        %p699 = scmp.lt.u32.totalorder 1, 8
        %p700 = pneg %p699
        // Predicated region
        $region267: #{tpu_custom_call.1} parent=55 // pred_check
          _
        $region268: #{tpu_custom_call.1} parent=55 // pred_check_branch
          %702 = sbr.rel (%p699) target = $region270
        $region269: #{tpu_custom_call.1} parent=55 // pred_region
          %s718 = sand.u32 1, 7
          %p719 = scmp.eq.s32.totalorder %s718, 0
          %p720 = pneg %p719
          // Predicated region
          $region282: #{tpu_custom_call.1} parent=269 // pred_check
            _
          $region283: #{tpu_custom_call.1} parent=269 // pred_check_branch
            %722 = sbr.rel (%p719) target = $region285
          $region284: #{tpu_custom_call.1} parent=269 // pred_region
            %s723 = sand.u32 1, 7
            %s724 = ssub.s32 1, %s723
            %s725 = scalar_lea.vmem %s695, %s724
            %s726 = ssub.s32 1, %s723
            %s727 = scalar_lea.vmem %s696, %s726 [#allocation3]
            %s728 = sshll.u32 1, %s723
            %s729 = ssub.s32 %s728, 1
            loop: start=0, step=1, limit=1
            $region286: #{tpu_custom_call.1} parent=284 // loop_pre_header
              _
            $region287: #{tpu_custom_call.1} parent=284 // loop_header
              %s731 = sphi 0, %s735
              %p732 = scmp.ge.s32.totalorder %s731, 1
              %s736 = sphi %s725, %s725
              %s737 = sphi %s727, %s727
            $region288: #{tpu_custom_call.1} parent=284 // loop_header_branch
              %734 = sbr.rel (%p732) target = $region292
            $region289: #{tpu_custom_call.1} parent=284 // loop_body
              %v738 = vld [vmem:[%s736] sm:%s729]
              %739 = vst [vmem:[%s737] sm:%s729] %v738
            $region290: #{tpu_custom_call.1} parent=284 // loop_footer
              %s735 = sadd.s32 1, %s731
            $region291: #{tpu_custom_call.1} parent=284 // loop_footer_branch
              %730 = sbr.rel target = $region287
            $region292: #{tpu_custom_call.1} parent=284 // loop_exit
              _
          $region285: #{tpu_custom_call.1} parent=269 // pred_fallthru
            _
        $region270: #{tpu_custom_call.1} parent=55 // pred_fallthru
          _
        // Predicated region
        $region271: #{tpu_custom_call.1} parent=55 // pred_check
          %p703 = pneg %p699
        $region272: #{tpu_custom_call.1} parent=55 // pred_check_branch
          %705 = sbr.rel (%p703) target = $region274
        $region273: #{tpu_custom_call.1} parent=55 // pred_region
          %s706 = sshll.u32 1, 1
          %s707 = ssub.s32 %s706, 1
          loop: start=0, step=1, limit=1
          $region275: #{tpu_custom_call.1} parent=273 // loop_pre_header
            _
          $region276: #{tpu_custom_call.1} parent=273 // loop_header
            %s709 = sphi 0, %s713
            %p710 = scmp.ge.s32.totalorder %s709, 1
            %s714 = sphi %s695, %s695
            %s715 = sphi %s696, %s696
          $region277: #{tpu_custom_call.1} parent=273 // loop_header_branch
            %712 = sbr.rel (%p710) target = $region281
          $region278: #{tpu_custom_call.1} parent=273 // loop_body
            %v716 = vld [vmem:[%s714] sm:%s707]
            %717 = vst [vmem:[%s715] sm:%s707] %v716
          $region279: #{tpu_custom_call.1} parent=273 // loop_footer
            %s713 = sadd.s32 1, %s709
          $region280: #{tpu_custom_call.1} parent=273 // loop_footer_branch
            %708 = sbr.rel target = $region276
          $region281: #{tpu_custom_call.1} parent=273 // loop_exit
            _
        $region274: #{tpu_custom_call.1} parent=55 // pred_fallthru
          _
        // Predicated region
        $region293: #{tpu_custom_call.1} parent=55 // pred_check
          _
        $region294: #{tpu_custom_call.1} parent=55 // pred_check_branch
          %742 = sbr.rel (0) target = $region296
        $region295: #{tpu_custom_call.1} parent=55 // pred_region
          %743 = vsyncadd %s697, 16
        $region296: #{tpu_custom_call.1} parent=55 // pred_fallthru
          _
      $region56: #{tpu_custom_call.1} parent=51 // pred_fallthru
        _
      %s744 = sadd.s32 %s29, 1
      %p745 = scmp.lt.s32.totalorder %s744, 8
      // Predicated region
      $region297: #{tpu_custom_call.1} parent=51 // pred_check
        %p746 = pneg %p745
      $region298: #{tpu_custom_call.1} parent=51 // pred_check_branch
        %748 = sbr.rel (%p746) target = $region300
      $region299: #{tpu_custom_call.1} parent=51 // pred_region
        %s749 = ssub.s32 1, %s307
        %s750 = sld [smem:[#allocation6 + %s744]]
        %p751 = scmp.gt.s32.totalorder %s750, 0
        %s752 = scalar_select %p751, %s750, 0
        %p753 = scmp.lt.s32.totalorder %s752, 255
        %s754 = scalar_select %p753, %s752, 255
        %s755 = scalar_lea.vmem %s1, %s754
        %s756 = smul.u32 %s749, 8
        %s757 = scalar_lea.vmem [#allocation3], %s756
        %s758 = scalar_lea.sflag [#allocation4], %s756
        %p760 = scmp.lt.u32.totalorder 1, 8
        %p761 = pneg %p760
        // Predicated region
        $region301: #{tpu_custom_call.1} parent=299 // pred_check
          _
        $region302: #{tpu_custom_call.1} parent=299 // pred_check_branch
          %763 = sbr.rel (%p760) target = $region304
        $region303: #{tpu_custom_call.1} parent=299 // pred_region
          %s779 = sand.u32 1, 7
          %p780 = scmp.eq.s32.totalorder %s779, 0
          %p781 = pneg %p780
          // Predicated region
          $region316: #{tpu_custom_call.1} parent=303 // pred_check
            _
          $region317: #{tpu_custom_call.1} parent=303 // pred_check_branch
            %783 = sbr.rel (%p780) target = $region319
          $region318: #{tpu_custom_call.1} parent=303 // pred_region
            %s784 = sand.u32 1, 7
            %s785 = ssub.s32 1, %s784
            %s786 = scalar_lea.vmem %s755, %s785
            %s787 = ssub.s32 1, %s784
            %s788 = scalar_lea.vmem %s757, %s787 [#allocation3]
            %s789 = sshll.u32 1, %s784
            %s790 = ssub.s32 %s789, 1
            loop: start=0, step=1, limit=1
            $region320: #{tpu_custom_call.1} parent=318 // loop_pre_header
              _
            $region321: #{tpu_custom_call.1} parent=318 // loop_header
              %s792 = sphi 0, %s796
              %p793 = scmp.ge.s32.totalorder %s792, 1
              %s797 = sphi %s786, %s786
              %s798 = sphi %s788, %s788
            $region322: #{tpu_custom_call.1} parent=318 // loop_header_branch
              %795 = sbr.rel (%p793) target = $region326
            $region323: #{tpu_custom_call.1} parent=318 // loop_body
              %v799 = vld [vmem:[%s797] sm:%s790]
              %800 = vst [vmem:[%s798] sm:%s790] %v799
            $region324: #{tpu_custom_call.1} parent=318 // loop_footer
              %s796 = sadd.s32 1, %s792
            $region325: #{tpu_custom_call.1} parent=318 // loop_footer_branch
              %791 = sbr.rel target = $region321
            $region326: #{tpu_custom_call.1} parent=318 // loop_exit
              _
          $region319: #{tpu_custom_call.1} parent=303 // pred_fallthru
            _
        $region304: #{tpu_custom_call.1} parent=299 // pred_fallthru
          _
        // Predicated region
        $region305: #{tpu_custom_call.1} parent=299 // pred_check
          %p764 = pneg %p760
        $region306: #{tpu_custom_call.1} parent=299 // pred_check_branch
          %766 = sbr.rel (%p764) target = $region308
        $region307: #{tpu_custom_call.1} parent=299 // pred_region
          %s767 = sshll.u32 1, 1
          %s768 = ssub.s32 %s767, 1
          loop: start=0, step=1, limit=1
          $region309: #{tpu_custom_call.1} parent=307 // loop_pre_header
            _
          $region310: #{tpu_custom_call.1} parent=307 // loop_header
            %s770 = sphi 0, %s774
            %p771 = scmp.ge.s32.totalorder %s770, 1
            %s775 = sphi %s755, %s755
            %s776 = sphi %s757, %s757
          $region311: #{tpu_custom_call.1} parent=307 // loop_header_branch
            %773 = sbr.rel (%p771) target = $region315
          $region312: #{tpu_custom_call.1} parent=307 // loop_body
            %v777 = vld [vmem:[%s775] sm:%s768]
            %778 = vst [vmem:[%s776] sm:%s768] %v777
          $region313: #{tpu_custom_call.1} parent=307 // loop_footer
            %s774 = sadd.s32 1, %s770
          $region314: #{tpu_custom_call.1} parent=307 // loop_footer_branch
            %769 = sbr.rel target = $region310
          $region315: #{tpu_custom_call.1} parent=307 // loop_exit
            _
        $region308: #{tpu_custom_call.1} parent=299 // pred_fallthru
          _
        // Predicated region
        $region327: #{tpu_custom_call.1} parent=299 // pred_check
          _
        $region328: #{tpu_custom_call.1} parent=299 // pred_check_branch
          %803 = sbr.rel (0) target = $region330
        $region329: #{tpu_custom_call.1} parent=299 // pred_region
          %804 = vsyncadd %s758, 16
        $region330: #{tpu_custom_call.1} parent=299 // pred_fallthru
          _
        %s805 = sshra.s32 %s744, 7
        %s806 = sand.u32 %s744, 127
        %s807 = sadd.s32 %s805, 1
        %s808 = smul.u32 %s807, 128
        %s809 = sshra.s32 %s744, 7
        %s810 = sand.u32 %s744, 127
        %s811 = sadd.s32 %s808, %s810
        %s812 = sld [smem:[#allocation6 + %s811]]
        %p813 = scmp.gt.s32.totalorder %s812, 0
        %s814 = scalar_select %p813, %s812, 0
        %p815 = scmp.lt.s32.totalorder %s814, 255
        %s816 = scalar_select %p815, %s814, 255
        %s817 = scalar_lea.vmem %s1, %s816
        %s818 = sadd.s32 1, %s756
        %s819 = scalar_lea.vmem [#allocation3], %s818
        %s820 = scalar_lea.sflag [#allocation4], %s818
        %p822 = scmp.lt.u32.totalorder 1, 8
        %p823 = pneg %p822
        // Predicated region
        $region331: #{tpu_custom_call.1} parent=299 // pred_check
          _
        $region332: #{tpu_custom_call.1} parent=299 // pred_check_branch
          %825 = sbr.rel (%p822) target = $region334
        $region333: #{tpu_custom_call.1} parent=299 // pred_region
          %s841 = sand.u32 1, 7
          %p842 = scmp.eq.s32.totalorder %s841, 0
          %p843 = pneg %p842
          // Predicated region
          $region346: #{tpu_custom_call.1} parent=333 // pred_check
            _
          $region347: #{tpu_custom_call.1} parent=333 // pred_check_branch
            %845 = sbr.rel (%p842) target = $region349
          $region348: #{tpu_custom_call.1} parent=333 // pred_region
            %s846 = sand.u32 1, 7
            %s847 = ssub.s32 1, %s846
            %s848 = scalar_lea.vmem %s817, %s847
            %s849 = ssub.s32 1, %s846
            %s850 = scalar_lea.vmem %s819, %s849 [#allocation3]
            %s851 = sshll.u32 1, %s846
            %s852 = ssub.s32 %s851, 1
            loop: start=0, step=1, limit=1
            $region350: #{tpu_custom_call.1} parent=348 // loop_pre_header
              _
            $region351: #{tpu_custom_call.1} parent=348 // loop_header
              %s854 = sphi 0, %s858
              %p855 = scmp.ge.s32.totalorder %s854, 1
              %s859 = sphi %s848, %s848
              %s860 = sphi %s850, %s850
            $region352: #{tpu_custom_call.1} parent=348 // loop_header_branch
              %857 = sbr.rel (%p855) target = $region356
            $region353: #{tpu_custom_call.1} parent=348 // loop_body
              %v861 = vld [vmem:[%s859] sm:%s852]
              %862 = vst [vmem:[%s860] sm:%s852] %v861
            $region354: #{tpu_custom_call.1} parent=348 // loop_footer
              %s858 = sadd.s32 1, %s854
            $region355: #{tpu_custom_call.1} parent=348 // loop_footer_branch
              %853 = sbr.rel target = $region351
            $region356: #{tpu_custom_call.1} parent=348 // loop_exit
              _
          $region349: #{tpu_custom_call.1} parent=333 // pred_fallthru
            _
        $region334: #{tpu_custom_call.1} parent=299 // pred_fallthru
          _
        // Predicated region
        $region335: #{tpu_custom_call.1} parent=299 // pred_check
          %p826 = pneg %p822
        $region336: #{tpu_custom_call.1} parent=299 // pred_check_branch
          %828 = sbr.rel (%p826) target = $region338
        $region337: #{tpu_custom_call.1} parent=299 // pred_region
          %s829 = sshll.u32 1, 1
          %s830 = ssub.s32 %s829, 1
          loop: start=0, step=1, limit=1
          $region339: #{tpu_custom_call.1} parent=337 // loop_pre_header
            _
          $region340: #{tpu_custom_call.1} parent=337 // loop_header
            %s832 = sphi 0, %s836
            %p833 = scmp.ge.s32.totalorder %s832, 1
            %s837 = sphi %s817, %s817
            %s838 = sphi %s819, %s819
          $region341: #{tpu_custom_call.1} parent=337 // loop_header_branch
            %835 = sbr.rel (%p833) target = $region345
          $region342: #{tpu_custom_call.1} parent=337 // loop_body
            %v839 = vld [vmem:[%s837] sm:%s830]
            %840 = vst [vmem:[%s838] sm:%s830] %v839
          $region343: #{tpu_custom_call.1} parent=337 // loop_footer
            %s836 = sadd.s32 1, %s832
          $region344: #{tpu_custom_call.1} parent=337 // loop_footer_branch
            %831 = sbr.rel target = $region340
          $region345: #{tpu_custom_call.1} parent=337 // loop_exit
            _
        $region338: #{tpu_custom_call.1} parent=299 // pred_fallthru
          _
        // Predicated region
        $region357: #{tpu_custom_call.1} parent=299 // pred_check
          _
        $region358: #{tpu_custom_call.1} parent=299 // pred_check_branch
          %865 = sbr.rel (0) target = $region360
        $region359: #{tpu_custom_call.1} parent=299 // pred_region
          %866 = vsyncadd %s820, 16
        $region360: #{tpu_custom_call.1} parent=299 // pred_fallthru
          _
        %s867 = sadd.s32 %s805, 2
        %s868 = smul.u32 %s867, 128
        %s869 = sadd.s32 %s868, %s810
        %s870 = sld [smem:[#allocation6 + %s869]]
        %p871 = scmp.gt.s32.totalorder %s870, 0
        %s872 = scalar_select %p871, %s870, 0
        %p873 = scmp.lt.s32.totalorder %s872, 255
        %s874 = scalar_select %p873, %s872, 255
        %s875 = scalar_lea.vmem %s1, %s874
        %s876 = sadd.s32 2, %s756
        %s877 = scalar_lea.vmem [#allocation3], %s876
        %s878 = scalar_lea.sflag [#allocation4], %s876
        %p880 = scmp.lt.u32.totalorder 1, 8
        %p881 = pneg %p880
        // Predicated region
        $region361: #{tpu_custom_call.1} parent=299 // pred_check
          _
        $region362: #{tpu_custom_call.1} parent=299 // pred_check_branch
          %883 = sbr.rel (%p880) target = $region364
        $region363: #{tpu_custom_call.1} parent=299 // pred_region
          %s899 = sand.u32 1, 7
          %p900 = scmp.eq.s32.totalorder %s899, 0
          %p901 = pneg %p900
          // Predicated region
          $region376: #{tpu_custom_call.1} parent=363 // pred_check
            _
          $region377: #{tpu_custom_call.1} parent=363 // pred_check_branch
            %903 = sbr.rel (%p900) target = $region379
          $region378: #{tpu_custom_call.1} parent=363 // pred_region
            %s904 = sand.u32 1, 7
            %s905 = ssub.s32 1, %s904
            %s906 = scalar_lea.vmem %s875, %s905
            %s907 = ssub.s32 1, %s904
            %s908 = scalar_lea.vmem %s877, %s907 [#allocation3]
            %s909 = sshll.u32 1, %s904
            %s910 = ssub.s32 %s909, 1
            loop: start=0, step=1, limit=1
            $region380: #{tpu_custom_call.1} parent=378 // loop_pre_header
              _
            $region381: #{tpu_custom_call.1} parent=378 // loop_header
              %s912 = sphi 0, %s916
              %p913 = scmp.ge.s32.totalorder %s912, 1
              %s917 = sphi %s906, %s906
              %s918 = sphi %s908, %s908
            $region382: #{tpu_custom_call.1} parent=378 // loop_header_branch
              %915 = sbr.rel (%p913) target = $region386
            $region383: #{tpu_custom_call.1} parent=378 // loop_body
              %v919 = vld [vmem:[%s917] sm:%s910]
              %920 = vst [vmem:[%s918] sm:%s910] %v919
            $region384: #{tpu_custom_call.1} parent=378 // loop_footer
              %s916 = sadd.s32 1, %s912
            $region385: #{tpu_custom_call.1} parent=378 // loop_footer_branch
              %911 = sbr.rel target = $region381
            $region386: #{tpu_custom_call.1} parent=378 // loop_exit
              _
          $region379: #{tpu_custom_call.1} parent=363 // pred_fallthru
            _
        $region364: #{tpu_custom_call.1} parent=299 // pred_fallthru
          _
        // Predicated region
        $region365: #{tpu_custom_call.1} parent=299 // pred_check
          %p884 = pneg %p880
        $region366: #{tpu_custom_call.1} parent=299 // pred_check_branch
          %886 = sbr.rel (%p884) target = $region368
        $region367: #{tpu_custom_call.1} parent=299 // pred_region
          %s887 = sshll.u32 1, 1
          %s888 = ssub.s32 %s887, 1
          loop: start=0, step=1, limit=1
          $region369: #{tpu_custom_call.1} parent=367 // loop_pre_header
            _
          $region370: #{tpu_custom_call.1} parent=367 // loop_header
            %s890 = sphi 0, %s894
            %p891 = scmp.ge.s32.totalorder %s890, 1
            %s895 = sphi %s875, %s875
            %s896 = sphi %s877, %s877
          $region371: #{tpu_custom_call.1} parent=367 // loop_header_branch
            %893 = sbr.rel (%p891) target = $region375
          $region372: #{tpu_custom_call.1} parent=367 // loop_body
            %v897 = vld [vmem:[%s895] sm:%s888]
            %898 = vst [vmem:[%s896] sm:%s888] %v897
          $region373: #{tpu_custom_call.1} parent=367 // loop_footer
            %s894 = sadd.s32 1, %s890
          $region374: #{tpu_custom_call.1} parent=367 // loop_footer_branch
            %889 = sbr.rel target = $region370
          $region375: #{tpu_custom_call.1} parent=367 // loop_exit
            _
        $region368: #{tpu_custom_call.1} parent=299 // pred_fallthru
          _
        // Predicated region
        $region387: #{tpu_custom_call.1} parent=299 // pred_check
          _
        $region388: #{tpu_custom_call.1} parent=299 // pred_check_branch
          %923 = sbr.rel (0) target = $region390
        $region389: #{tpu_custom_call.1} parent=299 // pred_region
          %924 = vsyncadd %s878, 16
        $region390: #{tpu_custom_call.1} parent=299 // pred_fallthru
          _
        %s925 = sadd.s32 %s805, 3
        %s926 = smul.u32 %s925, 128
        %s927 = sadd.s32 %s926, %s810
        %s928 = sld [smem:[#allocation6 + %s927]]
        %p929 = scmp.gt.s32.totalorder %s928, 0
        %s930 = scalar_select %p929, %s928, 0
        %p931 = scmp.lt.s32.totalorder %s930, 255
        %s932 = scalar_select %p931, %s930, 255
        %s933 = scalar_lea.vmem %s1, %s932
        %s934 = sadd.s32 3, %s756
        %s935 = scalar_lea.vmem [#allocation3], %s934
        %s936 = scalar_lea.sflag [#allocation4], %s934
        %p938 = scmp.lt.u32.totalorder 1, 8
        %p939 = pneg %p938
        // Predicated region
        $region391: #{tpu_custom_call.1} parent=299 // pred_check
          _
        $region392: #{tpu_custom_call.1} parent=299 // pred_check_branch
          %941 = sbr.rel (%p938) target = $region394
        $region393: #{tpu_custom_call.1} parent=299 // pred_region
          %s957 = sand.u32 1, 7
          %p958 = scmp.eq.s32.totalorder %s957, 0
          %p959 = pneg %p958
          // Predicated region
          $region406: #{tpu_custom_call.1} parent=393 // pred_check
            _
          $region407: #{tpu_custom_call.1} parent=393 // pred_check_branch
            %961 = sbr.rel (%p958) target = $region409
          $region408: #{tpu_custom_call.1} parent=393 // pred_region
            %s962 = sand.u32 1, 7
            %s963 = ssub.s32 1, %s962
            %s964 = scalar_lea.vmem %s933, %s963
            %s965 = ssub.s32 1, %s962
            %s966 = scalar_lea.vmem %s935, %s965 [#allocation3]
            %s967 = sshll.u32 1, %s962
            %s968 = ssub.s32 %s967, 1
            loop: start=0, step=1, limit=1
            $region410: #{tpu_custom_call.1} parent=408 // loop_pre_header
              _
            $region411: #{tpu_custom_call.1} parent=408 // loop_header
              %s970 = sphi 0, %s974
              %p971 = scmp.ge.s32.totalorder %s970, 1
              %s975 = sphi %s964, %s964
              %s976 = sphi %s966, %s966
            $region412: #{tpu_custom_call.1} parent=408 // loop_header_branch
              %973 = sbr.rel (%p971) target = $region416
            $region413: #{tpu_custom_call.1} parent=408 // loop_body
              %v977 = vld [vmem:[%s975] sm:%s968]
              %978 = vst [vmem:[%s976] sm:%s968] %v977
            $region414: #{tpu_custom_call.1} parent=408 // loop_footer
              %s974 = sadd.s32 1, %s970
            $region415: #{tpu_custom_call.1} parent=408 // loop_footer_branch
              %969 = sbr.rel target = $region411
            $region416: #{tpu_custom_call.1} parent=408 // loop_exit
              _
          $region409: #{tpu_custom_call.1} parent=393 // pred_fallthru
            _
        $region394: #{tpu_custom_call.1} parent=299 // pred_fallthru
          _
        // Predicated region
        $region395: #{tpu_custom_call.1} parent=299 // pred_check
          %p942 = pneg %p938
        $region396: #{tpu_custom_call.1} parent=299 // pred_check_branch
          %944 = sbr.rel (%p942) target = $region398
        $region397: #{tpu_custom_call.1} parent=299 // pred_region
          %s945 = sshll.u32 1, 1
          %s946 = ssub.s32 %s945, 1
          loop: start=0, step=1, limit=1
          $region399: #{tpu_custom_call.1} parent=397 // loop_pre_header
            _
          $region400: #{tpu_custom_call.1} parent=397 // loop_header
            %s948 = sphi 0, %s952
            %p949 = scmp.ge.s32.totalorder %s948, 1
            %s953 = sphi %s933, %s933
            %s954 = sphi %s935, %s935
          $region401: #{tpu_custom_call.1} parent=397 // loop_header_branch
            %951 = sbr.rel (%p949) target = $region405
          $region402: #{tpu_custom_call.1} parent=397 // loop_body
            %v955 = vld [vmem:[%s953] sm:%s946]
            %956 = vst [vmem:[%s954] sm:%s946] %v955
          $region403: #{tpu_custom_call.1} parent=397 // loop_footer
            %s952 = sadd.s32 1, %s948
          $region404: #{tpu_custom_call.1} parent=397 // loop_footer_branch
            %947 = sbr.rel target = $region400
          $region405: #{tpu_custom_call.1} parent=397 // loop_exit
            _
        $region398: #{tpu_custom_call.1} parent=299 // pred_fallthru
          _
        // Predicated region
        $region417: #{tpu_custom_call.1} parent=299 // pred_check
          _
        $region418: #{tpu_custom_call.1} parent=299 // pred_check_branch
          %981 = sbr.rel (0) target = $region420
        $region419: #{tpu_custom_call.1} parent=299 // pred_region
          %982 = vsyncadd %s936, 16
        $region420: #{tpu_custom_call.1} parent=299 // pred_fallthru
          _
        %s983 = sadd.s32 %s805, 4
        %s984 = smul.u32 %s983, 128
        %s985 = sadd.s32 %s984, %s810
        %s986 = sld [smem:[#allocation6 + %s985]]
        %p987 = scmp.gt.s32.totalorder %s986, 0
        %s988 = scalar_select %p987, %s986, 0
        %p989 = scmp.lt.s32.totalorder %s988, 255
        %s990 = scalar_select %p989, %s988, 255
        %s991 = scalar_lea.vmem %s1, %s990
        %s992 = sadd.s32 4, %s756
        %s993 = scalar_lea.vmem [#allocation3], %s992
        %s994 = scalar_lea.sflag [#allocation4], %s992
        %p996 = scmp.lt.u32.totalorder 1, 8
        %p997 = pneg %p996
        // Predicated region
        $region421: #{tpu_custom_call.1} parent=299 // pred_check
          _
        $region422: #{tpu_custom_call.1} parent=299 // pred_check_branch
          %999 = sbr.rel (%p996) target = $region424
        $region423: #{tpu_custom_call.1} parent=299 // pred_region
          %s1015 = sand.u32 1, 7
          %p1016 = scmp.eq.s32.totalorder %s1015, 0
          %p1017 = pneg %p1016
          // Predicated region
          $region436: #{tpu_custom_call.1} parent=423 // pred_check
            _
          $region437: #{tpu_custom_call.1} parent=423 // pred_check_branch
            %1019 = sbr.rel (%p1016) target = $region439
          $region438: #{tpu_custom_call.1} parent=423 // pred_region
            %s1020 = sand.u32 1, 7
            %s1021 = ssub.s32 1, %s1020
            %s1022 = scalar_lea.vmem %s991, %s1021
            %s1023 = ssub.s32 1, %s1020
            %s1024 = scalar_lea.vmem %s993, %s1023 [#allocation3]
            %s1025 = sshll.u32 1, %s1020
            %s1026 = ssub.s32 %s1025, 1
            loop: start=0, step=1, limit=1
            $region440: #{tpu_custom_call.1} parent=438 // loop_pre_header
              _
            $region441: #{tpu_custom_call.1} parent=438 // loop_header
              %s1028 = sphi 0, %s1032
              %p1029 = scmp.ge.s32.totalorder %s1028, 1
              %s1033 = sphi %s1022, %s1022
              %s1034 = sphi %s1024, %s1024
            $region442: #{tpu_custom_call.1} parent=438 // loop_header_branch
              %1031 = sbr.rel (%p1029) target = $region446
            $region443: #{tpu_custom_call.1} parent=438 // loop_body
              %v1035 = vld [vmem:[%s1033] sm:%s1026]
              %1036 = vst [vmem:[%s1034] sm:%s1026] %v1035
            $region444: #{tpu_custom_call.1} parent=438 // loop_footer
              %s1032 = sadd.s32 1, %s1028
            $region445: #{tpu_custom_call.1} parent=438 // loop_footer_branch
              %1027 = sbr.rel target = $region441
            $region446: #{tpu_custom_call.1} parent=438 // loop_exit
              _
          $region439: #{tpu_custom_call.1} parent=423 // pred_fallthru
            _
        $region424: #{tpu_custom_call.1} parent=299 // pred_fallthru
          _
        // Predicated region
        $region425: #{tpu_custom_call.1} parent=299 // pred_check
          %p1000 = pneg %p996
        $region426: #{tpu_custom_call.1} parent=299 // pred_check_branch
          %1002 = sbr.rel (%p1000) target = $region428
        $region427: #{tpu_custom_call.1} parent=299 // pred_region
          %s1003 = sshll.u32 1, 1
          %s1004 = ssub.s32 %s1003, 1
          loop: start=0, step=1, limit=1
          $region429: #{tpu_custom_call.1} parent=427 // loop_pre_header
            _
          $region430: #{tpu_custom_call.1} parent=427 // loop_header
            %s1006 = sphi 0, %s1010
            %p1007 = scmp.ge.s32.totalorder %s1006, 1
            %s1011 = sphi %s991, %s991
            %s1012 = sphi %s993, %s993
          $region431: #{tpu_custom_call.1} parent=427 // loop_header_branch
            %1009 = sbr.rel (%p1007) target = $region435
          $region432: #{tpu_custom_call.1} parent=427 // loop_body
            %v1013 = vld [vmem:[%s1011] sm:%s1004]
            %1014 = vst [vmem:[%s1012] sm:%s1004] %v1013
          $region433: #{tpu_custom_call.1} parent=427 // loop_footer
            %s1010 = sadd.s32 1, %s1006
          $region434: #{tpu_custom_call.1} parent=427 // loop_footer_branch
            %1005 = sbr.rel target = $region430
          $region435: #{tpu_custom_call.1} parent=427 // loop_exit
            _
        $region428: #{tpu_custom_call.1} parent=299 // pred_fallthru
          _
        // Predicated region
        $region447: #{tpu_custom_call.1} parent=299 // pred_check
          _
        $region448: #{tpu_custom_call.1} parent=299 // pred_check_branch
          %1039 = sbr.rel (0) target = $region450
        $region449: #{tpu_custom_call.1} parent=299 // pred_region
          %1040 = vsyncadd %s994, 16
        $region450: #{tpu_custom_call.1} parent=299 // pred_fallthru
          _
        %s1041 = sadd.s32 %s805, 5
        %s1042 = smul.u32 %s1041, 128
        %s1043 = sadd.s32 %s1042, %s810
        %s1044 = sld [smem:[#allocation6 + %s1043]]
        %p1045 = scmp.gt.s32.totalorder %s1044, 0
        %s1046 = scalar_select %p1045, %s1044, 0
        %p1047 = scmp.lt.s32.totalorder %s1046, 255
        %s1048 = scalar_select %p1047, %s1046, 255
        %s1049 = scalar_lea.vmem %s1, %s1048
        %s1050 = sadd.s32 5, %s756
        %s1051 = scalar_lea.vmem [#allocation3], %s1050
        %s1052 = scalar_lea.sflag [#allocation4], %s1050
        %p1054 = scmp.lt.u32.totalorder 1, 8
        %p1055 = pneg %p1054
        // Predicated region
        $region451: #{tpu_custom_call.1} parent=299 // pred_check
          _
        $region452: #{tpu_custom_call.1} parent=299 // pred_check_branch
          %1057 = sbr.rel (%p1054) target = $region454
        $region453: #{tpu_custom_call.1} parent=299 // pred_region
          %s1073 = sand.u32 1, 7
          %p1074 = scmp.eq.s32.totalorder %s1073, 0
          %p1075 = pneg %p1074
          // Predicated region
          $region466: #{tpu_custom_call.1} parent=453 // pred_check
            _
          $region467: #{tpu_custom_call.1} parent=453 // pred_check_branch
            %1077 = sbr.rel (%p1074) target = $region469
          $region468: #{tpu_custom_call.1} parent=453 // pred_region
            %s1078 = sand.u32 1, 7
            %s1079 = ssub.s32 1, %s1078
            %s1080 = scalar_lea.vmem %s1049, %s1079
            %s1081 = ssub.s32 1, %s1078
            %s1082 = scalar_lea.vmem %s1051, %s1081 [#allocation3]
            %s1083 = sshll.u32 1, %s1078
            %s1084 = ssub.s32 %s1083, 1
            loop: start=0, step=1, limit=1
            $region470: #{tpu_custom_call.1} parent=468 // loop_pre_header
              _
            $region471: #{tpu_custom_call.1} parent=468 // loop_header
              %s1086 = sphi 0, %s1090
              %p1087 = scmp.ge.s32.totalorder %s1086, 1
              %s1091 = sphi %s1080, %s1080
              %s1092 = sphi %s1082, %s1082
            $region472: #{tpu_custom_call.1} parent=468 // loop_header_branch
              %1089 = sbr.rel (%p1087) target = $region476
            $region473: #{tpu_custom_call.1} parent=468 // loop_body
              %v1093 = vld [vmem:[%s1091] sm:%s1084]
              %1094 = vst [vmem:[%s1092] sm:%s1084] %v1093
            $region474: #{tpu_custom_call.1} parent=468 // loop_footer
              %s1090 = sadd.s32 1, %s1086
            $region475: #{tpu_custom_call.1} parent=468 // loop_footer_branch
              %1085 = sbr.rel target = $region471
            $region476: #{tpu_custom_call.1} parent=468 // loop_exit
              _
          $region469: #{tpu_custom_call.1} parent=453 // pred_fallthru
            _
        $region454: #{tpu_custom_call.1} parent=299 // pred_fallthru
          _
        // Predicated region
        $region455: #{tpu_custom_call.1} parent=299 // pred_check
          %p1058 = pneg %p1054
        $region456: #{tpu_custom_call.1} parent=299 // pred_check_branch
          %1060 = sbr.rel (%p1058) target = $region458
        $region457: #{tpu_custom_call.1} parent=299 // pred_region
          %s1061 = sshll.u32 1, 1
          %s1062 = ssub.s32 %s1061, 1
          loop: start=0, step=1, limit=1
          $region459: #{tpu_custom_call.1} parent=457 // loop_pre_header
            _
          $region460: #{tpu_custom_call.1} parent=457 // loop_header
            %s1064 = sphi 0, %s1068
            %p1065 = scmp.ge.s32.totalorder %s1064, 1
            %s1069 = sphi %s1049, %s1049
            %s1070 = sphi %s1051, %s1051
          $region461: #{tpu_custom_call.1} parent=457 // loop_header_branch
            %1067 = sbr.rel (%p1065) target = $region465
          $region462: #{tpu_custom_call.1} parent=457 // loop_body
            %v1071 = vld [vmem:[%s1069] sm:%s1062]
            %1072 = vst [vmem:[%s1070] sm:%s1062] %v1071
          $region463: #{tpu_custom_call.1} parent=457 // loop_footer
            %s1068 = sadd.s32 1, %s1064
          $region464: #{tpu_custom_call.1} parent=457 // loop_footer_branch
            %1063 = sbr.rel target = $region460
          $region465: #{tpu_custom_call.1} parent=457 // loop_exit
            _
        $region458: #{tpu_custom_call.1} parent=299 // pred_fallthru
          _
        // Predicated region
        $region477: #{tpu_custom_call.1} parent=299 // pred_check
          _
        $region478: #{tpu_custom_call.1} parent=299 // pred_check_branch
          %1097 = sbr.rel (0) target = $region480
        $region479: #{tpu_custom_call.1} parent=299 // pred_region
          %1098 = vsyncadd %s1052, 16
        $region480: #{tpu_custom_call.1} parent=299 // pred_fallthru
          _
        %s1099 = sadd.s32 %s805, 6
        %s1100 = smul.u32 %s1099, 128
        %s1101 = sadd.s32 %s1100, %s810
        %s1102 = sld [smem:[#allocation6 + %s1101]]
        %p1103 = scmp.gt.s32.totalorder %s1102, 0
        %s1104 = scalar_select %p1103, %s1102, 0
        %p1105 = scmp.lt.s32.totalorder %s1104, 255
        %s1106 = scalar_select %p1105, %s1104, 255
        %s1107 = scalar_lea.vmem %s1, %s1106
        %s1108 = sadd.s32 6, %s756
        %s1109 = scalar_lea.vmem [#allocation3], %s1108
        %s1110 = scalar_lea.sflag [#allocation4], %s1108
        %p1112 = scmp.lt.u32.totalorder 1, 8
        %p1113 = pneg %p1112
        // Predicated region
        $region481: #{tpu_custom_call.1} parent=299 // pred_check
          _
        $region482: #{tpu_custom_call.1} parent=299 // pred_check_branch
          %1115 = sbr.rel (%p1112) target = $region484
        $region483: #{tpu_custom_call.1} parent=299 // pred_region
          %s1131 = sand.u32 1, 7
          %p1132 = scmp.eq.s32.totalorder %s1131, 0
          %p1133 = pneg %p1132
          // Predicated region
          $region496: #{tpu_custom_call.1} parent=483 // pred_check
            _
          $region497: #{tpu_custom_call.1} parent=483 // pred_check_branch
            %1135 = sbr.rel (%p1132) target = $region499
          $region498: #{tpu_custom_call.1} parent=483 // pred_region
            %s1136 = sand.u32 1, 7
            %s1137 = ssub.s32 1, %s1136
            %s1138 = scalar_lea.vmem %s1107, %s1137
            %s1139 = ssub.s32 1, %s1136
            %s1140 = scalar_lea.vmem %s1109, %s1139 [#allocation3]
            %s1141 = sshll.u32 1, %s1136
            %s1142 = ssub.s32 %s1141, 1
            loop: start=0, step=1, limit=1
            $region500: #{tpu_custom_call.1} parent=498 // loop_pre_header
              _
            $region501: #{tpu_custom_call.1} parent=498 // loop_header
              %s1144 = sphi 0, %s1148
              %p1145 = scmp.ge.s32.totalorder %s1144, 1
              %s1149 = sphi %s1138, %s1138
              %s1150 = sphi %s1140, %s1140
            $region502: #{tpu_custom_call.1} parent=498 // loop_header_branch
              %1147 = sbr.rel (%p1145) target = $region506
            $region503: #{tpu_custom_call.1} parent=498 // loop_body
              %v1151 = vld [vmem:[%s1149] sm:%s1142]
              %1152 = vst [vmem:[%s1150] sm:%s1142] %v1151
            $region504: #{tpu_custom_call.1} parent=498 // loop_footer
              %s1148 = sadd.s32 1, %s1144
            $region505: #{tpu_custom_call.1} parent=498 // loop_footer_branch
              %1143 = sbr.rel target = $region501
            $region506: #{tpu_custom_call.1} parent=498 // loop_exit
              _
          $region499: #{tpu_custom_call.1} parent=483 // pred_fallthru
            _
        $region484: #{tpu_custom_call.1} parent=299 // pred_fallthru
          _
        // Predicated region
        $region485: #{tpu_custom_call.1} parent=299 // pred_check
          %p1116 = pneg %p1112
        $region486: #{tpu_custom_call.1} parent=299 // pred_check_branch
          %1118 = sbr.rel (%p1116) target = $region488
        $region487: #{tpu_custom_call.1} parent=299 // pred_region
          %s1119 = sshll.u32 1, 1
          %s1120 = ssub.s32 %s1119, 1
          loop: start=0, step=1, limit=1
          $region489: #{tpu_custom_call.1} parent=487 // loop_pre_header
            _
          $region490: #{tpu_custom_call.1} parent=487 // loop_header
            %s1122 = sphi 0, %s1126
            %p1123 = scmp.ge.s32.totalorder %s1122, 1
            %s1127 = sphi %s1107, %s1107
            %s1128 = sphi %s1109, %s1109
          $region491: #{tpu_custom_call.1} parent=487 // loop_header_branch
            %1125 = sbr.rel (%p1123) target = $region495
          $region492: #{tpu_custom_call.1} parent=487 // loop_body
            %v1129 = vld [vmem:[%s1127] sm:%s1120]
            %1130 = vst [vmem:[%s1128] sm:%s1120] %v1129
          $region493: #{tpu_custom_call.1} parent=487 // loop_footer
            %s1126 = sadd.s32 1, %s1122
          $region494: #{tpu_custom_call.1} parent=487 // loop_footer_branch
            %1121 = sbr.rel target = $region490
          $region495: #{tpu_custom_call.1} parent=487 // loop_exit
            _
        $region488: #{tpu_custom_call.1} parent=299 // pred_fallthru
          _
        // Predicated region
        $region507: #{tpu_custom_call.1} parent=299 // pred_check
          _
        $region508: #{tpu_custom_call.1} parent=299 // pred_check_branch
          %1155 = sbr.rel (0) target = $region510
        $region509: #{tpu_custom_call.1} parent=299 // pred_region
          %1156 = vsyncadd %s1110, 16
        $region510: #{tpu_custom_call.1} parent=299 // pred_fallthru
          _
        %s1157 = sadd.s32 %s805, 7
        %s1158 = smul.u32 %s1157, 128
        %s1159 = sadd.s32 %s1158, %s810
        %s1160 = sld [smem:[#allocation6 + %s1159]]
        %p1161 = scmp.gt.s32.totalorder %s1160, 0
        %s1162 = scalar_select %p1161, %s1160, 0
        %p1163 = scmp.lt.s32.totalorder %s1162, 255
        %s1164 = scalar_select %p1163, %s1162, 255
        %s1165 = scalar_lea.vmem %s1, %s1164
        %s1166 = sadd.s32 7, %s756
        %s1167 = scalar_lea.vmem [#allocation3], %s1166
        %s1168 = scalar_lea.sflag [#allocation4], %s1166
        %p1170 = scmp.lt.u32.totalorder 1, 8
        %p1171 = pneg %p1170
        // Predicated region
        $region511: #{tpu_custom_call.1} parent=299 // pred_check
          _
        $region512: #{tpu_custom_call.1} parent=299 // pred_check_branch
          %1173 = sbr.rel (%p1170) target = $region514
        $region513: #{tpu_custom_call.1} parent=299 // pred_region
          %s1189 = sand.u32 1, 7
          %p1190 = scmp.eq.s32.totalorder %s1189, 0
          %p1191 = pneg %p1190
          // Predicated region
          $region526: #{tpu_custom_call.1} parent=513 // pred_check
            _
          $region527: #{tpu_custom_call.1} parent=513 // pred_check_branch
            %1193 = sbr.rel (%p1190) target = $region529
          $region528: #{tpu_custom_call.1} parent=513 // pred_region
            %s1194 = sand.u32 1, 7
            %s1195 = ssub.s32 1, %s1194
            %s1196 = scalar_lea.vmem %s1165, %s1195
            %s1197 = ssub.s32 1, %s1194
            %s1198 = scalar_lea.vmem %s1167, %s1197 [#allocation3]
            %s1199 = sshll.u32 1, %s1194
            %s1200 = ssub.s32 %s1199, 1
            loop: start=0, step=1, limit=1
            $region530: #{tpu_custom_call.1} parent=528 // loop_pre_header
              _
            $region531: #{tpu_custom_call.1} parent=528 // loop_header
              %s1202 = sphi 0, %s1206
              %p1203 = scmp.ge.s32.totalorder %s1202, 1
              %s1207 = sphi %s1196, %s1196
              %s1208 = sphi %s1198, %s1198
            $region532: #{tpu_custom_call.1} parent=528 // loop_header_branch
              %1205 = sbr.rel (%p1203) target = $region536
            $region533: #{tpu_custom_call.1} parent=528 // loop_body
              %v1209 = vld [vmem:[%s1207] sm:%s1200]
              %1210 = vst [vmem:[%s1208] sm:%s1200] %v1209
            $region534: #{tpu_custom_call.1} parent=528 // loop_footer
              %s1206 = sadd.s32 1, %s1202
            $region535: #{tpu_custom_call.1} parent=528 // loop_footer_branch
              %1201 = sbr.rel target = $region531
            $region536: #{tpu_custom_call.1} parent=528 // loop_exit
              _
          $region529: #{tpu_custom_call.1} parent=513 // pred_fallthru
            _
        $region514: #{tpu_custom_call.1} parent=299 // pred_fallthru
          _
        // Predicated region
        $region515: #{tpu_custom_call.1} parent=299 // pred_check
          %p1174 = pneg %p1170
        $region516: #{tpu_custom_call.1} parent=299 // pred_check_branch
          %1176 = sbr.rel (%p1174) target = $region518
        $region517: #{tpu_custom_call.1} parent=299 // pred_region
          %s1177 = sshll.u32 1, 1
          %s1178 = ssub.s32 %s1177, 1
          loop: start=0, step=1, limit=1
          $region519: #{tpu_custom_call.1} parent=517 // loop_pre_header
            _
          $region520: #{tpu_custom_call.1} parent=517 // loop_header
            %s1180 = sphi 0, %s1184
            %p1181 = scmp.ge.s32.totalorder %s1180, 1
            %s1185 = sphi %s1165, %s1165
            %s1186 = sphi %s1167, %s1167
          $region521: #{tpu_custom_call.1} parent=517 // loop_header_branch
            %1183 = sbr.rel (%p1181) target = $region525
          $region522: #{tpu_custom_call.1} parent=517 // loop_body
            %v1187 = vld [vmem:[%s1185] sm:%s1178]
            %1188 = vst [vmem:[%s1186] sm:%s1178] %v1187
          $region523: #{tpu_custom_call.1} parent=517 // loop_footer
            %s1184 = sadd.s32 1, %s1180
          $region524: #{tpu_custom_call.1} parent=517 // loop_footer_branch
            %1179 = sbr.rel target = $region520
          $region525: #{tpu_custom_call.1} parent=517 // loop_exit
            _
        $region518: #{tpu_custom_call.1} parent=299 // pred_fallthru
          _
        // Predicated region
        $region537: #{tpu_custom_call.1} parent=299 // pred_check
          _
        $region538: #{tpu_custom_call.1} parent=299 // pred_check_branch
          %1213 = sbr.rel (0) target = $region540
        $region539: #{tpu_custom_call.1} parent=299 // pred_region
          %1214 = vsyncadd %s1168, 16
        $region540: #{tpu_custom_call.1} parent=299 // pred_fallthru
          _
      $region300: #{tpu_custom_call.1} parent=51 // pred_fallthru
        _
      %s1215 = smul.u32 %s307, 8
      %s1216 = scalar_lea.sflag [#allocation4], %s1215
      %1218 = dma.done %s1216, 16
      %s1219 = sadd.s32 1, %s1215
      %s1220 = scalar_lea.sflag [#allocation4], %s1219
      %1222 = dma.done %s1220, 16
      %s1223 = sadd.s32 2, %s1215
      %s1224 = scalar_lea.sflag [#allocation4], %s1223
      %1226 = dma.done %s1224, 16
      %s1227 = sadd.s32 3, %s1215
      %s1228 = scalar_lea.sflag [#allocation4], %s1227
      %1230 = dma.done %s1228, 16
      %s1231 = sadd.s32 4, %s1215
      %s1232 = scalar_lea.sflag [#allocation4], %s1231
      %1234 = dma.done %s1232, 16
      %s1235 = sadd.s32 5, %s1215
      %s1236 = scalar_lea.sflag [#allocation4], %s1235
      %1238 = dma.done %s1236, 16
      %s1239 = sadd.s32 6, %s1215
      %s1240 = scalar_lea.sflag [#allocation4], %s1239
      %1242 = dma.done %s1240, 16
      %s1243 = sadd.s32 7, %s1215
      %s1244 = scalar_lea.sflag [#allocation4], %s1243
      %1246 = dma.done %s1244, 16
      %s1247 = scalar_lea.vmem [#allocation3], %s1215
      %v1248 = vld [vmem:[%s1247] sm:$0xff]
      %v1249 = vpack.c.bf16 %v1248, %v1248
      %v1250 = vld [vmem:[#allocation2] sm:$0xff]
      %v1251 = vld [vmem:[%s300] sm:$0xf]
      %v1252 = vld [vmem:[%s300 + $0x4] sm:$0xf]
      %v1253 = vld [vmem:[%s300 + $0x8] sm:$0xf]
      %v1254 = vld [vmem:[%s300 + $0xc] sm:$0xf]
      %v1255 = vld [vmem:[%s300 + $0x10] sm:$0xf]
      %v1256 = vld [vmem:[%s300 + $0x14] sm:$0xf]
      %v1257 = vld [vmem:[%s300 + $0x18] sm:$0xf]
      %v1258 = vld [vmem:[%s300 + $0x1c] sm:$0xf]
      %v1259 = vld [vmem:[%s300 + $0x20] sm:$0xf]
      %v1260 = vld [vmem:[%s300 + $0x24] sm:$0xf]
      %v1261 = vld [vmem:[%s300 + $0x28] sm:$0xf]
      %v1262 = vld [vmem:[%s300 + $0x2c] sm:$0xf]
      %v1263 = vld [vmem:[%s300 + $0x30] sm:$0xf]
      %v1264 = vld [vmem:[%s300 + $0x34] sm:$0xf]
      %v1265 = vld [vmem:[%s300 + $0x38] sm:$0xf]
      %v1266 = vld [vmem:[%s300 + $0x3c] sm:$0xf]
      %v1283 = vunpack.c.l.b16 %v1251
      %v1284 = vunpack.c.l.b16 %v1252
      %v1285 = vunpack.c.l.b16 %v1253
      %v1286 = vunpack.c.l.b16 %v1254
      %v1287 = vunpack.c.l.b16 %v1255
      %v1288 = vunpack.c.l.b16 %v1256
      %v1289 = vunpack.c.l.b16 %v1257
      %v1290 = vunpack.c.l.b16 %v1258
      %v1291 = vunpack.c.l.b16 %v1259
      %v1292 = vunpack.c.l.b16 %v1260
      %v1293 = vunpack.c.l.b16 %v1261
      %v1294 = vunpack.c.l.b16 %v1262
      %v1295 = vunpack.c.l.b16 %v1263
      %v1296 = vunpack.c.l.b16 %v1264
      %v1297 = vunpack.c.l.b16 %v1265
      %v1298 = vunpack.c.l.b16 %v1266
      %v1299 = vpack.c.b16 %v1284, %v1283
      %v1300 = vpack.c.b16 %v1286, %v1285
      %v1301 = vpack.c.b16 %v1288, %v1287
      %v1302 = vpack.c.b16 %v1290, %v1289
      %v1303 = vpack.c.b16 %v1292, %v1291
      %v1304 = vpack.c.b16 %v1294, %v1293
      %v1305 = vpack.c.b16 %v1296, %v1295
      %v1306 = vpack.c.b16 %v1298, %v1297
      %1315 = vmatprep.subr.bf16.mxu0 0
      %1316 = vmatpush1.bf16.msra.mxu0 %v1306
      %1317 = vmatprep.subr.bf16.mxu0 0
      %1318 = vmatpush1.bf16.msra.mxu0 %v1305
      %1319 = vmatprep.subr.bf16.mxu0 0
      %1320 = vmatpush1.bf16.msra.mxu0 %v1304
      %1321 = vmatprep.subr.bf16.mxu0 0
      %1322 = vmatpush1.bf16.msra.mxu0 %v1303
      %1323 = vmatprep.subr.bf16.mxu0 0
      %1324 = vmatpush1.bf16.msra.mxu0 %v1302
      %1325 = vmatprep.subr.bf16.mxu0 0
      %1326 = vmatpush1.bf16.msra.mxu0 %v1301
      %1327 = vmatprep.subr.bf16.mxu0 0
      %1328 = vmatpush1.bf16.msra.mxu0 %v1300
      %1329 = vmatprep.subr.bf16.mxu0 0
      %1330 = vmatpush1.bf16.msra.mxu0 %v1299
      %1331 = vmatprep.subr.bf16.mxu0 0
      %1332 = vmatpush2.bf16.msra.mxu0 0
      %1333 = vmatprep.subr.bf16.mxu0 0
      %1334 = vmatpush2.bf16.msra.mxu0 0
      %1335 = vmatprep.subr.bf16.mxu0 0
      %1336 = vmatpush2.bf16.msra.mxu0 0
      %1337 = vmatprep.subr.bf16.mxu0 0
      %1338 = vmatpush2.bf16.msra.mxu0 0
      %1339 = vmatprep.subr.bf16.mxu0 0
      %1340 = vmatpush2.bf16.msra.mxu0 0
      %1341 = vmatprep.subr.bf16.mxu0 0
      %1342 = vmatpush2.bf16.msra.mxu0 0
      %1343 = vmatprep.subr.bf16.mxu0 0
      %1344 = vmatpush2.bf16.msra.mxu0 0
      %1345 = vmatprep.subr.bf16.mxu0 0
      %1346 = vmatpush2.bf16.msra.mxu0 0
      %1347 = vmatprep.mubr.bf16.mxu0 0
      %1348 = vmatmul.mubr.bf16.gmra.mxu0 %v1249
      %v1349 = vpop.f32.mrf.mxu0
      %v1350 = vadd.f32 0.0, %v1349
      %v1351 = vpop.f32.mrf.mxu0
      %v1352 = vpop.f32.mrf.mxu0
      %v1353 = vpop.f32.mrf.mxu0
      %1354 = vdwg.mxu0
      %v1355 = vadd.f32 %v1250, %v1350
      %vm1356 = vcmask 523264
      %1357 = vst.msk [vmem:[#allocation2] sm:$0xff] %vm1356, %v1355
      %p1358 = scmp.eq.s32.totalorder %s29, 7
      // Predicated region
      $region541: #{tpu_custom_call.1} parent=51 // pred_check
        %p1359 = pneg %p1358
      $region542: #{tpu_custom_call.1} parent=51 // pred_check_branch
        %1361 = sbr.rel (%p1359) target = $region544
      $region543: #{tpu_custom_call.1} parent=51 // pred_region
        %v1362 = vld [vmem:[#allocation2] sm:$0xff]
        %v1363 = vld [vmem:[%s3] sm:$0x1]
        %v1364 = vld [vmem:[%s4] sm:$0x1]
        %v1365 = vsel %vm1356, %v1362, 0.0
        %v1366 = vrot.slane %v1365, 4
        %v1367 = vadd.f32 %v1365, %v1366
        %v1368 = vrot.slane %v1367, 2
        %v1369 = vadd.f32 %v1367, %v1368
        %v1370 = vrot.slane %v1369, 1
        %v1371 = vadd.f32 %v1369, %v1370
        %v1372 = vrcp.pop 8.0
        %v1373 = vmul.f32 %v1371, %v1372
        %v1374 = vsub.f32 %v1362, %v1373
        %v1375 = vmul.f32 %v1374, %v1374
        %v1376 = vsel %vm1356, %v1375, 0.0
        %v1377 = vrot.slane %v1376, 4
        %v1378 = vadd.f32 %v1376, %v1377
        %v1379 = vrot.slane %v1378, 2
        %v1380 = vadd.f32 %v1378, %v1379
        %v1381 = vrot.slane %v1380, 1
        %v1382 = vadd.f32 %v1380, %v1381
        %v1383 = vmul.f32 %v1382, %v1372
        %v1384 = vadd.f32 %v1383, 1e-05
        %v1385 = vrsqrt.pop %v1384
        %v1386 = vmul.f32 %v1363, %v1385
        %v1387 = vmul.f32 %v1373, %v1386
        %v1388 = vsub.f32 %v1364, %v1387
        %v1390 = vlaneseq
        %v1391 = vshrl.u32 %v1390, 7
        %v1392 = vsub.s32 0, %v1391
        %v1393 = vrot.slane %v1386, %v1392
        %v1395 = vmul.f32 %v1362, %v1393
        %v1397 = vlaneseq
        %v1398 = vshrl.u32 %v1397, 7
        %v1399 = vsub.s32 0, %v1398
        %v1400 = vrot.slane %v1388, %v1399
        %v1402 = vadd.f32 %v1395, %v1400
        %v1403 = vmax.f32 %v1402, 0.0
        %v1404 = vld [vmem:[%s5] sm:$0xff]
        %v1405 = vld [vmem:[%s5 + $0x8] sm:$0xff]
        %v1406 = vld [vmem:[%s5 + $0x10] sm:$0xff]
        %v1407 = vld [vmem:[%s5 + $0x18] sm:$0xff]
        %v1408 = vld [vmem:[%s5 + $0x20] sm:$0xff]
        %v1409 = vld [vmem:[%s5 + $0x28] sm:$0xff]
        %v1410 = vld [vmem:[%s5 + $0x30] sm:$0xff]
        %v1411 = vld [vmem:[%s5 + $0x38] sm:$0xff]
        %v1413 = vsel %vm1356, %v1403, 0
        %1415 = vmatprep.subr.mxu0 0.0
        %1416 = vmatpush1.msra.mxu0 0.0
        %1417 = vmatprep.subr.mxu0 0.0
        %1418 = vmatpush1.msra.mxu0 0.0
        %1419 = vmatprep.subr.mxu0 0.0
        %1420 = vmatpush1.msra.mxu0 0.0
        %1421 = vmatprep.subr.mxu0 0.0
        %1422 = vmatpush1.msra.mxu0 0.0
        %1423 = vmatprep.subr.mxu0 0.0
        %1424 = vmatpush1.msra.mxu0 0.0
        %1425 = vmatprep.subr.mxu0 0.0
        %1426 = vmatpush1.msra.mxu0 0.0
        %1427 = vmatprep.subr.mxu0 0.0
        %1428 = vmatpush1.msra.mxu0 0.0
        %1429 = vmatprep.subr.mxu0 0.0
        %1430 = vmatpush1.msra.mxu0 0.0
        %1431 = vmatprep.subr.mxu0 0.0
        %1432 = vmatpush1.msra.mxu0 %v1411
        %1433 = vmatprep.subr.mxu0 0.0
        %1434 = vmatpush1.msra.mxu0 %v1410
        %1435 = vmatprep.subr.mxu0 0.0
        %1436 = vmatpush1.msra.mxu0 %v1409
        %1437 = vmatprep.subr.mxu0 0.0
        %1438 = vmatpush1.msra.mxu0 %v1408
        %1439 = vmatprep.subr.mxu0 0.0
        %1440 = vmatpush1.msra.mxu0 %v1407
        %1441 = vmatprep.subr.mxu0 0.0
        %1442 = vmatpush1.msra.mxu0 %v1406
        %1443 = vmatprep.subr.mxu0 0.0
        %1444 = vmatpush1.msra.mxu0 %v1405
        %1445 = vmatprep.subr.mxu0 0.0
        %1446 = vmatpush1.msra.mxu0 %v1404
        %1447 = vmatprep.subr.mxu0 0.0
        %1448 = vmatpush2.msra.mxu0 0.0
        %1449 = vmatprep.subr.mxu0 0.0
        %1450 = vmatpush2.msra.mxu0 0.0
        %1451 = vmatprep.subr.mxu0 0.0
        %1452 = vmatpush2.msra.mxu0 0.0
        %1453 = vmatprep.subr.mxu0 0.0
        %1454 = vmatpush2.msra.mxu0 0.0
        %1455 = vmatprep.subr.mxu0 0.0
        %1456 = vmatpush2.msra.mxu0 0.0
        %1457 = vmatprep.subr.mxu0 0.0
        %1458 = vmatpush2.msra.mxu0 0.0
        %1459 = vmatprep.subr.mxu0 0.0
        %1460 = vmatpush2.msra.mxu0 0.0
        %1461 = vmatprep.subr.mxu0 0.0
        %1462 = vmatpush2.msra.mxu0 0.0
        %1463 = vmatprep.subr.mxu0 0.0
        %1464 = vmatpush2.msra.mxu0 0.0
        %1465 = vmatprep.subr.mxu0 0.0
        %1466 = vmatpush2.msra.mxu0 0.0
        %1467 = vmatprep.subr.mxu0 0.0
        %1468 = vmatpush2.msra.mxu0 0.0
        %1469 = vmatprep.subr.mxu0 0.0
        %1470 = vmatpush2.msra.mxu0 0.0
        %1471 = vmatprep.subr.mxu0 0.0
        %1472 = vmatpush2.msra.mxu0 0.0
        %1473 = vmatprep.subr.mxu0 0.0
        %1474 = vmatpush2.msra.mxu0 0.0
        %1475 = vmatprep.subr.mxu0 0.0
        %1476 = vmatpush2.msra.mxu0 0.0
        %1477 = vmatprep.subr.mxu0 0.0
        %1478 = vmatpush2.msra.mxu0 0.0
        %1479 = vmatprep.mubr.f32.mxu0 0.0
        %1480 = vmatmul.mubr.f32.gmra.mxu0 %v1413
        %v1481 = vpop.f32.mrf.mxu0
        %v1482 = vadd.f32 0.0, %v1481
        %v1483 = vpop.f32.mrf.mxu0
        %1484 = vdwg.mxu0
        %v1485 = vld [vmem:[%s6] sm:$0x1]
        %v1486 = vld [vmem:[%s7] sm:$0x1]
        %vm1487 = vcmask 130048
        %v1488 = vsel %vm1487, %v1482, 0.0
        %v1489 = vrot.slane %v1488, 4
        %v1490 = vadd.f32 %v1488, %v1489
        %v1491 = vrot.slane %v1490, 2
        %v1492 = vadd.f32 %v1490, %v1491
        %v1493 = vrot.slane %v1492, 1
        %v1494 = vadd.f32 %v1492, %v1493
        %v1495 = vmul.f32 %v1494, %v1372
        %v1496 = vsub.f32 %v1482, %v1495
        %v1497 = vmul.f32 %v1496, %v1496
        %v1498 = vsel %vm1487, %v1497, 0.0
        %v1499 = vrot.slane %v1498, 4
        %v1500 = vadd.f32 %v1498, %v1499
        %v1501 = vrot.slane %v1500, 2
        %v1502 = vadd.f32 %v1500, %v1501
        %v1503 = vrot.slane %v1502, 1
        %v1504 = vadd.f32 %v1502, %v1503
        %v1505 = vmul.f32 %v1504, %v1372
        %v1506 = vadd.f32 %v1505, 1e-05
        %v1507 = vrsqrt.pop %v1506
        %v1508 = vmul.f32 %v1485, %v1507
        %v1509 = vmul.f32 %v1495, %v1508
        %v1510 = vsub.f32 %v1486, %v1509
        %v1512 = vlaneseq
        %v1513 = vshrl.u32 %v1512, 7
        %v1514 = vsub.s32 0, %v1513
        %v1515 = vrot.slane %v1508, %v1514
        %v1517 = vmul.f32 %v1482, %v1515
        %v1519 = vlaneseq
        %v1520 = vshrl.u32 %v1519, 7
        %v1521 = vsub.s32 0, %v1520
        %v1522 = vrot.slane %v1510, %v1521
        %v1524 = vadd.f32 %v1517, %v1522
        %v1525 = vmax.f32 %v1524, 0.0
        %v1526 = vld [vmem:[%s8] sm:$0xff]
        %v1527 = vld [vmem:[%s8 + $0x8] sm:$0xff]
        %v1528 = vld [vmem:[#allocation7] sm:$0x1]
        %v1530 = vlaneseq
        %v1531 = vshrl.u32 %v1530, 7
        %v1532 = vsub.s32 0, %v1531
        %v1533 = vrot.slane %v1528, %v1532
        %v1536 = vsel %vm1487, %v1525, 0
        %1538 = vmatprep.subr.mxu0 0.0
        %1539 = vmatpush1.msra.mxu0 0.0
        %1540 = vmatprep.subr.mxu0 0.0
        %1541 = vmatpush1.msra.mxu0 0.0
        %1542 = vmatprep.subr.mxu0 0.0
        %1543 = vmatpush1.msra.mxu0 0.0
        %1544 = vmatprep.subr.mxu0 0.0
        %1545 = vmatpush1.msra.mxu0 0.0
        %1546 = vmatprep.subr.mxu0 0.0
        %1547 = vmatpush1.msra.mxu0 0.0
        %1548 = vmatprep.subr.mxu0 0.0
        %1549 = vmatpush1.msra.mxu0 0.0
        %1550 = vmatprep.subr.mxu0 0.0
        %1551 = vmatpush1.msra.mxu0 0.0
        %1552 = vmatprep.subr.mxu0 0.0
        %1553 = vmatpush1.msra.mxu0 0.0
        %1554 = vmatprep.subr.mxu0 0.0
        %1555 = vmatpush1.msra.mxu0 0.0
        %1556 = vmatprep.subr.mxu0 0.0
        %1557 = vmatpush1.msra.mxu0 0.0
        %1558 = vmatprep.subr.mxu0 0.0
        %1559 = vmatpush1.msra.mxu0 0.0
        %1560 = vmatprep.subr.mxu0 0.0
        %1561 = vmatpush1.msra.mxu0 0.0
        %1562 = vmatprep.subr.mxu0 0.0
        %1563 = vmatpush1.msra.mxu0 0.0
        %1564 = vmatprep.subr.mxu0 0.0
        %1565 = vmatpush1.msra.mxu0 0.0
        %1566 = vmatprep.subr.mxu0 0.0
        %1567 = vmatpush1.msra.mxu0 %v1527
        %1568 = vmatprep.subr.mxu0 0.0
        %1569 = vmatpush1.msra.mxu0 %v1526
        %1570 = vmatprep.subr.mxu0 0.0
        %1571 = vmatpush2.msra.mxu0 0.0
        %1572 = vmatprep.subr.mxu0 0.0
        %1573 = vmatpush2.msra.mxu0 0.0
        %1574 = vmatprep.subr.mxu0 0.0
        %1575 = vmatpush2.msra.mxu0 0.0
        %1576 = vmatprep.subr.mxu0 0.0
        %1577 = vmatpush2.msra.mxu0 0.0
        %1578 = vmatprep.subr.mxu0 0.0
        %1579 = vmatpush2.msra.mxu0 0.0
        %1580 = vmatprep.subr.mxu0 0.0
        %1581 = vmatpush2.msra.mxu0 0.0
        %1582 = vmatprep.subr.mxu0 0.0
        %1583 = vmatpush2.msra.mxu0 0.0
        %1584 = vmatprep.subr.mxu0 0.0
        %1585 = vmatpush2.msra.mxu0 0.0
        %1586 = vmatprep.subr.mxu0 0.0
        %1587 = vmatpush2.msra.mxu0 0.0
        %1588 = vmatprep.subr.mxu0 0.0
        %1589 = vmatpush2.msra.mxu0 0.0
        %1590 = vmatprep.subr.mxu0 0.0
        %1591 = vmatpush2.msra.mxu0 0.0
        %1592 = vmatprep.subr.mxu0 0.0
        %1593 = vmatpush2.msra.mxu0 0.0
        %1594 = vmatprep.subr.mxu0 0.0
        %1595 = vmatpush2.msra.mxu0 0.0
        %1596 = vmatprep.subr.mxu0 0.0
        %1597 = vmatpush2.msra.mxu0 0.0
        %1598 = vmatprep.subr.mxu0 0.0
        %1599 = vmatpush2.msra.mxu0 0.0
        %1600 = vmatprep.subr.mxu0 0.0
        %1601 = vmatpush2.msra.mxu0 0.0
        %1602 = vmatprep.mubr.f32.mxu0 0.0
        %1603 = vmatmul.mubr.f32.gmra.mxu0 %v1536
        %v1604 = vpop.f32.mrf.mxu0
        %v1605 = vadd.f32 %v1533, %v1604
        %v1606 = vpop.f32.mrf.mxu0
        %1607 = vdwg.mxu0
        %v1608 = vxor.u32 %v1605, 2147483648
        %v1609 = vmul.f32 %v1608, 1.442695
        %v1610 = vpow.pop %v1609
        %v1611 = vadd.f32 %v1610, 1.0
        %v1612 = vrcp.pop %v1611
        %v1613 = vmul.f32 1.0, %v1612
        %vm1614 = vcmask 7168
        %1615 = vst.msk [vmem:[%s10] sm:$0xff] %vm1614, %v1613
      $region544: #{tpu_custom_call.1} parent=51 // pred_fallthru
        _
      // Predicated region
      $region545: #{tpu_custom_call.1} parent=51 // pred_check
        %p1616 = pneg %p215
      $region546: #{tpu_custom_call.1} parent=51 // pred_check_branch
        %1618 = sbr.rel (%p1616) target = $region548
      $region547: #{tpu_custom_call.1} parent=51 // pred_region
        _
      $region548: #{tpu_custom_call.1} parent=51 // pred_fallthru
        _
      // Predicated region
      $region549: #{tpu_custom_call.1} parent=51 // pred_check
        %p1619 = pneg %p215
      $region550: #{tpu_custom_call.1} parent=51 // pred_check_branch
        %1621 = sbr.rel (%p1619) target = $region552
      $region551: #{tpu_custom_call.1} parent=51 // pred_region
        _
      $region552: #{tpu_custom_call.1} parent=51 // pred_fallthru
        _
    $region52: #{tpu_custom_call.1} parent=5 // pred_fallthru
      _
    %p1622 = scmp.le.s32.totalorder 2, %s24
    // Predicated region
    $region553: #{tpu_custom_call.1} parent=5 // pred_check
      %p1623 = pneg %p1622
    $region554: #{tpu_custom_call.1} parent=5 // pred_check_branch
      %1625 = sbr.rel (%p1623) target = $region556
    $region555: #{tpu_custom_call.1} parent=5 // pred_region
      %s1626 = ssub.s32 %s24, 2
    $region556: #{tpu_custom_call.1} parent=5 // pred_fallthru
      _
  $region6: #{tpu_custom_call.1} parent=0 // loop_footer
    %s28 = sadd.s32 1, %s24
  $region7: #{tpu_custom_call.1} parent=0 // loop_footer_branch
    %23 = sbr.rel target = $region3
  $region8: #{tpu_custom_call.1} parent=0 // loop_exit
    _
  %1627 = vsyncmov [#allocation4]
  %s1628 = vpop.sfrf %1627
  %p1629 = scmp.eq.s32.totalorder %s1628, 0
  %p1630 = pneg %p1629
  %1632 = shalt.err (%p1630)
  %s1633 = scalar_lea.sflag [#allocation4], 1
  %1634 = vsyncmov %s1633
  %s1635 = vpop.sfrf %1634
  %p1636 = scmp.eq.s32.totalorder %s1635, 0
  %p1637 = pneg %p1636
  %1639 = shalt.err (%p1637)
  %s1640 = scalar_lea.sflag [#allocation4], 2
  %1641 = vsyncmov %s1640
  %s1642 = vpop.sfrf %1641
  %p1643 = scmp.eq.s32.totalorder %s1642, 0
  %p1644 = pneg %p1643
  %1646 = shalt.err (%p1644)
  %s1647 = scalar_lea.sflag [#allocation4], 3
  %1648 = vsyncmov %s1647
  %s1649 = vpop.sfrf %1648
  %p1650 = scmp.eq.s32.totalorder %s1649, 0
  %p1651 = pneg %p1650
  %1653 = shalt.err (%p1651)
  %s1654 = scalar_lea.sflag [#allocation4], 4
  %1655 = vsyncmov %s1654
  %s1656 = vpop.sfrf %1655
  %p1657 = scmp.eq.s32.totalorder %s1656, 0
  %p1658 = pneg %p1657
  %1660 = shalt.err (%p1658)
  %s1661 = scalar_lea.sflag [#allocation4], 5
  %1662 = vsyncmov %s1661
  %s1663 = vpop.sfrf %1662
  %p1664 = scmp.eq.s32.totalorder %s1663, 0
  %p1665 = pneg %p1664
  %1667 = shalt.err (%p1665)
  %s1668 = scalar_lea.sflag [#allocation4], 6
  %1669 = vsyncmov %s1668
  %s1670 = vpop.sfrf %1669
  %p1671 = scmp.eq.s32.totalorder %s1670, 0
  %p1672 = pneg %p1671
  %1674 = shalt.err (%p1672)
  %s1675 = scalar_lea.sflag [#allocation4], 7
  %1676 = vsyncmov %s1675
  %s1677 = vpop.sfrf %1676
  %p1678 = scmp.eq.s32.totalorder %s1677, 0
  %p1679 = pneg %p1678
  %1681 = shalt.err (%p1679)
  %s1682 = scalar_lea.sflag [#allocation4], 8
  %1683 = vsyncmov %s1682
  %s1684 = vpop.sfrf %1683
  %p1685 = scmp.eq.s32.totalorder %s1684, 0
  %p1686 = pneg %p1685
  %1688 = shalt.err (%p1686)
  %s1689 = scalar_lea.sflag [#allocation4], 9
  %1690 = vsyncmov %s1689
  %s1691 = vpop.sfrf %1690
  %p1692 = scmp.eq.s32.totalorder %s1691, 0
  %p1693 = pneg %p1692
  %1695 = shalt.err (%p1693)
  %s1696 = scalar_lea.sflag [#allocation4], 10
  %1697 = vsyncmov %s1696
  %s1698 = vpop.sfrf %1697
  %p1699 = scmp.eq.s32.totalorder %s1698, 0
  %p1700 = pneg %p1699
  %1702 = shalt.err (%p1700)
  %s1703 = scalar_lea.sflag [#allocation4], 11
  %1704 = vsyncmov %s1703
  %s1705 = vpop.sfrf %1704
  %p1706 = scmp.eq.s32.totalorder %s1705, 0
  %p1707 = pneg %p1706
  %1709 = shalt.err (%p1707)
  %s1710 = scalar_lea.sflag [#allocation4], 12
  %1711 = vsyncmov %s1710
  %s1712 = vpop.sfrf %1711
  %p1713 = scmp.eq.s32.totalorder %s1712, 0
  %p1714 = pneg %p1713
  %1716 = shalt.err (%p1714)
  %s1717 = scalar_lea.sflag [#allocation4], 13
  %1718 = vsyncmov %s1717
  %s1719 = vpop.sfrf %1718
  %p1720 = scmp.eq.s32.totalorder %s1719, 0
  %p1721 = pneg %p1720
  %1723 = shalt.err (%p1721)
  %s1724 = scalar_lea.sflag [#allocation4], 14
  %1725 = vsyncmov %s1724
  %s1726 = vpop.sfrf %1725
  %p1727 = scmp.eq.s32.totalorder %s1726, 0
  %p1728 = pneg %p1727
  %1730 = shalt.err (%p1728)
  %s1731 = scalar_lea.sflag [#allocation4], 15
  %1732 = vsyncmov %s1731
  %s1733 = vpop.sfrf %1732
  %p1734 = scmp.eq.s32.totalorder %s1733, 0
  %p1735 = pneg %p1734
  %1737 = shalt.err (%p1735)

</llo_original>
